<compile_context>
chip_gen: v6e
topology: v6e:2x2x1
jax: 0.10.0
libtpu: 0.0.40
codegen_flags: <defaults>
</compile_context>

<pallas_src>
import math

import jax
import jax.numpy as jnp
from jax.experimental import pallas as pl
from jax.experimental.pallas import tpu as pltpu

# ----------------------------- tiny Qwen config ------------------------------
VOCAB = 128
HIDDEN = 64
N_HEADS = 4
N_KV_HEADS = 2
HEAD_DIM = HIDDEN // N_HEADS          # 16
KV_DIM = N_KV_HEADS * HEAD_DIM        # 32
QKV_DIM = HIDDEN + 2 * KV_DIM         # 128  (lane-dense fused QKV output)
INTER = 128
N_LAYERS = 2
RMS_EPS = 1e-6
ROPE_THETA = 10000.0
LORA_R = 4
LORA_ALPHA = 8

_VMEM = pl.BlockSpec(memory_space=pltpu.MemorySpace.VMEM)


# --------------------------- the fused model kernel ---------------------------
def _qwen_kernel(ids_ref, mask_ref, idx_ref, cos_ref, sin_ref, rot_ref, embed_ref,
                 ln1_ref, wqkv_ref, bqkv_ref, wo_ref,
                 ln2_ref, wgu_ref, wd_ref, lnf_ref, o_ref):
    B, S = mask_ref.shape
    BS = ids_ref.shape[0]
    H = HIDDEN
    rep = N_HEADS // N_KV_HEADS
    BH = B * N_HEADS

    # ---- fused token-embedding lookup: one-hot @ embed on the MXU (no XLA gather launch)
    ids = ids_ref[...]                                                     # (BS, 1) int32
    onehot = jnp.where(
        jax.lax.broadcasted_iota(jnp.int32, (BS, VOCAB), 1) == ids, 1.0, 0.0
    ).astype(jnp.bfloat16)                                                 # (BS, VOCAB)
    h = jnp.dot(onehot, embed_ref[...],
                preferred_element_type=jnp.float32).astype(jnp.bfloat16)   # (BS, H)

    # ---- causal AND key-mask as one additive f32 bias, built ONCE and reused by both layers
    # (scores stay f32 so -1e30 never overflows; fully-masked pad-query rows get a harmless
    #  uniform softmax — pooling never selects them).
    m = mask_ref[...]                                                      # (B, S) int32
    r = jax.lax.broadcasted_iota(jnp.int32, (S, S), 0)
    c = jax.lax.broadcasted_iota(jnp.int32, (S, S), 1)
    allowed = jnp.logical_and((r >= c)[None, :, :], (m > 0)[:, None, :])   # (B, S, S)
    bias = jnp.where(allowed, 0.0, -1e30).astype(jnp.float32)
    bias = jnp.stack([bias] * N_HEADS, axis=1).reshape(BH, S, S)           # (B*NH, S, S)

    # ---- RoPE tables: (S, D) f32 in, tiled to (BS, H) / (BS, KV) in-kernel (tiny)
    cosq = jnp.tile(cos_ref[...], (B, N_HEADS))                            # (BS, H) f32
    sinq = jnp.tile(sin_ref[...], (B, N_HEADS))
    cosk = cosq[:, :KV_DIM]
    sink = sinq[:, :KV_DIM]
    rot = rot_ref[...]                                                     # (H, H) bf16, 0/±1 exact

    def rms(x_bf, w_row):                                                  # f32 stats, f32 result
        x32 = x_bf.astype(jnp.float32)
        var = jnp.mean(x32 * x32, axis=-1, keepdims=True)
        return x32 * jax.lax.rsqrt(var + RMS_EPS) * w_row.astype(jnp.float32)

    for li in range(N_LAYERS):                                             # unrolled, static slices
        # ---- attention: rmsnorm -> fused QKV (scale pre-folded) -> RoPE -> batched GQA -> Wo
        xn = rms(h, ln1_ref[li]).astype(jnp.bfloat16)                      # (BS, H)
        qkv = (jnp.dot(xn, wqkv_ref[li], preferred_element_type=jnp.float32)
               + bqkv_ref[li].astype(jnp.float32))                         # (BS, 128) f32
        q32 = qkv[:, :H]
        k32 = qkv[:, H:H + KV_DIM]
        v = qkv[:, H + KV_DIM:].astype(jnp.bfloat16)

        # RoPE: rotate_half == x @ R (block-diagonal ±1) done on bf16 operands on the MXU.
        qb = q32.astype(jnp.bfloat16)
        kb = k32.astype(jnp.bfloat16)
        q = (q32 * cosq
             + jnp.dot(qb, rot, preferred_element_type=jnp.float32) * sinq
             ).astype(jnp.bfloat16)                                        # (BS, H)
        k = (k32 * cosk
             + jnp.dot(kb, rot[:KV_DIM, :KV_DIM], preferred_element_type=jnp.float32) * sink
             ).astype(jnp.bfloat16)                                        # (BS, KV)

        # head-major layout (B*NH, S, D); KV heads broadcast by slice duplication (no repeat)
        qh = jnp.stack(
            [q[:, hd * HEAD_DIM:(hd + 1) * HEAD_DIM].reshape(B, S, HEAD_DIM)
             for hd in range(N_HEADS)], axis=1).reshape(BH, S, HEAD_DIM)
        kh = jnp.stack(
            [k[:, (hd // rep) * HEAD_DIM:((hd // rep) + 1) * HEAD_DIM].reshape(B, S, HEAD_DIM)
             for hd in range(N_HEADS)], axis=1).reshape(BH, S, HEAD_DIM)
        vh = jnp.stack(
            [v[:, (hd // rep) * HEAD_DIM:((hd // rep) + 1) * HEAD_DIM].reshape(B, S, HEAD_DIM)
             for hd in range(N_HEADS)], axis=1).reshape(BH, S, HEAD_DIM)

        # ONE batched score einsum + ONE batched ctx einsum per layer
        s = jnp.einsum("bqd,bkd->bqk", qh, kh,
                       preferred_element_type=jnp.float32) + bias          # (BH, S, S)
        s = s - jnp.max(s, axis=-1, keepdims=True)
        p = jnp.exp(s)
        p = p * pl.reciprocal(jnp.sum(p, axis=-1, keepdims=True), approx=True)
        ctx = jnp.einsum("bqk,bkd->bqd", p.astype(jnp.bfloat16), vh,
                         preferred_element_type=jnp.float32)               # (BH, S, D) f32

        # re-assemble heads into lanes and do a SINGLE (BS,64)@(64,64) out-projection
        ctx4 = ctx.reshape(B, N_HEADS, S, HEAD_DIM)
        ctx2 = jnp.concatenate(
            [ctx4[:, hd].reshape(BS, HEAD_DIM) for hd in range(N_HEADS)], axis=1)
        attn_out = jnp.dot(ctx2.astype(jnp.bfloat16), wo_ref[li],
                           preferred_element_type=jnp.float32)             # (BS, H)
        h = (h.astype(jnp.float32) + attn_out).astype(jnp.bfloat16)

        # ---- MLP: rmsnorm -> fused gate/up -> SwiGLU -> down -> residual
        xn = rms(h, ln2_ref[li]).astype(jnp.bfloat16)
        gu = jnp.dot(xn, wgu_ref[li], preferred_element_type=jnp.float32)  # (BS, 2*INTER)
        gg = gu[:, :INTER]
        uu = gu[:, INTER:]
        act = (gg * jax.nn.sigmoid(gg)) * uu
        y = jnp.dot(act.astype(jnp.bfloat16), wd_ref[li],
                    preferred_element_type=jnp.float32)                    # (BS, H)
        h = (h.astype(jnp.float32) + y).astype(jnp.bfloat16)

    # ---- final RMSNorm + last-token pool (index from wrapper) + L2 normalize
    hn = rms(h, lnf_ref[...]).reshape(B, S, H)                             # (B, S, H) f32
    sel = (jax.lax.broadcasted_iota(jnp.int32, (B, S), 1) == idx_ref[...]).astype(jnp.float32)
    pooled = jnp.sum(sel[:, :, None] * hn, axis=1)                         # (B, H) f32
    nrm = jnp.maximum(jnp.sqrt(jnp.sum(pooled * pooled, axis=1, keepdims=True)), 1e-12)
    o_ref[...] = (pooled / nrm).astype(o_ref.dtype)


# --------------------------------- RoPE tables --------------------------------
def rope_table(S):
    inv_freq = 1.0 / (ROPE_THETA ** (jnp.arange(0, HEAD_DIM, 2, dtype=jnp.float32) / HEAD_DIM))
    t = jnp.arange(S, dtype=jnp.float32)
    freqs = jnp.outer(t, inv_freq)                          # (S, D/2)
    emb = jnp.concatenate([freqs, freqs], axis=-1)          # (S, D) — tiny, tiled in-kernel
    return jnp.cos(emb), jnp.sin(emb)


def rotate_half_matrix():
    # per-head matrix R with rotate_half(x) == x @ R, block-diagonal over heads (entries 0/±1
    # are exact in bf16, so the rot matmul runs as a pure bf16 MXU op).
    half = HEAD_DIM // 2
    r = jnp.zeros((HEAD_DIM, HEAD_DIM), jnp.float32)
    r = r.at[half:, :half].set(-jnp.eye(half, dtype=jnp.float32))
    r = r.at[:half, half:].set(jnp.eye(half, dtype=jnp.float32))
    return jax.scipy.linalg.block_diag(*([r] * N_HEADS)).astype(jnp.bfloat16)   # (H, H) bf16


# ------------------------------- parameter init ------------------------------
def init_params(key):
    scale = 1.0 / math.sqrt(HEAD_DIM)

    def nrm(k, shape, s=0.02):
        return s * jax.random.normal(k, shape, dtype=jnp.float32)

    keys = jax.random.split(key, 1 + N_LAYERS)
    embed = nrm(keys[0], (VOCAB, HIDDEN)).astype(jnp.bfloat16)
    lora_scale = LORA_ALPHA / LORA_R
    ln1, wqkv, bqkv, wo, ln2, wgu, wd = [], [], [], [], [], [], []
    for li in range(N_LAYERS):
        lk = jax.random.split(keys[1 + li], 12)
        wq = nrm(lk[0], (HIDDEN, HIDDEN))
        wk = nrm(lk[1], (HIDDEN, KV_DIM))
        wv = nrm(lk[2], (HIDDEN, KV_DIM))
        # LoRA adapters (peft) on q/v merged offline: lora_B is zero-initialized, so delta == 0.
        a_q = 0.01 * jax.random.normal(lk[8], (LORA_R, HIDDEN), dtype=jnp.float32)
        b_q = jnp.zeros((HIDDEN, LORA_R), jnp.float32)
        wq = wq + lora_scale * (b_q @ a_q).T
        a_v = 0.01 * jax.random.normal(lk[9], (LORA_R, HIDDEN), dtype=jnp.float32)
        b_v = jnp.zeros((KV_DIM, LORA_R), jnp.float32)
        wv = wv + lora_scale * (b_v @ a_v).T

        bq = nrm(lk[4], (1, HIDDEN))
        bk = nrm(lk[5], (1, KV_DIM))
        bv = nrm(lk[6], (1, KV_DIM))

        # Fuse QKV into one lane-dense (H, 128) weight; fold the 1/sqrt(HEAD_DIM) softmax scale
        # into the q projection (weights + bias) so the kernel never multiplies by it.
        wqkv.append(jnp.concatenate([wq * scale, wk, wv], axis=1).astype(jnp.bfloat16))
        bqkv.append(jnp.concatenate([bq * scale, bk, bv], axis=1).astype(jnp.bfloat16))
        wo.append(nrm(lk[3], (HIDDEN, HIDDEN)).astype(jnp.bfloat16))
        ln1.append(jnp.ones((1, HIDDEN), jnp.bfloat16))
        ln2.append(jnp.ones((1, HIDDEN), jnp.bfloat16))
        wgu.append(jnp.concatenate([nrm(lk[7], (HIDDEN, INTER)),
                                    nrm(lk[10], (HIDDEN, INTER))], axis=1).astype(jnp.bfloat16))
        wd.append(nrm(lk[11], (INTER, HIDDEN)).astype(jnp.bfloat16))

    return dict(embed=embed,
                ln1=jnp.stack(ln1), wqkv=jnp.stack(wqkv), bqkv=jnp.stack(bqkv), wo=jnp.stack(wo),
                ln2=jnp.stack(ln2), wgu=jnp.stack(wgu), wd=jnp.stack(wd),
                lnf=jnp.ones((1, HIDDEN), jnp.bfloat16))


# ---------------------------------- forward ----------------------------------
@jax.jit
def qwen_embedding_forward(params, input_ids, attention_mask):
    B, S = input_ids.shape
    ids = input_ids.reshape(B * S, 1).astype(jnp.int32)
    mask = attention_mask.astype(jnp.int32)
    cos, sin = rope_table(S)                                               # (S, HEAD_DIM) f32
    rot = rotate_half_matrix()                                             # (H, H) bf16

    # last_token_pool index (incl. torch's left-padding rule and -1 wraparound) computed here as
    # scalar work; the kernel pooling is then a simple select + single store.
    left_padding = jnp.sum(mask[:, -1]) == B
    seq_len = jnp.sum(mask, axis=1) - 1
    seq_len = jnp.where(seq_len < 0, seq_len + S, seq_len)
    idx = jnp.where(left_padding, S - 1, seq_len).astype(jnp.int32).reshape(B, 1)

    # Single fused pallas_call: all weights + activations live in VMEM (<<1 MiB here).
    # TODO(synk): at production B*S, add a row-tiled grid (weights resident via constant
    # index_map), dimension_semantics=("parallel",) for the second v7x TensorCore, and re-derive
    # vmem_limit_bytes — the ungridded all-in-VMEM design is only for toy shapes.
    return pl.pallas_call(
        _qwen_kernel,
        out_shape=jax.ShapeDtypeStruct((B, HIDDEN), jnp.bfloat16),
        in_specs=[_VMEM] * 15,
        out_specs=_VMEM,
        compiler_params=pltpu.CompilerParams(vmem_limit_bytes=16 << 20),
    )(ids, mask, idx, cos, sin, rot, params["embed"],
      params["ln1"], params["wqkv"], params["bqkv"], params["wo"],
      params["ln2"], params["wgu"], params["wd"], params["lnf"])


# ------------------------------------ main ------------------------------------
if __name__ == "__main__":
    key = jax.random.PRNGKey(0)
    pkey, ikey = jax.random.split(key)
    params = init_params(pkey)

    B, S = 2, 8
    input_ids = jax.random.randint(ikey, (B, S), 0, VOCAB, dtype=jnp.int32)
    # right-padded attention mask (lengths 8 and 6) -> exercises the last-token gather branch
    lengths = jnp.array([8, 6], dtype=jnp.int32)
    attention_mask = (jnp.arange(S)[None, :] < lengths[:, None]).astype(jnp.int32)

    emb = qwen_embedding_forward(params, input_ids, attention_mask)
    emb = jax.block_until_ready(emb)

    assert emb.shape == (B, HIDDEN)
    assert emb.dtype == jnp.bfloat16
    norms = jnp.linalg.norm(emb.astype(jnp.float32), axis=1)
    assert bool(jnp.all(jnp.abs(norms - 1.0) < 5e-2)), norms
    print("KERNEL_OK")
</pallas_src>

<mosaic_0001>
module attributes {stable_mosaic.version = 11 : i64} {
  func.func @_qwen_kernel(%arg0: memref<16x1xi32, #tpu.memory_space<vmem>>, %arg1: memref<2x8xi32, #tpu.memory_space<vmem>>, %arg2: memref<2x1xi32, #tpu.memory_space<vmem>>, %arg3: memref<8x16xf32, #tpu.memory_space<vmem>>, %arg4: memref<8x16xf32, #tpu.memory_space<vmem>>, %arg5: memref<64x64xbf16, #tpu.memory_space<vmem>>, %arg6: memref<128x64xbf16, #tpu.memory_space<vmem>>, %arg7: memref<2x1x64xbf16, #tpu.memory_space<vmem>>, %arg8: memref<2x64x128xbf16, #tpu.memory_space<vmem>>, %arg9: memref<2x1x128xbf16, #tpu.memory_space<vmem>>, %arg10: memref<2x64x64xbf16, #tpu.memory_space<vmem>>, %arg11: memref<2x1x64xbf16, #tpu.memory_space<vmem>>, %arg12: memref<2x64x256xbf16, #tpu.memory_space<vmem>>, %arg13: memref<2x128x64xbf16, #tpu.memory_space<vmem>>, %arg14: memref<1x64xbf16, #tpu.memory_space<vmem>>, %arg15: memref<2x64xbf16, #tpu.memory_space<vmem>>) attributes {dimension_semantics = [], scalar_prefetch = 0 : i64, scratch_operands = 0 : i64, tpu.core_type = #tpu.core_type<tc>} {
    %c0 = arith.constant 0 : index
    %c0_0 = arith.constant 0 : index
    %0 = vector.load %arg0[%c0, %c0_0] : memref<16x1xi32, #tpu.memory_space<vmem>>, vector<16x1xi32>
    %1 = tpu.iota {dimensions = array<i32: 1>} : vector<16x128xi32>
    %2 = vector.broadcast %0 : vector<16x1xi32> to vector<16x128xi32>
    %3 = arith.cmpi eq, %1, %2 : vector<16x128xi32>
    %cst = arith.constant 1.000000e+00 : f32
    %cst_1 = arith.constant 0.000000e+00 : f32
    %4 = vector.broadcast %cst : f32 to vector<16x128xf32>
    %5 = vector.broadcast %cst_1 : f32 to vector<16x128xf32>
    %6 = arith.select %3, %4, %5 : vector<16x128xi1>, vector<16x128xf32>
    %7 = arith.truncf %6 : vector<16x128xf32> to vector<16x128xbf16>
    %c0_2 = arith.constant 0 : index
    %c0_3 = arith.constant 0 : index
    %8 = vector.load %arg6[%c0_2, %c0_3] : memref<128x64xbf16, #tpu.memory_space<vmem>>, vector<128x64xbf16>
    %cst_4 = arith.constant dense<0.000000e+00> : vector<16x64xf32>
    %9 = tpu.matmul %7, %8, %cst_4 {dimension_numbers = #tpu.dot_dimension_numbers<[1], [0], [0], [1], [0, 0, 1, 1], [], []>} : vector<16x128xbf16>, vector<128x64xbf16>, vector<16x64xf32> -> vector<16x64xf32>
    %10 = arith.truncf %9 : vector<16x64xf32> to vector<16x64xbf16>
    %c0_5 = arith.constant 0 : index
    %c0_6 = arith.constant 0 : index
    %11 = vector.load %arg1[%c0_5, %c0_6] : memref<2x8xi32, #tpu.memory_space<vmem>>, vector<2x8xi32>
    %12 = tpu.iota {dimensions = array<i32: 0>} : vector<8x8xi32>
    %13 = tpu.iota {dimensions = array<i32: 1>} : vector<8x8xi32>
    %14 = arith.cmpi sge, %12, %13 : vector<8x8xi32>
    %15 = vector.shape_cast %14 : vector<8x8xi1> to vector<1x8x8xi1>
    %c0_i32 = arith.constant 0 : i32
    %16 = vector.broadcast %c0_i32 : i32 to vector<2x8xi32>
    %17 = arith.cmpi sgt, %11, %16 : vector<2x8xi32>
    %18 = vector.shape_cast %17 : vector<2x8xi1> to vector<2x1x8xi1>
    %19 = vector.broadcast %15 : vector<1x8x8xi1> to vector<2x8x8xi1>
    %20 = vector.broadcast %18 : vector<2x1x8xi1> to vector<2x8x8xi1>
    %21 = arith.andi %19, %20 : vector<2x8x8xi1>
    %cst_7 = arith.constant 0.000000e+00 : f32
    %cst_8 = arith.constant -1.000000e+30 : f32
    %22 = vector.broadcast %cst_7 : f32 to vector<2x8x8xf32>
    %23 = vector.broadcast %cst_8 : f32 to vector<2x8x8xf32>
    %24 = arith.select %21, %22, %23 : vector<2x8x8xi1>, vector<2x8x8xf32>
    %25 = vector.shape_cast %24 : vector<2x8x8xf32> to vector<2x1x8x8xf32>
    %26 = vector.shape_cast %24 : vector<2x8x8xf32> to vector<2x1x8x8xf32>
    %27 = vector.shape_cast %24 : vector<2x8x8xf32> to vector<2x1x8x8xf32>
    %28 = vector.shape_cast %24 : vector<2x8x8xf32> to vector<2x1x8x8xf32>
    %29 = tpu.concatenate %25, %26, %27, %28 in 1 : vector<2x1x8x8xf32>, vector<2x1x8x8xf32>, vector<2x1x8x8xf32>, vector<2x1x8x8xf32> -> vector<2x4x8x8xf32>
    %30 = vector.shape_cast %29 : vector<2x4x8x8xf32> to vector<8x8x8xf32>
    %c0_9 = arith.constant 0 : index
    %c0_10 = arith.constant 0 : index
    %31 = vector.load %arg3[%c0_9, %c0_10] : memref<8x16xf32, #tpu.memory_space<vmem>>, vector<8x16xf32>
    %32 = tpu.concatenate %31, %31 in 0 : vector<8x16xf32>, vector<8x16xf32> -> vector<16x16xf32>
    %33 = tpu.concatenate %32, %32, %32, %32 in 1 : vector<16x16xf32>, vector<16x16xf32>, vector<16x16xf32>, vector<16x16xf32> -> vector<16x64xf32>
    %c0_11 = arith.constant 0 : index
    %c0_12 = arith.constant 0 : index
    %34 = vector.load %arg4[%c0_11, %c0_12] : memref<8x16xf32, #tpu.memory_space<vmem>>, vector<8x16xf32>
    %35 = tpu.concatenate %34, %34 in 0 : vector<8x16xf32>, vector<8x16xf32> -> vector<16x16xf32>
    %36 = tpu.concatenate %35, %35, %35, %35 in 1 : vector<16x16xf32>, vector<16x16xf32>, vector<16x16xf32>, vector<16x16xf32> -> vector<16x64xf32>
    %37 = vector.extract_strided_slice %33 {offsets = [0, 0], sizes = [16, 32], strides = [1, 1]} : vector<16x64xf32> to vector<16x32xf32>
    %38 = vector.extract_strided_slice %36 {offsets = [0, 0], sizes = [16, 32], strides = [1, 1]} : vector<16x64xf32> to vector<16x32xf32>
    %c0_13 = arith.constant 0 : index
    %c0_14 = arith.constant 0 : index
    %39 = vector.load %arg5[%c0_13, %c0_14] : memref<64x64xbf16, #tpu.memory_space<vmem>>, vector<64x64xbf16>
    %c0_15 = arith.constant 0 : index
    %c0_16 = arith.constant 0 : index
    %c0_17 = arith.constant 0 : index
    %40 = vector.load %arg7[%c0_15, %c0_16, %c0_17] : memref<2x1x64xbf16, #tpu.memory_space<vmem>>, vector<1x1x64xbf16>
    %41 = vector.shape_cast %40 : vector<1x1x64xbf16> to vector<1x64xbf16>
    %42 = arith.extf %10 : vector<16x64xbf16> to vector<16x64xf32>
    %43 = arith.mulf %42, %42 : vector<16x64xf32>
    %cst_18 = arith.constant dense<0.000000e+00> : vector<16xf32>
    %44 = vector.multi_reduction <add>, %43, %cst_18 [1] : vector<16x64xf32> to vector<16xf32>
    %45 = vector.shape_cast %44 : vector<16xf32> to vector<16x1xf32>
    %cst_19 = arith.constant 6.400000e+01 : f32
    %46 = vector.broadcast %cst_19 : f32 to vector<16x1xf32>
    %47 = arith.divf %45, %46 : vector<16x1xf32>
    %cst_20 = arith.constant 9.99999997E-7 : f32
    %48 = vector.broadcast %cst_20 : f32 to vector<16x1xf32>
    %49 = arith.addf %47, %48 : vector<16x1xf32>
    %50 = math.rsqrt %49 : vector<16x1xf32>
    %51 = vector.broadcast %50 : vector<16x1xf32> to vector<16x64xf32>
    %52 = arith.mulf %42, %51 : vector<16x64xf32>
    %53 = arith.extf %41 : vector<1x64xbf16> to vector<1x64xf32>
    %54 = vector.broadcast %53 : vector<1x64xf32> to vector<16x64xf32>
    %55 = arith.mulf %52, %54 : vector<16x64xf32>
    %56 = arith.truncf %55 : vector<16x64xf32> to vector<16x64xbf16>
    %c0_21 = arith.constant 0 : index
    %c0_22 = arith.constant 0 : index
    %c0_23 = arith.constant 0 : index
    %57 = vector.load %arg8[%c0_21, %c0_22, %c0_23] : memref<2x64x128xbf16, #tpu.memory_space<vmem>>, vector<1x64x128xbf16>
    %58 = vector.shape_cast %57 : vector<1x64x128xbf16> to vector<64x128xbf16>
    %cst_24 = arith.constant dense<0.000000e+00> : vector<16x128xf32>
    %59 = tpu.matmul %56, %58, %cst_24 {dimension_numbers = #tpu.dot_dimension_numbers<[1], [0], [0], [1], [0, 0, 1, 1], [], []>} : vector<16x64xbf16>, vector<64x128xbf16>, vector<16x128xf32> -> vector<16x128xf32>
    %c0_25 = arith.constant 0 : index
    %c0_26 = arith.constant 0 : index
    %c0_27 = arith.constant 0 : index
    %60 = vector.load %arg9[%c0_25, %c0_26, %c0_27] : memref<2x1x128xbf16, #tpu.memory_space<vmem>>, vector<1x1x128xbf16>
    %61 = vector.shape_cast %60 : vector<1x1x128xbf16> to vector<1x128xbf16>
    %62 = arith.extf %61 : vector<1x128xbf16> to vector<1x128xf32>
    %63 = vector.broadcast %62 : vector<1x128xf32> to vector<16x128xf32>
    %64 = arith.addf %59, %63 : vector<16x128xf32>
    %65 = vector.extract_strided_slice %64 {offsets = [0, 0], sizes = [16, 64], strides = [1, 1]} : vector<16x128xf32> to vector<16x64xf32>
    %66 = vector.extract_strided_slice %64 {offsets = [0, 64], sizes = [16, 32], strides = [1, 1]} : vector<16x128xf32> to vector<16x32xf32>
    %67 = vector.extract_strided_slice %64 {offsets = [0, 96], sizes = [16, 32], strides = [1, 1]} : vector<16x128xf32> to vector<16x32xf32>
    %68 = arith.truncf %67 : vector<16x32xf32> to vector<16x32xbf16>
    %69 = arith.truncf %65 : vector<16x64xf32> to vector<16x64xbf16>
    %70 = arith.truncf %66 : vector<16x32xf32> to vector<16x32xbf16>
    %71 = arith.mulf %65, %33 : vector<16x64xf32>
    %cst_28 = arith.constant dense<0.000000e+00> : vector<16x64xf32>
    %72 = tpu.matmul %69, %39, %cst_28 {dimension_numbers = #tpu.dot_dimension_numbers<[1], [0], [0], [1], [0, 0, 1, 1], [], []>} : vector<16x64xbf16>, vector<64x64xbf16>, vector<16x64xf32> -> vector<16x64xf32>
    %73 = arith.mulf %72, %36 : vector<16x64xf32>
    %74 = arith.addf %71, %73 : vector<16x64xf32>
    %75 = arith.truncf %74 : vector<16x64xf32> to vector<16x64xbf16>
    %76 = arith.mulf %66, %37 : vector<16x32xf32>
    %77 = vector.extract_strided_slice %39 {offsets = [0, 0], sizes = [32, 32], strides = [1, 1]} : vector<64x64xbf16> to vector<32x32xbf16>
    %cst_29 = arith.constant dense<0.000000e+00> : vector<16x32xf32>
    %78 = tpu.matmul %70, %77, %cst_29 {dimension_numbers = #tpu.dot_dimension_numbers<[1], [0], [0], [1], [0, 0, 1, 1], [], []>} : vector<16x32xbf16>, vector<32x32xbf16>, vector<16x32xf32> -> vector<16x32xf32>
    %79 = arith.mulf %78, %38 : vector<16x32xf32>
    %80 = arith.addf %76, %79 : vector<16x32xf32>
    %81 = arith.truncf %80 : vector<16x32xf32> to vector<16x32xbf16>
    %82 = vector.extract_strided_slice %75 {offsets = [0, 0], sizes = [16, 16], strides = [1, 1]} : vector<16x64xbf16> to vector<16x16xbf16>
    %83 = vector.shape_cast %82 : vector<16x16xbf16> to vector<2x8x16xbf16>
    %84 = vector.extract_strided_slice %75 {offsets = [0, 16], sizes = [16, 16], strides = [1, 1]} : vector<16x64xbf16> to vector<16x16xbf16>
    %85 = vector.shape_cast %84 : vector<16x16xbf16> to vector<2x8x16xbf16>
    %86 = vector.extract_strided_slice %75 {offsets = [0, 32], sizes = [16, 16], strides = [1, 1]} : vector<16x64xbf16> to vector<16x16xbf16>
    %87 = vector.shape_cast %86 : vector<16x16xbf16> to vector<2x8x16xbf16>
    %88 = vector.extract_strided_slice %75 {offsets = [0, 48], sizes = [16, 16], strides = [1, 1]} : vector<16x64xbf16> to vector<16x16xbf16>
    %89 = vector.shape_cast %88 : vector<16x16xbf16> to vector<2x8x16xbf16>
    %90 = vector.shape_cast %83 : vector<2x8x16xbf16> to vector<2x1x8x16xbf16>
    %91 = vector.shape_cast %85 : vector<2x8x16xbf16> to vector<2x1x8x16xbf16>
    %92 = vector.shape_cast %87 : vector<2x8x16xbf16> to vector<2x1x8x16xbf16>
    %93 = vector.shape_cast %89 : vector<2x8x16xbf16> to vector<2x1x8x16xbf16>
    %94 = tpu.concatenate %90, %91, %92, %93 in 1 : vector<2x1x8x16xbf16>, vector<2x1x8x16xbf16>, vector<2x1x8x16xbf16>, vector<2x1x8x16xbf16> -> vector<2x4x8x16xbf16>
    %95 = vector.shape_cast %94 : vector<2x4x8x16xbf16> to vector<8x8x16xbf16>
    %96 = vector.extract_strided_slice %81 {offsets = [0, 0], sizes = [16, 16], strides = [1, 1]} : vector<16x32xbf16> to vector<16x16xbf16>
    %97 = vector.shape_cast %96 : vector<16x16xbf16> to vector<2x8x16xbf16>
    %98 = vector.extract_strided_slice %81 {offsets = [0, 0], sizes = [16, 16], strides = [1, 1]} : vector<16x32xbf16> to vector<16x16xbf16>
    %99 = vector.shape_cast %98 : vector<16x16xbf16> to vector<2x8x16xbf16>
    %100 = vector.extract_strided_slice %81 {offsets = [0, 16], sizes = [16, 16], strides = [1, 1]} : vector<16x32xbf16> to vector<16x16xbf16>
    %101 = vector.shape_cast %100 : vector<16x16xbf16> to vector<2x8x16xbf16>
    %102 = vector.extract_strided_slice %81 {offsets = [0, 16], sizes = [16, 16], strides = [1, 1]} : vector<16x32xbf16> to vector<16x16xbf16>
    %103 = vector.shape_cast %102 : vector<16x16xbf16> to vector<2x8x16xbf16>
    %104 = vector.shape_cast %97 : vector<2x8x16xbf16> to vector<2x1x8x16xbf16>
    %105 = vector.shape_cast %99 : vector<2x8x16xbf16> to vector<2x1x8x16xbf16>
    %106 = vector.shape_cast %101 : vector<2x8x16xbf16> to vector<2x1x8x16xbf16>
    %107 = vector.shape_cast %103 : vector<2x8x16xbf16> to vector<2x1x8x16xbf16>
    %108 = tpu.concatenate %104, %105, %106, %107 in 1 : vector<2x1x8x16xbf16>, vector<2x1x8x16xbf16>, vector<2x1x8x16xbf16>, vector<2x1x8x16xbf16> -> vector<2x4x8x16xbf16>
    %109 = vector.shape_cast %108 : vector<2x4x8x16xbf16> to vector<8x8x16xbf16>
    %110 = vector.extract_strided_slice %68 {offsets = [0, 0], sizes = [16, 16], strides = [1, 1]} : vector<16x32xbf16> to vector<16x16xbf16>
    %111 = vector.shape_cast %110 : vector<16x16xbf16> to vector<2x8x16xbf16>
    %112 = vector.extract_strided_slice %68 {offsets = [0, 0], sizes = [16, 16], strides = [1, 1]} : vector<16x32xbf16> to vector<16x16xbf16>
    %113 = vector.shape_cast %112 : vector<16x16xbf16> to vector<2x8x16xbf16>
    %114 = vector.extract_strided_slice %68 {offsets = [0, 16], sizes = [16, 16], strides = [1, 1]} : vector<16x32xbf16> to vector<16x16xbf16>
    %115 = vector.shape_cast %114 : vector<16x16xbf16> to vector<2x8x16xbf16>
    %116 = vector.extract_strided_slice %68 {offsets = [0, 16], sizes = [16, 16], strides = [1, 1]} : vector<16x32xbf16> to vector<16x16xbf16>
    %117 = vector.shape_cast %116 : vector<16x16xbf16> to vector<2x8x16xbf16>
    %118 = vector.shape_cast %111 : vector<2x8x16xbf16> to vector<2x1x8x16xbf16>
    %119 = vector.shape_cast %113 : vector<2x8x16xbf16> to vector<2x1x8x16xbf16>
    %120 = vector.shape_cast %115 : vector<2x8x16xbf16> to vector<2x1x8x16xbf16>
    %121 = vector.shape_cast %117 : vector<2x8x16xbf16> to vector<2x1x8x16xbf16>
    %122 = tpu.concatenate %118, %119, %120, %121 in 1 : vector<2x1x8x16xbf16>, vector<2x1x8x16xbf16>, vector<2x1x8x16xbf16>, vector<2x1x8x16xbf16> -> vector<2x4x8x16xbf16>
    %123 = vector.shape_cast %122 : vector<2x4x8x16xbf16> to vector<8x8x16xbf16>
    "tpu.trace_start"() <{level = 10 : i32, message = "bqd,bkd->bqk"}> : () -> ()
    %cst_30 = arith.constant dense<0.000000e+00> : vector<8x8x8xf32>
    %124 = tpu.matmul %95, %109, %cst_30 {dimension_numbers = #tpu.dot_dimension_numbers<[2], [2], [1], [1], [0, 0, 0, 1, 1, 1], [0], [0]>} : vector<8x8x16xbf16>, vector<8x8x16xbf16>, vector<8x8x8xf32> -> vector<8x8x8xf32>
    "tpu.trace_stop"() : () -> ()
    %125 = arith.addf %124, %30 : vector<8x8x8xf32>
    %cst_31 = arith.constant dense<0xFF800000> : vector<8x8xf32>
    %126 = vector.multi_reduction <maximumf>, %125, %cst_31 [2] : vector<8x8x8xf32> to vector<8x8xf32>
    %127 = vector.shape_cast %126 : vector<8x8xf32> to vector<8x8x1xf32>
    %128 = vector.broadcast %127 : vector<8x8x1xf32> to vector<8x8x8xf32>
    %129 = arith.subf %125, %128 : vector<8x8x8xf32>
    %130 = math.exp %129 : vector<8x8x8xf32>
    %cst_32 = arith.constant dense<0.000000e+00> : vector<8x8xf32>
    %131 = vector.multi_reduction <add>, %130, %cst_32 [2] : vector<8x8x8xf32> to vector<8x8xf32>
    %132 = vector.shape_cast %131 : vector<8x8xf32> to vector<8x8x1xf32>
    %133 = tpu.reciprocal %132 {approx = true} : vector<8x8x1xf32> -> vector<8x8x1xf32>
    %134 = vector.broadcast %133 : vector<8x8x1xf32> to vector<8x8x8xf32>
    %135 = arith.mulf %130, %134 : vector<8x8x8xf32>
    %136 = arith.truncf %135 : vector<8x8x8xf32> to vector<8x8x8xbf16>
    "tpu.trace_start"() <{level = 10 : i32, message = "bqk,bkd->bqd"}> : () -> ()
    %cst_33 = arith.constant dense<0.000000e+00> : vector<8x8x16xf32>
    %137 = tpu.matmul %136, %123, %cst_33 {dimension_numbers = #tpu.dot_dimension_numbers<[2], [1], [1], [2], [0, 0, 0, 1, 1, 2], [0], [0]>} : vector<8x8x8xbf16>, vector<8x8x16xbf16>, vector<8x8x16xf32> -> vector<8x8x16xf32>
    "tpu.trace_stop"() : () -> ()
    %138 = vector.shape_cast %137 : vector<8x8x16xf32> to vector<2x4x8x16xf32>
    %139 = vector.extract_strided_slice %138 {offsets = [0, 0, 0, 0], sizes = [2, 1, 8, 16], strides = [1, 1, 1, 1]} : vector<2x4x8x16xf32> to vector<2x1x8x16xf32>
    %140 = vector.shape_cast %139 : vector<2x1x8x16xf32> to vector<2x8x16xf32>
    %141 = vector.shape_cast %140 : vector<2x8x16xf32> to vector<16x16xf32>
    %142 = vector.extract_strided_slice %138 {offsets = [0, 1, 0, 0], sizes = [2, 1, 8, 16], strides = [1, 1, 1, 1]} : vector<2x4x8x16xf32> to vector<2x1x8x16xf32>
    %143 = vector.shape_cast %142 : vector<2x1x8x16xf32> to vector<2x8x16xf32>
    %144 = vector.shape_cast %143 : vector<2x8x16xf32> to vector<16x16xf32>
    %145 = vector.extract_strided_slice %138 {offsets = [0, 2, 0, 0], sizes = [2, 1, 8, 16], strides = [1, 1, 1, 1]} : vector<2x4x8x16xf32> to vector<2x1x8x16xf32>
    %146 = vector.shape_cast %145 : vector<2x1x8x16xf32> to vector<2x8x16xf32>
    %147 = vector.shape_cast %146 : vector<2x8x16xf32> to vector<16x16xf32>
    %148 = vector.extract_strided_slice %138 {offsets = [0, 3, 0, 0], sizes = [2, 1, 8, 16], strides = [1, 1, 1, 1]} : vector<2x4x8x16xf32> to vector<2x1x8x16xf32>
    %149 = vector.shape_cast %148 : vector<2x1x8x16xf32> to vector<2x8x16xf32>
    %150 = vector.shape_cast %149 : vector<2x8x16xf32> to vector<16x16xf32>
    %151 = tpu.concatenate %141, %144, %147, %150 in 1 : vector<16x16xf32>, vector<16x16xf32>, vector<16x16xf32>, vector<16x16xf32> -> vector<16x64xf32>
    %152 = arith.truncf %151 : vector<16x64xf32> to vector<16x64xbf16>
    %c0_34 = arith.constant 0 : index
    %c0_35 = arith.constant 0 : index
    %c0_36 = arith.constant 0 : index
    %153 = vector.load %arg10[%c0_34, %c0_35, %c0_36] : memref<2x64x64xbf16, #tpu.memory_space<vmem>>, vector<1x64x64xbf16>
    %154 = vector.shape_cast %153 : vector<1x64x64xbf16> to vector<64x64xbf16>
    %cst_37 = arith.constant dense<0.000000e+00> : vector<16x64xf32>
    %155 = tpu.matmul %152, %154, %cst_37 {dimension_numbers = #tpu.dot_dimension_numbers<[1], [0], [0], [1], [0, 0, 1, 1], [], []>} : vector<16x64xbf16>, vector<64x64xbf16>, vector<16x64xf32> -> vector<16x64xf32>
    %156 = arith.extf %10 : vector<16x64xbf16> to vector<16x64xf32>
    %157 = arith.addf %156, %155 : vector<16x64xf32>
    %158 = arith.truncf %157 : vector<16x64xf32> to vector<16x64xbf16>
    %c0_38 = arith.constant 0 : index
    %c0_39 = arith.constant 0 : index
    %c0_40 = arith.constant 0 : index
    %159 = vector.load %arg11[%c0_38, %c0_39, %c0_40] : memref<2x1x64xbf16, #tpu.memory_space<vmem>>, vector<1x1x64xbf16>
    %160 = vector.shape_cast %159 : vector<1x1x64xbf16> to vector<1x64xbf16>
    %161 = arith.extf %158 : vector<16x64xbf16> to vector<16x64xf32>
    %162 = arith.mulf %161, %161 : vector<16x64xf32>
    %cst_41 = arith.constant dense<0.000000e+00> : vector<16xf32>
    %163 = vector.multi_reduction <add>, %162, %cst_41 [1] : vector<16x64xf32> to vector<16xf32>
    %164 = vector.shape_cast %163 : vector<16xf32> to vector<16x1xf32>
    %cst_42 = arith.constant 6.400000e+01 : f32
    %165 = vector.broadcast %cst_42 : f32 to vector<16x1xf32>
    %166 = arith.divf %164, %165 : vector<16x1xf32>
    %cst_43 = arith.constant 9.99999997E-7 : f32
    %167 = vector.broadcast %cst_43 : f32 to vector<16x1xf32>
    %168 = arith.addf %166, %167 : vector<16x1xf32>
    %169 = math.rsqrt %168 : vector<16x1xf32>
    %170 = vector.broadcast %169 : vector<16x1xf32> to vector<16x64xf32>
    %171 = arith.mulf %161, %170 : vector<16x64xf32>
    %172 = arith.extf %160 : vector<1x64xbf16> to vector<1x64xf32>
    %173 = vector.broadcast %172 : vector<1x64xf32> to vector<16x64xf32>
    %174 = arith.mulf %171, %173 : vector<16x64xf32>
    %175 = arith.truncf %174 : vector<16x64xf32> to vector<16x64xbf16>
    %c0_44 = arith.constant 0 : index
    %c0_45 = arith.constant 0 : index
    %c0_46 = arith.constant 0 : index
    %176 = vector.load %arg12[%c0_44, %c0_45, %c0_46] : memref<2x64x256xbf16, #tpu.memory_space<vmem>>, vector<1x64x256xbf16>
    %177 = vector.shape_cast %176 : vector<1x64x256xbf16> to vector<64x256xbf16>
    %cst_47 = arith.constant dense<0.000000e+00> : vector<16x256xf32>
    %178 = tpu.matmul %175, %177, %cst_47 {dimension_numbers = #tpu.dot_dimension_numbers<[1], [0], [0], [1], [0, 0, 1, 1], [], []>} : vector<16x64xbf16>, vector<64x256xbf16>, vector<16x256xf32> -> vector<16x256xf32>
    %179 = vector.extract_strided_slice %178 {offsets = [0, 0], sizes = [16, 128], strides = [1, 1]} : vector<16x256xf32> to vector<16x128xf32>
    %180 = vector.extract_strided_slice %178 {offsets = [0, 128], sizes = [16, 128], strides = [1, 1]} : vector<16x256xf32> to vector<16x128xf32>
    %181 = arith.negf %179 : vector<16x128xf32>
    %182 = math.exp %181 : vector<16x128xf32>
    %cst_48 = arith.constant 1.000000e+00 : f32
    %183 = vector.broadcast %cst_48 : f32 to vector<16x128xf32>
    %184 = arith.addf %183, %182 : vector<16x128xf32>
    %185 = arith.divf %183, %184 : vector<16x128xf32>
    %186 = arith.mulf %179, %185 : vector<16x128xf32>
    %187 = arith.mulf %186, %180 : vector<16x128xf32>
    %188 = arith.truncf %187 : vector<16x128xf32> to vector<16x128xbf16>
    %c0_49 = arith.constant 0 : index
    %c0_50 = arith.constant 0 : index
    %c0_51 = arith.constant 0 : index
    %189 = vector.load %arg13[%c0_49, %c0_50, %c0_51] : memref<2x128x64xbf16, #tpu.memory_space<vmem>>, vector<1x128x64xbf16>
    %190 = vector.shape_cast %189 : vector<1x128x64xbf16> to vector<128x64xbf16>
    %cst_52 = arith.constant dense<0.000000e+00> : vector<16x64xf32>
    %191 = tpu.matmul %188, %190, %cst_52 {dimension_numbers = #tpu.dot_dimension_numbers<[1], [0], [0], [1], [0, 0, 1, 1], [], []>} : vector<16x128xbf16>, vector<128x64xbf16>, vector<16x64xf32> -> vector<16x64xf32>
    %192 = arith.extf %158 : vector<16x64xbf16> to vector<16x64xf32>
    %193 = arith.addf %192, %191 : vector<16x64xf32>
    %194 = arith.truncf %193 : vector<16x64xf32> to vector<16x64xbf16>
    %c1 = arith.constant 1 : index
    %c0_53 = arith.constant 0 : index
    %c0_54 = arith.constant 0 : index
    %195 = vector.load %arg7[%c1, %c0_53, %c0_54] : memref<2x1x64xbf16, #tpu.memory_space<vmem>>, vector<1x1x64xbf16>
    %196 = vector.shape_cast %195 : vector<1x1x64xbf16> to vector<1x64xbf16>
    %197 = arith.extf %194 : vector<16x64xbf16> to vector<16x64xf32>
    %198 = arith.mulf %197, %197 : vector<16x64xf32>
    %cst_55 = arith.constant dense<0.000000e+00> : vector<16xf32>
    %199 = vector.multi_reduction <add>, %198, %cst_55 [1] : vector<16x64xf32> to vector<16xf32>
    %200 = vector.shape_cast %199 : vector<16xf32> to vector<16x1xf32>
    %cst_56 = arith.constant 6.400000e+01 : f32
    %201 = vector.broadcast %cst_56 : f32 to vector<16x1xf32>
    %202 = arith.divf %200, %201 : vector<16x1xf32>
    %cst_57 = arith.constant 9.99999997E-7 : f32
    %203 = vector.broadcast %cst_57 : f32 to vector<16x1xf32>
    %204 = arith.addf %202, %203 : vector<16x1xf32>
    %205 = math.rsqrt %204 : vector<16x1xf32>
    %206 = vector.broadcast %205 : vector<16x1xf32> to vector<16x64xf32>
    %207 = arith.mulf %197, %206 : vector<16x64xf32>
    %208 = arith.extf %196 : vector<1x64xbf16> to vector<1x64xf32>
    %209 = vector.broadcast %208 : vector<1x64xf32> to vector<16x64xf32>
    %210 = arith.mulf %207, %209 : vector<16x64xf32>
    %211 = arith.truncf %210 : vector<16x64xf32> to vector<16x64xbf16>
    %c1_58 = arith.constant 1 : index
    %c0_59 = arith.constant 0 : index
    %c0_60 = arith.constant 0 : index
    %212 = vector.load %arg8[%c1_58, %c0_59, %c0_60] : memref<2x64x128xbf16, #tpu.memory_space<vmem>>, vector<1x64x128xbf16>
    %213 = vector.shape_cast %212 : vector<1x64x128xbf16> to vector<64x128xbf16>
    %cst_61 = arith.constant dense<0.000000e+00> : vector<16x128xf32>
    %214 = tpu.matmul %211, %213, %cst_61 {dimension_numbers = #tpu.dot_dimension_numbers<[1], [0], [0], [1], [0, 0, 1, 1], [], []>} : vector<16x64xbf16>, vector<64x128xbf16>, vector<16x128xf32> -> vector<16x128xf32>
    %c1_62 = arith.constant 1 : index
    %c0_63 = arith.constant 0 : index
    %c0_64 = arith.constant 0 : index
    %215 = vector.load %arg9[%c1_62, %c0_63, %c0_64] : memref<2x1x128xbf16, #tpu.memory_space<vmem>>, vector<1x1x128xbf16>
    %216 = vector.shape_cast %215 : vector<1x1x128xbf16> to vector<1x128xbf16>
    %217 = arith.extf %216 : vector<1x128xbf16> to vector<1x128xf32>
    %218 = vector.broadcast %217 : vector<1x128xf32> to vector<16x128xf32>
    %219 = arith.addf %214, %218 : vector<16x128xf32>
    %220 = vector.extract_strided_slice %219 {offsets = [0, 0], sizes = [16, 64], strides = [1, 1]} : vector<16x128xf32> to vector<16x64xf32>
    %221 = vector.extract_strided_slice %219 {offsets = [0, 64], sizes = [16, 32], strides = [1, 1]} : vector<16x128xf32> to vector<16x32xf32>
    %222 = vector.extract_strided_slice %219 {offsets = [0, 96], sizes = [16, 32], strides = [1, 1]} : vector<16x128xf32> to vector<16x32xf32>
    %223 = arith.truncf %222 : vector<16x32xf32> to vector<16x32xbf16>
    %224 = arith.truncf %220 : vector<16x64xf32> to vector<16x64xbf16>
    %225 = arith.truncf %221 : vector<16x32xf32> to vector<16x32xbf16>
    %226 = arith.mulf %220, %33 : vector<16x64xf32>
    %cst_65 = arith.constant dense<0.000000e+00> : vector<16x64xf32>
    %227 = tpu.matmul %224, %39, %cst_65 {dimension_numbers = #tpu.dot_dimension_numbers<[1], [0], [0], [1], [0, 0, 1, 1], [], []>} : vector<16x64xbf16>, vector<64x64xbf16>, vector<16x64xf32> -> vector<16x64xf32>
    %228 = arith.mulf %227, %36 : vector<16x64xf32>
    %229 = arith.addf %226, %228 : vector<16x64xf32>
    %230 = arith.truncf %229 : vector<16x64xf32> to vector<16x64xbf16>
    %231 = arith.mulf %221, %37 : vector<16x32xf32>
    %232 = vector.extract_strided_slice %39 {offsets = [0, 0], sizes = [32, 32], strides = [1, 1]} : vector<64x64xbf16> to vector<32x32xbf16>
    %cst_66 = arith.constant dense<0.000000e+00> : vector<16x32xf32>
    %233 = tpu.matmul %225, %232, %cst_66 {dimension_numbers = #tpu.dot_dimension_numbers<[1], [0], [0], [1], [0, 0, 1, 1], [], []>} : vector<16x32xbf16>, vector<32x32xbf16>, vector<16x32xf32> -> vector<16x32xf32>
    %234 = arith.mulf %233, %38 : vector<16x32xf32>
    %235 = arith.addf %231, %234 : vector<16x32xf32>
    %236 = arith.truncf %235 : vector<16x32xf32> to vector<16x32xbf16>
    %237 = vector.extract_strided_slice %230 {offsets = [0, 0], sizes = [16, 16], strides = [1, 1]} : vector<16x64xbf16> to vector<16x16xbf16>
    %238 = vector.shape_cast %237 : vector<16x16xbf16> to vector<2x8x16xbf16>
    %239 = vector.extract_strided_slice %230 {offsets = [0, 16], sizes = [16, 16], strides = [1, 1]} : vector<16x64xbf16> to vector<16x16xbf16>
    %240 = vector.shape_cast %239 : vector<16x16xbf16> to vector<2x8x16xbf16>
    %241 = vector.extract_strided_slice %230 {offsets = [0, 32], sizes = [16, 16], strides = [1, 1]} : vector<16x64xbf16> to vector<16x16xbf16>
    %242 = vector.shape_cast %241 : vector<16x16xbf16> to vector<2x8x16xbf16>
    %243 = vector.extract_strided_slice %230 {offsets = [0, 48], sizes = [16, 16], strides = [1, 1]} : vector<16x64xbf16> to vector<16x16xbf16>
    %244 = vector.shape_cast %243 : vector<16x16xbf16> to vector<2x8x16xbf16>
    %245 = vector.shape_cast %238 : vector<2x8x16xbf16> to vector<2x1x8x16xbf16>
    %246 = vector.shape_cast %240 : vector<2x8x16xbf16> to vector<2x1x8x16xbf16>
    %247 = vector.shape_cast %242 : vector<2x8x16xbf16> to vector<2x1x8x16xbf16>
    %248 = vector.shape_cast %244 : vector<2x8x16xbf16> to vector<2x1x8x16xbf16>
    %249 = tpu.concatenate %245, %246, %247, %248 in 1 : vector<2x1x8x16xbf16>, vector<2x1x8x16xbf16>, vector<2x1x8x16xbf16>, vector<2x1x8x16xbf16> -> vector<2x4x8x16xbf16>
    %250 = vector.shape_cast %249 : vector<2x4x8x16xbf16> to vector<8x8x16xbf16>
    %251 = vector.extract_strided_slice %236 {offsets = [0, 0], sizes = [16, 16], strides = [1, 1]} : vector<16x32xbf16> to vector<16x16xbf16>
    %252 = vector.shape_cast %251 : vector<16x16xbf16> to vector<2x8x16xbf16>
    %253 = vector.extract_strided_slice %236 {offsets = [0, 0], sizes = [16, 16], strides = [1, 1]} : vector<16x32xbf16> to vector<16x16xbf16>
    %254 = vector.shape_cast %253 : vector<16x16xbf16> to vector<2x8x16xbf16>
    %255 = vector.extract_strided_slice %236 {offsets = [0, 16], sizes = [16, 16], strides = [1, 1]} : vector<16x32xbf16> to vector<16x16xbf16>
    %256 = vector.shape_cast %255 : vector<16x16xbf16> to vector<2x8x16xbf16>
    %257 = vector.extract_strided_slice %236 {offsets = [0, 16], sizes = [16, 16], strides = [1, 1]} : vector<16x32xbf16> to vector<16x16xbf16>
    %258 = vector.shape_cast %257 : vector<16x16xbf16> to vector<2x8x16xbf16>
    %259 = vector.shape_cast %252 : vector<2x8x16xbf16> to vector<2x1x8x16xbf16>
    %260 = vector.shape_cast %254 : vector<2x8x16xbf16> to vector<2x1x8x16xbf16>
    %261 = vector.shape_cast %256 : vector<2x8x16xbf16> to vector<2x1x8x16xbf16>
    %262 = vector.shape_cast %258 : vector<2x8x16xbf16> to vector<2x1x8x16xbf16>
    %263 = tpu.concatenate %259, %260, %261, %262 in 1 : vector<2x1x8x16xbf16>, vector<2x1x8x16xbf16>, vector<2x1x8x16xbf16>, vector<2x1x8x16xbf16> -> vector<2x4x8x16xbf16>
    %264 = vector.shape_cast %263 : vector<2x4x8x16xbf16> to vector<8x8x16xbf16>
    %265 = vector.extract_strided_slice %223 {offsets = [0, 0], sizes = [16, 16], strides = [1, 1]} : vector<16x32xbf16> to vector<16x16xbf16>
    %266 = vector.shape_cast %265 : vector<16x16xbf16> to vector<2x8x16xbf16>
    %267 = vector.extract_strided_slice %223 {offsets = [0, 0], sizes = [16, 16], strides = [1, 1]} : vector<16x32xbf16> to vector<16x16xbf16>
    %268 = vector.shape_cast %267 : vector<16x16xbf16> to vector<2x8x16xbf16>
    %269 = vector.extract_strided_slice %223 {offsets = [0, 16], sizes = [16, 16], strides = [1, 1]} : vector<16x32xbf16> to vector<16x16xbf16>
    %270 = vector.shape_cast %269 : vector<16x16xbf16> to vector<2x8x16xbf16>
    %271 = vector.extract_strided_slice %223 {offsets = [0, 16], sizes = [16, 16], strides = [1, 1]} : vector<16x32xbf16> to vector<16x16xbf16>
    %272 = vector.shape_cast %271 : vector<16x16xbf16> to vector<2x8x16xbf16>
    %273 = vector.shape_cast %266 : vector<2x8x16xbf16> to vector<2x1x8x16xbf16>
    %274 = vector.shape_cast %268 : vector<2x8x16xbf16> to vector<2x1x8x16xbf16>
    %275 = vector.shape_cast %270 : vector<2x8x16xbf16> to vector<2x1x8x16xbf16>
    %276 = vector.shape_cast %272 : vector<2x8x16xbf16> to vector<2x1x8x16xbf16>
    %277 = tpu.concatenate %273, %274, %275, %276 in 1 : vector<2x1x8x16xbf16>, vector<2x1x8x16xbf16>, vector<2x1x8x16xbf16>, vector<2x1x8x16xbf16> -> vector<2x4x8x16xbf16>
    %278 = vector.shape_cast %277 : vector<2x4x8x16xbf16> to vector<8x8x16xbf16>
    "tpu.trace_start"() <{level = 10 : i32, message = "bqd,bkd->bqk"}> : () -> ()
    %cst_67 = arith.constant dense<0.000000e+00> : vector<8x8x8xf32>
    %279 = tpu.matmul %250, %264, %cst_67 {dimension_numbers = #tpu.dot_dimension_numbers<[2], [2], [1], [1], [0, 0, 0, 1, 1, 1], [0], [0]>} : vector<8x8x16xbf16>, vector<8x8x16xbf16>, vector<8x8x8xf32> -> vector<8x8x8xf32>
    "tpu.trace_stop"() : () -> ()
    %280 = arith.addf %279, %30 : vector<8x8x8xf32>
    %cst_68 = arith.constant dense<0xFF800000> : vector<8x8xf32>
    %281 = vector.multi_reduction <maximumf>, %280, %cst_68 [2] : vector<8x8x8xf32> to vector<8x8xf32>
    %282 = vector.shape_cast %281 : vector<8x8xf32> to vector<8x8x1xf32>
    %283 = vector.broadcast %282 : vector<8x8x1xf32> to vector<8x8x8xf32>
    %284 = arith.subf %280, %283 : vector<8x8x8xf32>
    %285 = math.exp %284 : vector<8x8x8xf32>
    %cst_69 = arith.constant dense<0.000000e+00> : vector<8x8xf32>
    %286 = vector.multi_reduction <add>, %285, %cst_69 [2] : vector<8x8x8xf32> to vector<8x8xf32>
    %287 = vector.shape_cast %286 : vector<8x8xf32> to vector<8x8x1xf32>
    %288 = tpu.reciprocal %287 {approx = true} : vector<8x8x1xf32> -> vector<8x8x1xf32>
    %289 = vector.broadcast %288 : vector<8x8x1xf32> to vector<8x8x8xf32>
    %290 = arith.mulf %285, %289 : vector<8x8x8xf32>
    %291 = arith.truncf %290 : vector<8x8x8xf32> to vector<8x8x8xbf16>
    "tpu.trace_start"() <{level = 10 : i32, message = "bqk,bkd->bqd"}> : () -> ()
    %cst_70 = arith.constant dense<0.000000e+00> : vector<8x8x16xf32>
    %292 = tpu.matmul %291, %278, %cst_70 {dimension_numbers = #tpu.dot_dimension_numbers<[2], [1], [1], [2], [0, 0, 0, 1, 1, 2], [0], [0]>} : vector<8x8x8xbf16>, vector<8x8x16xbf16>, vector<8x8x16xf32> -> vector<8x8x16xf32>
    "tpu.trace_stop"() : () -> ()
    %293 = vector.shape_cast %292 : vector<8x8x16xf32> to vector<2x4x8x16xf32>
    %294 = vector.extract_strided_slice %293 {offsets = [0, 0, 0, 0], sizes = [2, 1, 8, 16], strides = [1, 1, 1, 1]} : vector<2x4x8x16xf32> to vector<2x1x8x16xf32>
    %295 = vector.shape_cast %294 : vector<2x1x8x16xf32> to vector<2x8x16xf32>
    %296 = vector.shape_cast %295 : vector<2x8x16xf32> to vector<16x16xf32>
    %297 = vector.extract_strided_slice %293 {offsets = [0, 1, 0, 0], sizes = [2, 1, 8, 16], strides = [1, 1, 1, 1]} : vector<2x4x8x16xf32> to vector<2x1x8x16xf32>
    %298 = vector.shape_cast %297 : vector<2x1x8x16xf32> to vector<2x8x16xf32>
    %299 = vector.shape_cast %298 : vector<2x8x16xf32> to vector<16x16xf32>
    %300 = vector.extract_strided_slice %293 {offsets = [0, 2, 0, 0], sizes = [2, 1, 8, 16], strides = [1, 1, 1, 1]} : vector<2x4x8x16xf32> to vector<2x1x8x16xf32>
    %301 = vector.shape_cast %300 : vector<2x1x8x16xf32> to vector<2x8x16xf32>
    %302 = vector.shape_cast %301 : vector<2x8x16xf32> to vector<16x16xf32>
    %303 = vector.extract_strided_slice %293 {offsets = [0, 3, 0, 0], sizes = [2, 1, 8, 16], strides = [1, 1, 1, 1]} : vector<2x4x8x16xf32> to vector<2x1x8x16xf32>
    %304 = vector.shape_cast %303 : vector<2x1x8x16xf32> to vector<2x8x16xf32>
    %305 = vector.shape_cast %304 : vector<2x8x16xf32> to vector<16x16xf32>
    %306 = tpu.concatenate %296, %299, %302, %305 in 1 : vector<16x16xf32>, vector<16x16xf32>, vector<16x16xf32>, vector<16x16xf32> -> vector<16x64xf32>
    %307 = arith.truncf %306 : vector<16x64xf32> to vector<16x64xbf16>
    %c1_71 = arith.constant 1 : index
    %c0_72 = arith.constant 0 : index
    %c0_73 = arith.constant 0 : index
    %308 = vector.load %arg10[%c1_71, %c0_72, %c0_73] : memref<2x64x64xbf16, #tpu.memory_space<vmem>>, vector<1x64x64xbf16>
    %309 = vector.shape_cast %308 : vector<1x64x64xbf16> to vector<64x64xbf16>
    %cst_74 = arith.constant dense<0.000000e+00> : vector<16x64xf32>
    %310 = tpu.matmul %307, %309, %cst_74 {dimension_numbers = #tpu.dot_dimension_numbers<[1], [0], [0], [1], [0, 0, 1, 1], [], []>} : vector<16x64xbf16>, vector<64x64xbf16>, vector<16x64xf32> -> vector<16x64xf32>
    %311 = arith.extf %194 : vector<16x64xbf16> to vector<16x64xf32>
    %312 = arith.addf %311, %310 : vector<16x64xf32>
    %313 = arith.truncf %312 : vector<16x64xf32> to vector<16x64xbf16>
    %c1_75 = arith.constant 1 : index
    %c0_76 = arith.constant 0 : index
    %c0_77 = arith.constant 0 : index
    %314 = vector.load %arg11[%c1_75, %c0_76, %c0_77] : memref<2x1x64xbf16, #tpu.memory_space<vmem>>, vector<1x1x64xbf16>
    %315 = vector.shape_cast %314 : vector<1x1x64xbf16> to vector<1x64xbf16>
    %316 = arith.extf %313 : vector<16x64xbf16> to vector<16x64xf32>
    %317 = arith.mulf %316, %316 : vector<16x64xf32>
    %cst_78 = arith.constant dense<0.000000e+00> : vector<16xf32>
    %318 = vector.multi_reduction <add>, %317, %cst_78 [1] : vector<16x64xf32> to vector<16xf32>
    %319 = vector.shape_cast %318 : vector<16xf32> to vector<16x1xf32>
    %cst_79 = arith.constant 6.400000e+01 : f32
    %320 = vector.broadcast %cst_79 : f32 to vector<16x1xf32>
    %321 = arith.divf %319, %320 : vector<16x1xf32>
    %cst_80 = arith.constant 9.99999997E-7 : f32
    %322 = vector.broadcast %cst_80 : f32 to vector<16x1xf32>
    %323 = arith.addf %321, %322 : vector<16x1xf32>
    %324 = math.rsqrt %323 : vector<16x1xf32>
    %325 = vector.broadcast %324 : vector<16x1xf32> to vector<16x64xf32>
    %326 = arith.mulf %316, %325 : vector<16x64xf32>
    %327 = arith.extf %315 : vector<1x64xbf16> to vector<1x64xf32>
    %328 = vector.broadcast %327 : vector<1x64xf32> to vector<16x64xf32>
    %329 = arith.mulf %326, %328 : vector<16x64xf32>
    %330 = arith.truncf %329 : vector<16x64xf32> to vector<16x64xbf16>
    %c1_81 = arith.constant 1 : index
    %c0_82 = arith.constant 0 : index
    %c0_83 = arith.constant 0 : index
    %331 = vector.load %arg12[%c1_81, %c0_82, %c0_83] : memref<2x64x256xbf16, #tpu.memory_space<vmem>>, vector<1x64x256xbf16>
    %332 = vector.shape_cast %331 : vector<1x64x256xbf16> to vector<64x256xbf16>
    %cst_84 = arith.constant dense<0.000000e+00> : vector<16x256xf32>
    %333 = tpu.matmul %330, %332, %cst_84 {dimension_numbers = #tpu.dot_dimension_numbers<[1], [0], [0], [1], [0, 0, 1, 1], [], []>} : vector<16x64xbf16>, vector<64x256xbf16>, vector<16x256xf32> -> vector<16x256xf32>
    %334 = vector.extract_strided_slice %333 {offsets = [0, 0], sizes = [16, 128], strides = [1, 1]} : vector<16x256xf32> to vector<16x128xf32>
    %335 = vector.extract_strided_slice %333 {offsets = [0, 128], sizes = [16, 128], strides = [1, 1]} : vector<16x256xf32> to vector<16x128xf32>
    %336 = arith.negf %334 : vector<16x128xf32>
    %337 = math.exp %336 : vector<16x128xf32>
    %cst_85 = arith.constant 1.000000e+00 : f32
    %338 = vector.broadcast %cst_85 : f32 to vector<16x128xf32>
    %339 = arith.addf %338, %337 : vector<16x128xf32>
    %340 = arith.divf %338, %339 : vector<16x128xf32>
    %341 = arith.mulf %334, %340 : vector<16x128xf32>
    %342 = arith.mulf %341, %335 : vector<16x128xf32>
    %343 = arith.truncf %342 : vector<16x128xf32> to vector<16x128xbf16>
    %c1_86 = arith.constant 1 : index
    %c0_87 = arith.constant 0 : index
    %c0_88 = arith.constant 0 : index
    %344 = vector.load %arg13[%c1_86, %c0_87, %c0_88] : memref<2x128x64xbf16, #tpu.memory_space<vmem>>, vector<1x128x64xbf16>
    %345 = vector.shape_cast %344 : vector<1x128x64xbf16> to vector<128x64xbf16>
    %cst_89 = arith.constant dense<0.000000e+00> : vector<16x64xf32>
    %346 = tpu.matmul %343, %345, %cst_89 {dimension_numbers = #tpu.dot_dimension_numbers<[1], [0], [0], [1], [0, 0, 1, 1], [], []>} : vector<16x128xbf16>, vector<128x64xbf16>, vector<16x64xf32> -> vector<16x64xf32>
    %347 = arith.extf %313 : vector<16x64xbf16> to vector<16x64xf32>
    %348 = arith.addf %347, %346 : vector<16x64xf32>
    %349 = arith.truncf %348 : vector<16x64xf32> to vector<16x64xbf16>
    %c0_90 = arith.constant 0 : index
    %c0_91 = arith.constant 0 : index
    %350 = vector.load %arg14[%c0_90, %c0_91] : memref<1x64xbf16, #tpu.memory_space<vmem>>, vector<1x64xbf16>
    %351 = arith.extf %349 : vector<16x64xbf16> to vector<16x64xf32>
    %352 = arith.mulf %351, %351 : vector<16x64xf32>
    %cst_92 = arith.constant dense<0.000000e+00> : vector<16xf32>
    %353 = vector.multi_reduction <add>, %352, %cst_92 [1] : vector<16x64xf32> to vector<16xf32>
    %354 = vector.shape_cast %353 : vector<16xf32> to vector<16x1xf32>
    %cst_93 = arith.constant 6.400000e+01 : f32
    %355 = vector.broadcast %cst_93 : f32 to vector<16x1xf32>
    %356 = arith.divf %354, %355 : vector<16x1xf32>
    %cst_94 = arith.constant 9.99999997E-7 : f32
    %357 = vector.broadcast %cst_94 : f32 to vector<16x1xf32>
    %358 = arith.addf %356, %357 : vector<16x1xf32>
    %359 = math.rsqrt %358 : vector<16x1xf32>
    %360 = vector.broadcast %359 : vector<16x1xf32> to vector<16x64xf32>
    %361 = arith.mulf %351, %360 : vector<16x64xf32>
    %362 = arith.extf %350 : vector<1x64xbf16> to vector<1x64xf32>
    %363 = vector.broadcast %362 : vector<1x64xf32> to vector<16x64xf32>
    %364 = arith.mulf %361, %363 : vector<16x64xf32>
    %365 = vector.shape_cast %364 : vector<16x64xf32> to vector<2x8x64xf32>
    %366 = tpu.iota {dimensions = array<i32: 1>} : vector<2x8xi32>
    %c0_95 = arith.constant 0 : index
    %c0_96 = arith.constant 0 : index
    %367 = vector.load %arg2[%c0_95, %c0_96] : memref<2x1xi32, #tpu.memory_space<vmem>>, vector<2x1xi32>
    %368 = vector.broadcast %367 : vector<2x1xi32> to vector<2x8xi32>
    %369 = arith.cmpi eq, %366, %368 : vector<2x8xi32>
    %370 = arith.extui %369 : vector<2x8xi1> to vector<2x8xi32>
    %371 = arith.sitofp %370 : vector<2x8xi32> to vector<2x8xf32>
    %372 = vector.shape_cast %371 : vector<2x8xf32> to vector<2x8x1xf32>
    %373 = vector.broadcast %372 : vector<2x8x1xf32> to vector<2x8x64xf32>
    %374 = arith.mulf %373, %365 : vector<2x8x64xf32>
    %cst_97 = arith.constant dense<0.000000e+00> : vector<2x64xf32>
    %375 = vector.multi_reduction <add>, %374, %cst_97 [1] : vector<2x8x64xf32> to vector<2x64xf32>
    %376 = arith.mulf %375, %375 : vector<2x64xf32>
    %cst_98 = arith.constant dense<0.000000e+00> : vector<2xf32>
    %377 = vector.multi_reduction <add>, %376, %cst_98 [1] : vector<2x64xf32> to vector<2xf32>
    %378 = vector.shape_cast %377 : vector<2xf32> to vector<2x1xf32>
    %379 = math.sqrt %378 : vector<2x1xf32>
    %cst_99 = arith.constant 9.99999996E-13 : f32
    %380 = vector.broadcast %cst_99 : f32 to vector<2x1xf32>
    %381 = arith.maximumf %379, %380 : vector<2x1xf32>
    %382 = vector.broadcast %381 : vector<2x1xf32> to vector<2x64xf32>
    %383 = arith.divf %375, %382 : vector<2x64xf32>
    %384 = arith.truncf %383 : vector<2x64xf32> to vector<2x64xbf16>
    %c0_100 = arith.constant 0 : index
    %c0_101 = arith.constant 0 : index
    %385 = vector.load %arg15[%c0_100, %c0_101] : memref<2x64xbf16, #tpu.memory_space<vmem>>, vector<2x64xbf16>
    tpu.vector_store %arg15[%c0_100, %c0_101], %384 {strides = array<i32>} : memref<2x64xbf16, #tpu.memory_space<vmem>>, vector<2x64xbf16>,
    return
  }
}

</mosaic_0001>

<llo_original>
// kernel: qwen_embedding_forward.1
$region0: #{qwen_embedding_forward.1}
  #allocation0 [shape = 'u32[]', space=smem, size = 0x4, offset = 0x4, fixed_abs, tag = 'smem constant byte address 0x4 - core index']
  #allocation1 [shape = 'u32[144,128]{1,0:T(1,128)}', space=vmem, size = 0x12000, scoped, tag = 'internal scratch']
  %s0 = inlined_call_operand.vmem [shape: s32[16,1], index: 0, kind: input, shape index: {}]
  %s1 = inlined_call_operand.vmem [shape: s32[2,8], index: 1, kind: input, shape index: {}]
  %s2 = inlined_call_operand.vmem [shape: s32[2,1], index: 2, kind: input, shape index: {}]
  %s3 = inlined_call_operand.vmem [shape: f32[8,16], index: 3, kind: input, shape index: {}]
  %s4 = inlined_call_operand.vmem [shape: f32[8,16], index: 4, kind: input, shape index: {}]
  %s5 = inlined_call_operand.vmem [shape: bf16[64,64], index: 5, kind: input, shape index: {}]
  %s6 = inlined_call_operand.vmem [shape: bf16[128,64], index: 6, kind: input, shape index: {}]
  %s7 = inlined_call_operand.vmem [shape: bf16[2,1,64], index: 7, kind: input, shape index: {}]
  %s8 = inlined_call_operand.vmem [shape: bf16[2,64,128], index: 8, kind: input, shape index: {}]
  %s9 = inlined_call_operand.vmem [shape: bf16[2,1,128], index: 9, kind: input, shape index: {}]
  %s10 = inlined_call_operand.vmem [shape: bf16[2,64,64], index: 10, kind: input, shape index: {}]
  %s11 = inlined_call_operand.vmem [shape: bf16[2,1,64], index: 11, kind: input, shape index: {}]
  %s12 = inlined_call_operand.vmem [shape: bf16[2,64,256], index: 12, kind: input, shape index: {}]
  %s13 = inlined_call_operand.vmem [shape: bf16[2,128,64], index: 13, kind: input, shape index: {}]
  %s14 = inlined_call_operand.vmem [shape: bf16[1,64], index: 14, kind: input, shape index: {}]
  %s15 = inlined_call_operand.hbm [shape: bf16[2,64], index: 15, kind: output, shape index: {}]
  %s16 = sld [smem:[#allocation0]]
  $region70: #{qwen_embedding_forward.1} parent=0
    _
  %s18 = ssub.s32 1, %s16
  %s19 = scalar_select 0, %s18, %s16
  $region1: #{qwen_embedding_forward.1} parent=0
    #allocation2 [shape = 'u8[512]{0}', space=vmem, size = 0x400, scoped, tag = 'output window, operand 0, single buffered']
    #allocation3 [shape = 's32[1]{0}', space=sflag, size = 0x4, scoped, tag = 'scoped memory for qwen_embedding_forward.1']
    %20 = vsyncpa [#allocation3], 0
    // Predicated region
    $region2: #{qwen_embedding_forward.1} parent=1 // pred_check
      _
    $region3: #{qwen_embedding_forward.1} parent=1 // pred_check_branch
      %22 = sbr.rel (0) target = $region5
    $region4: #{qwen_embedding_forward.1} parent=1 // pred_region
      _
    $region5: #{qwen_embedding_forward.1} parent=1 // pred_fallthru
      _
    // Predicated region
    $region6: #{qwen_embedding_forward.1} parent=1 // pred_check
      _
    $region7: #{qwen_embedding_forward.1} parent=1 // pred_check_branch
      %24 = sbr.rel (0) target = $region9
    $region8: #{qwen_embedding_forward.1} parent=1 // pred_region
      _
    $region9: #{qwen_embedding_forward.1} parent=1 // pred_fallthru
      _
    // Predicated region
    $region10: #{qwen_embedding_forward.1} parent=1 // pred_check
      _
    $region11: #{qwen_embedding_forward.1} parent=1 // pred_check_branch
      %26 = sbr.rel (0) target = $region13
    $region12: #{qwen_embedding_forward.1} parent=1 // pred_region
      _
    $region13: #{qwen_embedding_forward.1} parent=1 // pred_fallthru
      _
    // Predicated region
    $region14: #{qwen_embedding_forward.1} parent=1 // pred_check
      _
    $region15: #{qwen_embedding_forward.1} parent=1 // pred_check_branch
      %28 = sbr.rel (0) target = $region17
    $region16: #{qwen_embedding_forward.1} parent=1 // pred_region
      _
    $region17: #{qwen_embedding_forward.1} parent=1 // pred_fallthru
      _
    // Predicated region
    $region18: #{qwen_embedding_forward.1} parent=1 // pred_check
      _
    $region19: #{qwen_embedding_forward.1} parent=1 // pred_check_branch
      %30 = sbr.rel (0) target = $region21
    $region20: #{qwen_embedding_forward.1} parent=1 // pred_region
      _
    $region21: #{qwen_embedding_forward.1} parent=1 // pred_fallthru
      _
    // Predicated region
    $region22: #{qwen_embedding_forward.1} parent=1 // pred_check
      _
    $region23: #{qwen_embedding_forward.1} parent=1 // pred_check_branch
      %32 = sbr.rel (0) target = $region25
    $region24: #{qwen_embedding_forward.1} parent=1 // pred_region
      _
    $region25: #{qwen_embedding_forward.1} parent=1 // pred_fallthru
      _
    // Predicated region
    $region26: #{qwen_embedding_forward.1} parent=1 // pred_check
      _
    $region27: #{qwen_embedding_forward.1} parent=1 // pred_check_branch
      %34 = sbr.rel (0) target = $region29
    $region28: #{qwen_embedding_forward.1} parent=1 // pred_region
      _
    $region29: #{qwen_embedding_forward.1} parent=1 // pred_fallthru
      _
    // Predicated region
    $region30: #{qwen_embedding_forward.1} parent=1 // pred_check
      _
    $region31: #{qwen_embedding_forward.1} parent=1 // pred_check_branch
      %36 = sbr.rel (0) target = $region33
    $region32: #{qwen_embedding_forward.1} parent=1 // pred_region
      _
    $region33: #{qwen_embedding_forward.1} parent=1 // pred_fallthru
      _
    // Predicated region
    $region34: #{qwen_embedding_forward.1} parent=1 // pred_check
      _
    $region35: #{qwen_embedding_forward.1} parent=1 // pred_check_branch
      %38 = sbr.rel (0) target = $region37
    $region36: #{qwen_embedding_forward.1} parent=1 // pred_region
      _
    $region37: #{qwen_embedding_forward.1} parent=1 // pred_fallthru
      _
    // Predicated region
    $region38: #{qwen_embedding_forward.1} parent=1 // pred_check
      _
    $region39: #{qwen_embedding_forward.1} parent=1 // pred_check_branch
      %40 = sbr.rel (0) target = $region41
    $region40: #{qwen_embedding_forward.1} parent=1 // pred_region
      _
    $region41: #{qwen_embedding_forward.1} parent=1 // pred_fallthru
      _
    // Predicated region
    $region42: #{qwen_embedding_forward.1} parent=1 // pred_check
      _
    $region43: #{qwen_embedding_forward.1} parent=1 // pred_check_branch
      %42 = sbr.rel (0) target = $region45
    $region44: #{qwen_embedding_forward.1} parent=1 // pred_region
      _
    $region45: #{qwen_embedding_forward.1} parent=1 // pred_fallthru
      _
    // Predicated region
    $region46: #{qwen_embedding_forward.1} parent=1 // pred_check
      _
    $region47: #{qwen_embedding_forward.1} parent=1 // pred_check_branch
      %44 = sbr.rel (0) target = $region49
    $region48: #{qwen_embedding_forward.1} parent=1 // pred_region
      _
    $region49: #{qwen_embedding_forward.1} parent=1 // pred_fallthru
      _
    // Predicated region
    $region50: #{qwen_embedding_forward.1} parent=1 // pred_check
      _
    $region51: #{qwen_embedding_forward.1} parent=1 // pred_check_branch
      %46 = sbr.rel (0) target = $region53
    $region52: #{qwen_embedding_forward.1} parent=1 // pred_region
      _
    $region53: #{qwen_embedding_forward.1} parent=1 // pred_fallthru
      _
    // Predicated region
    $region54: #{qwen_embedding_forward.1} parent=1 // pred_check
      _
    $region55: #{qwen_embedding_forward.1} parent=1 // pred_check_branch
      %48 = sbr.rel (0) target = $region57
    $region56: #{qwen_embedding_forward.1} parent=1 // pred_region
      _
    $region57: #{qwen_embedding_forward.1} parent=1 // pred_fallthru
      _
    // Predicated region
    $region58: #{qwen_embedding_forward.1} parent=1 // pred_check
      _
    $region59: #{qwen_embedding_forward.1} parent=1 // pred_check_branch
      %50 = sbr.rel (0) target = $region61
    $region60: #{qwen_embedding_forward.1} parent=1 // pred_region
      _
    $region61: #{qwen_embedding_forward.1} parent=1 // pred_fallthru
      _
    %v52 = vld [vmem:[%s0] sm:$0xff]
    %v53 = vld [vmem:[%s0 + $0x8] sm:$0xff]
    %v54 = vlaneseq
    %v55 = vand.u32 %v54, 127
    %56 = vset.pattern.permute.xlu0 0
    %57 = vperm.xlu0 %56, %v52
    %v58 = vpop.permute.xlu0 %57
    %59 = vset.pattern.permute.xlu0 0
    %60 = vperm.xlu0 %59, %v53
    %v61 = vpop.permute.xlu0 %60
    %vm62 = vcmp.eq.s32.totalorder %v55, %v58
    %vm63 = vcmp.eq.s32.totalorder %v55, %v61
    %v64 = vsel %vm62, 1.0, 0.0
    %v65 = vsel %vm63, 1.0, 0.0
    %v66 = vpack.c.bf16 %v65, %v64
    %v67 = vld [vmem:[%s6] sm:$0xf]
    %v68 = vld [vmem:[%s6 + $0x4] sm:$0xf]
    %v69 = vld [vmem:[%s6 + $0x8] sm:$0xf]
    %v70 = vld [vmem:[%s6 + $0xc] sm:$0xf]
    %v71 = vld [vmem:[%s6 + $0x10] sm:$0xf]
    %v72 = vld [vmem:[%s6 + $0x14] sm:$0xf]
    %v73 = vld [vmem:[%s6 + $0x18] sm:$0xf]
    %v74 = vld [vmem:[%s6 + $0x1c] sm:$0xf]
    %v75 = vld [vmem:[%s6 + $0x20] sm:$0xf]
    %v76 = vld [vmem:[%s6 + $0x24] sm:$0xf]
    %v77 = vld [vmem:[%s6 + $0x28] sm:$0xf]
    %v78 = vld [vmem:[%s6 + $0x2c] sm:$0xf]
    %v79 = vld [vmem:[%s6 + $0x30] sm:$0xf]
    %v80 = vld [vmem:[%s6 + $0x34] sm:$0xf]
    %v81 = vld [vmem:[%s6 + $0x38] sm:$0xf]
    %v82 = vld [vmem:[%s6 + $0x3c] sm:$0xf]
    %v99 = vunpack.c.l.b16 %v67
    %v100 = vunpack.c.l.b16 %v68
    %v101 = vunpack.c.l.b16 %v69
    %v102 = vunpack.c.l.b16 %v70
    %v103 = vunpack.c.l.b16 %v71
    %v104 = vunpack.c.l.b16 %v72
    %v105 = vunpack.c.l.b16 %v73
    %v106 = vunpack.c.l.b16 %v74
    %v107 = vunpack.c.l.b16 %v75
    %v108 = vunpack.c.l.b16 %v76
    %v109 = vunpack.c.l.b16 %v77
    %v110 = vunpack.c.l.b16 %v78
    %v111 = vunpack.c.l.b16 %v79
    %v112 = vunpack.c.l.b16 %v80
    %v113 = vunpack.c.l.b16 %v81
    %v114 = vunpack.c.l.b16 %v82
    %v115 = vpack.c.b16 %v100, %v99
    %v116 = vpack.c.b16 %v102, %v101
    %v117 = vpack.c.b16 %v104, %v103
    %v118 = vpack.c.b16 %v106, %v105
    %v119 = vpack.c.b16 %v108, %v107
    %v120 = vpack.c.b16 %v110, %v109
    %v121 = vpack.c.b16 %v112, %v111
    %v122 = vpack.c.b16 %v114, %v113
    %131 = vmatprep.subr.bf16.mxu0 0
    %132 = vmatpush1.bf16.msra.mxu0 %v122
    %133 = vmatprep.subr.bf16.mxu0 0
    %134 = vmatpush1.bf16.msra.mxu0 %v121
    %135 = vmatprep.subr.bf16.mxu0 0
    %136 = vmatpush1.bf16.msra.mxu0 %v120
    %137 = vmatprep.subr.bf16.mxu0 0
    %138 = vmatpush1.bf16.msra.mxu0 %v119
    %139 = vmatprep.subr.bf16.mxu0 0
    %140 = vmatpush1.bf16.msra.mxu0 %v118
    %141 = vmatprep.subr.bf16.mxu0 0
    %142 = vmatpush1.bf16.msra.mxu0 %v117
    %143 = vmatprep.subr.bf16.mxu0 0
    %144 = vmatpush1.bf16.msra.mxu0 %v116
    %145 = vmatprep.subr.bf16.mxu0 0
    %146 = vmatpush1.bf16.msra.mxu0 %v115
    %147 = vmatprep.subr.bf16.mxu0 0
    %148 = vmatpush2.bf16.msra.mxu0 0
    %149 = vmatprep.subr.bf16.mxu0 0
    %150 = vmatpush2.bf16.msra.mxu0 0
    %151 = vmatprep.subr.bf16.mxu0 0
    %152 = vmatpush2.bf16.msra.mxu0 0
    %153 = vmatprep.subr.bf16.mxu0 0
    %154 = vmatpush2.bf16.msra.mxu0 0
    %155 = vmatprep.subr.bf16.mxu0 0
    %156 = vmatpush2.bf16.msra.mxu0 0
    %157 = vmatprep.subr.bf16.mxu0 0
    %158 = vmatpush2.bf16.msra.mxu0 0
    %159 = vmatprep.subr.bf16.mxu0 0
    %160 = vmatpush2.bf16.msra.mxu0 0
    %161 = vmatprep.subr.bf16.mxu0 0
    %162 = vmatpush2.bf16.msra.mxu0 0
    %163 = vmatprep.mubr.bf16.mxu0 0
    %164 = vmatmul.mubr.bf16.gmra.mxu0 %v66
    %v165 = vpop.f32.mrf.mxu0
    %v166 = vadd.f32 0.0, %v165
    %v167 = vpop.f32.mrf.mxu0
    %v168 = vpop.f32.mrf.mxu0
    %v169 = vadd.f32 0.0, %v168
    %v170 = vpop.f32.mrf.mxu0
    %171 = vdwg.mxu0
    %v172 = vpack.c.bf16 %v169, %v166
    %v173 = vld [vmem:[%s1] sm:$0x3]
    %v174 = vlaneseq
    %v175 = vshrl.u32 %v174, 7
    %vm176 = vcmp.ge.s32.totalorder %v175, %v55
    %vm177 = vcmp.gt.s32.totalorder %v173, 0
    %v178 = vsel %vm177, 1, 0
    %v180 = vunpack.c.l.s4 1966171168
    %v181 = vunpack.c.0.s8 %v180
    %v182 = vlaneseq
    %v183 = vshrl.u32 %v182, 7
    %v184 = vsub.s32 %v181, %v183
    %v185 = vrot.slane %v178, %v184
    %v186 = vcombine.high %v185, %v185
    %v188 = vunpack.c.l.s4 1966171168
    %v189 = vunpack.c.0.s8 %v188
    %v190 = vlaneseq
    %v191 = vshrl.u32 %v190, 7
    %v192 = vsub.s32 %v189, %v191
    %v193 = vrot.slane %v185, %v192
    %v195 = vunpack.c.l.s4 1966171168
    %v196 = vunpack.c.0.s8 %v195
    %v197 = vlaneseq
    %v198 = vshrl.u32 %v197, 7
    %v199 = vsub.s32 %v196, %v198
    %v200 = vrot.slane %v186, %v199
    %vm201 = vcmp.ne.s32.totalorder %v193, 0
    %vm202 = vcmp.ne.s32.totalorder %v200, 0
    %v203 = vsel %vm176, 1, 0
    %vm204 = vcmp.eq.s32.totalorder %v203, 1
    %v205 = vsel %vm201, 1, 0
    %v206 = vsel %vm202, 1, 0
    %v207 = vlaneseq
    %v208 = vshrl.u32 %v207, 7
    %v209 = vsub.s32 0, %v208
    %v210 = vrot.slane %v205, %v209
    %v211 = vlaneseq
    %v212 = vshrl.u32 %v211, 7
    %v213 = vsub.s32 0, %v212
    %v214 = vrot.slane %v206, %v213
    %vm215 = vcmp.eq.s32.totalorder %v210, 1
    %vm216 = vcmp.eq.s32.totalorder %v214, 1
    %vm217 = vmand %vm204, %vm215
    %vm218 = vmand %vm204, %vm216
    %v219 = vsel %vm217, 0.0, -1e+30
    %v220 = vsel %vm218, 0.0, -1e+30
    %v221 = vld [vmem:[%s3] sm:$0xff]
    %223 = vrot.lane.b32.xlu0 %v221, 16
    %v224 = vpop.permute.xlu0 %223
    %226 = vrot.lane.b32.xlu0 %v221, 32
    %v227 = vpop.permute.xlu0 %226
    %229 = vrot.lane.b32.xlu0 %v221, 48
    %v230 = vpop.permute.xlu0 %229
    %vm232 = vcmask 130048
    %v233 = vsel %vm232, %v221, %v224
    %vm234 = vcmask 261120
    %v235 = vsel %vm234, %v233, %v227
    %vm236 = vcmask 392192
    %v237 = vsel %vm236, %v235, %v230
    %v238 = vld [vmem:[%s4] sm:$0xff]
    %240 = vrot.lane.b32.xlu0 %v238, 16
    %v241 = vpop.permute.xlu0 %240
    %243 = vrot.lane.b32.xlu0 %v238, 32
    %v244 = vpop.permute.xlu0 %243
    %246 = vrot.lane.b32.xlu0 %v238, 48
    %v247 = vpop.permute.xlu0 %246
    %v249 = vsel %vm232, %v238, %v241
    %v250 = vsel %vm234, %v249, %v244
    %v251 = vsel %vm236, %v250, %v247
    %v252 = vld [vmem:[%s5] sm:$0xf]
    %v253 = vld [vmem:[%s5 + $0x4] sm:$0xf]
    %v254 = vld [vmem:[%s5 + $0x8] sm:$0xf]
    %v255 = vld [vmem:[%s5 + $0xc] sm:$0xf]
    %v256 = vld [vmem:[%s5 + $0x10] sm:$0xf]
    %v257 = vld [vmem:[%s5 + $0x14] sm:$0xf]
    %v258 = vld [vmem:[%s5 + $0x18] sm:$0xf]
    %v259 = vld [vmem:[%s5 + $0x1c] sm:$0xf]
    %v260 = vld [vmem:[%s7] sm:$0x1]
    %v261 = vunpack.c.l.bf16 %v172
    %v262 = vunpack.c.h.bf16 %v172
    %v263 = vmul.f32 %v261, %v261
    %v264 = vmul.f32 %v262, %v262
    %vm265 = vcmask 523264
    %v266 = vsel %vm265, %v263, 0.0
    %267 = vadd.xlane.f32.xlu0 %v266
    %v268 = vpop.xlane.xlu0 %267
    %v269 = vsel %vm265, %v264, 0.0
    %270 = vadd.xlane.f32.xlu0 %v269
    %v271 = vpop.xlane.xlu0 %270
    %v272 = vrcp.pop 64.0
    %v273 = vmul.f32 %v268, %v272
    %v274 = vmul.f32 %v271, %v272
    %v275 = vadd.f32 %v273, 1e-06
    %v276 = vadd.f32 %v274, 1e-06
    %v277 = vrsqrt.pop %v275
    %v278 = vrsqrt.pop %v276
    %v279 = vmul.f32 %v261, %v277
    %v280 = vmul.f32 %v262, %v278
    %v281 = vunpack.c.l.bf16 %v260
    %v282 = vlaneseq
    %v283 = vshrl.u32 %v282, 7
    %v284 = vsub.s32 0, %v283
    %v285 = vrot.slane %v281, %v284
    %v286 = vmul.f32 %v279, %v285
    %v287 = vmul.f32 %v280, %v285
    %v288 = vpack.c.bf16 %v287, %v286
    %v289 = vld [vmem:[%s8] sm:$0xf]
    %v290 = vld [vmem:[%s8 + $0x4] sm:$0xf]
    %v291 = vld [vmem:[%s8 + $0x8] sm:$0xf]
    %v292 = vld [vmem:[%s8 + $0xc] sm:$0xf]
    %v293 = vld [vmem:[%s8 + $0x10] sm:$0xf]
    %v294 = vld [vmem:[%s8 + $0x14] sm:$0xf]
    %v295 = vld [vmem:[%s8 + $0x18] sm:$0xf]
    %v296 = vld [vmem:[%s8 + $0x1c] sm:$0xf]
    %v297 = vld [vmem:[%s9] sm:$0x1]
    %v298 = vunpack.c.l.bf16 %v297
    %v299 = vlaneseq
    %v300 = vshrl.u32 %v299, 7
    %v301 = vsub.s32 0, %v300
    %v302 = vrot.slane %v298, %v301
    %v311 = vunpack.c.l.b16 %v289
    %v312 = vunpack.c.l.b16 %v290
    %v313 = vunpack.c.l.b16 %v291
    %v314 = vunpack.c.l.b16 %v292
    %v315 = vunpack.c.l.b16 %v293
    %v316 = vunpack.c.l.b16 %v294
    %v317 = vunpack.c.l.b16 %v295
    %v318 = vunpack.c.l.b16 %v296
    %v319 = vpack.c.b16 %v312, %v311
    %v320 = vpack.c.b16 %v314, %v313
    %v321 = vpack.c.b16 %v316, %v315
    %v322 = vpack.c.b16 %v318, %v317
    %v328 = vsel %vm265, %v288, 0
    %330 = vmatprep.subr.bf16.mxu0 0
    %331 = vmatpush1.bf16.msra.mxu0 0
    %332 = vmatprep.subr.bf16.mxu0 0
    %333 = vmatpush1.bf16.msra.mxu0 0
    %334 = vmatprep.subr.bf16.mxu0 0
    %335 = vmatpush1.bf16.msra.mxu0 0
    %336 = vmatprep.subr.bf16.mxu0 0
    %337 = vmatpush1.bf16.msra.mxu0 0
    %338 = vmatprep.subr.bf16.mxu0 0
    %339 = vmatpush1.bf16.msra.mxu0 %v322
    %340 = vmatprep.subr.bf16.mxu0 0
    %341 = vmatpush1.bf16.msra.mxu0 %v321
    %342 = vmatprep.subr.bf16.mxu0 0
    %343 = vmatpush1.bf16.msra.mxu0 %v320
    %344 = vmatprep.subr.bf16.mxu0 0
    %345 = vmatpush1.bf16.msra.mxu0 %v319
    %346 = vmatprep.subr.bf16.mxu0 0
    %347 = vmatpush2.bf16.msra.mxu0 0
    %348 = vmatprep.subr.bf16.mxu0 0
    %349 = vmatpush2.bf16.msra.mxu0 0
    %350 = vmatprep.subr.bf16.mxu0 0
    %351 = vmatpush2.bf16.msra.mxu0 0
    %352 = vmatprep.subr.bf16.mxu0 0
    %353 = vmatpush2.bf16.msra.mxu0 0
    %354 = vmatprep.subr.bf16.mxu0 0
    %355 = vmatpush2.bf16.msra.mxu0 0
    %356 = vmatprep.subr.bf16.mxu0 0
    %357 = vmatpush2.bf16.msra.mxu0 0
    %358 = vmatprep.subr.bf16.mxu0 0
    %359 = vmatpush2.bf16.msra.mxu0 0
    %360 = vmatprep.subr.bf16.mxu0 0
    %361 = vmatpush2.bf16.msra.mxu0 0
    %362 = vmatprep.mubr.bf16.mxu0 0
    %363 = vmatmul.mubr.bf16.gmra.mxu0 %v328
    %v364 = vpop.f32.mrf.mxu0
    %v365 = vadd.f32 %v302, %v364
    %v366 = vpop.f32.mrf.mxu0
    %v367 = vpop.f32.mrf.mxu0
    %v368 = vadd.f32 %v302, %v367
    %v369 = vpop.f32.mrf.mxu0
    %370 = vdwg.mxu0
    %v371 = vpack.c.bf16 %v368, %v365
    %v372 = vmul.f32 %v365, %v237
    %v373 = vmul.f32 %v368, %v237
    %v382 = vunpack.c.l.b16 %v252
    %v383 = vunpack.c.l.b16 %v253
    %v384 = vunpack.c.l.b16 %v254
    %v385 = vunpack.c.l.b16 %v255
    %v386 = vunpack.c.l.b16 %v256
    %v387 = vunpack.c.l.b16 %v257
    %v388 = vunpack.c.l.b16 %v258
    %v389 = vunpack.c.l.b16 %v259
    %v390 = vpack.c.b16 %v383, %v382
    %v391 = vpack.c.b16 %v385, %v384
    %v392 = vpack.c.b16 %v387, %v386
    %v393 = vpack.c.b16 %v389, %v388
    %v399 = vsel %vm265, %v371, 0
    %401 = vmatprep.subr.bf16.mxu0 0
    %402 = vmatpush1.bf16.msra.mxu0 0
    %403 = vmatprep.subr.bf16.mxu0 0
    %404 = vmatpush1.bf16.msra.mxu0 0
    %405 = vmatprep.subr.bf16.mxu0 0
    %406 = vmatpush1.bf16.msra.mxu0 0
    %407 = vmatprep.subr.bf16.mxu0 0
    %408 = vmatpush1.bf16.msra.mxu0 0
    %409 = vmatprep.subr.bf16.mxu0 0
    %410 = vmatpush1.bf16.msra.mxu0 %v393
    %411 = vmatprep.subr.bf16.mxu0 0
    %412 = vmatpush1.bf16.msra.mxu0 %v392
    %413 = vmatprep.subr.bf16.mxu0 0
    %414 = vmatpush1.bf16.msra.mxu0 %v391
    %415 = vmatprep.subr.bf16.mxu0 0
    %416 = vmatpush1.bf16.msra.mxu0 %v390
    %417 = vmatprep.subr.bf16.mxu0 0
    %418 = vmatpush2.bf16.msra.mxu0 0
    %419 = vmatprep.subr.bf16.mxu0 0
    %420 = vmatpush2.bf16.msra.mxu0 0
    %421 = vmatprep.subr.bf16.mxu0 0
    %422 = vmatpush2.bf16.msra.mxu0 0
    %423 = vmatprep.subr.bf16.mxu0 0
    %424 = vmatpush2.bf16.msra.mxu0 0
    %425 = vmatprep.subr.bf16.mxu0 0
    %426 = vmatpush2.bf16.msra.mxu0 0
    %427 = vmatprep.subr.bf16.mxu0 0
    %428 = vmatpush2.bf16.msra.mxu0 0
    %429 = vmatprep.subr.bf16.mxu0 0
    %430 = vmatpush2.bf16.msra.mxu0 0
    %431 = vmatprep.subr.bf16.mxu0 0
    %432 = vmatpush2.bf16.msra.mxu0 0
    %433 = vmatprep.mubr.bf16.mxu0 0
    %434 = vmatmul.mubr.bf16.gmra.mxu0 %v399
    %v435 = vpop.f32.mrf.mxu0
    %v436 = vadd.f32 0.0, %v435
    %v437 = vpop.f32.mrf.mxu0
    %v438 = vpop.f32.mrf.mxu0
    %v439 = vadd.f32 0.0, %v438
    %v440 = vpop.f32.mrf.mxu0
    %441 = vdwg.mxu0
    %v442 = vmul.f32 %v436, %v251
    %v443 = vmul.f32 %v439, %v251
    %v444 = vadd.f32 %v372, %v442
    %v445 = vadd.f32 %v373, %v443
    %v446 = vpack.c.bf16 %v445, %v444
    %448 = vrot.lane.b32.xlu0 %v237, 64
    %v449 = vpop.permute.xlu0 %448
    %v451 = vmul.f32 %v365, %v449
    %v452 = vmul.f32 %v368, %v449
    %454 = vrot.lane.b32.xlu0 %v371, 64
    %v455 = vpop.permute.xlu0 %454
    %v457 = vsel %vm234, %v455, 0
    %459 = vmatprep.subr.bf16.mxu0 0
    %460 = vmatpush1.bf16.msra.mxu0 0
    %461 = vmatprep.subr.bf16.mxu0 0
    %462 = vmatpush1.bf16.msra.mxu0 0
    %463 = vmatprep.subr.bf16.mxu0 0
    %464 = vmatpush1.bf16.msra.mxu0 0
    %465 = vmatprep.subr.bf16.mxu0 0
    %466 = vmatpush1.bf16.msra.mxu0 0
    %467 = vmatprep.subr.bf16.mxu0 0
    %468 = vmatpush1.bf16.msra.mxu0 0
    %469 = vmatprep.subr.bf16.mxu0 0
    %470 = vmatpush1.bf16.msra.mxu0 0
    %471 = vmatprep.subr.bf16.mxu0 0
    %472 = vmatpush1.bf16.msra.mxu0 %v391
    %473 = vmatprep.subr.bf16.mxu0 0
    %474 = vmatpush1.bf16.msra.mxu0 %v390
    %475 = vmatprep.subr.bf16.mxu0 0
    %476 = vmatpush2.bf16.msra.mxu0 0
    %477 = vmatprep.subr.bf16.mxu0 0
    %478 = vmatpush2.bf16.msra.mxu0 0
    %479 = vmatprep.subr.bf16.mxu0 0
    %480 = vmatpush2.bf16.msra.mxu0 0
    %481 = vmatprep.subr.bf16.mxu0 0
    %482 = vmatpush2.bf16.msra.mxu0 0
    %483 = vmatprep.subr.bf16.mxu0 0
    %484 = vmatpush2.bf16.msra.mxu0 0
    %485 = vmatprep.subr.bf16.mxu0 0
    %486 = vmatpush2.bf16.msra.mxu0 0
    %487 = vmatprep.subr.bf16.mxu0 0
    %488 = vmatpush2.bf16.msra.mxu0 0
    %489 = vmatprep.subr.bf16.mxu0 0
    %490 = vmatpush2.bf16.msra.mxu0 0
    %491 = vmatprep.mubr.bf16.mxu0 0
    %492 = vmatmul.mubr.bf16.gmra.mxu0 %v457
    %v493 = vpop.f32.mrf.mxu0
    %v494 = vadd.f32 0.0, %v493
    %v495 = vpop.f32.mrf.mxu0
    %v496 = vpop.f32.mrf.mxu0
    %v497 = vadd.f32 0.0, %v496
    %v498 = vpop.f32.mrf.mxu0
    %499 = vdwg.mxu0
    %v500 = vmul.f32 %v494, %v251
    %v501 = vmul.f32 %v497, %v251
    %504 = vrot.lane.b32.xlu0 %v500, 64
    %v505 = vpop.permute.xlu0 %504
    %506 = vrot.lane.b32.xlu0 %v501, 64
    %v507 = vpop.permute.xlu0 %506
    %v510 = vadd.f32 %v451, %v505
    %v511 = vadd.f32 %v452, %v507
    %v512 = vpack.c.bf16 %v511, %v510
    %v514 = vunpack.c.l.b16 %v446
    %v515 = vunpack.c.h.b16 %v446
    %v516 = vpack.c.b16 %v514, %v514
    %v517 = vpack.c.b16 %v515, %v515
    %518 = vrot.lane.b32.xlu0 %v516, 112
    %v519 = vpop.permute.xlu0 %518
    %520 = vrot.lane.b32.xlu0 %v517, 112
    %v521 = vpop.permute.xlu0 %520
    %522 = vrot.lane.b32.xlu0 %v516, 96
    %v523 = vpop.permute.xlu0 %522
    %524 = vrot.lane.b32.xlu0 %v517, 96
    %v525 = vpop.permute.xlu0 %524
    %526 = vrot.lane.b32.xlu0 %v516, 80
    %v527 = vpop.permute.xlu0 %526
    %528 = vrot.lane.b32.xlu0 %v517, 80
    %v529 = vpop.permute.xlu0 %528
    %v531 = vunpack.c.l.b16 %v512
    %v532 = vunpack.c.h.b16 %v512
    %v533 = vpack.c.b16 %v531, %v531
    %v534 = vpack.c.b16 %v532, %v532
    %535 = vrot.lane.b32.xlu0 %v533, 112
    %v536 = vpop.permute.xlu0 %535
    %537 = vrot.lane.b32.xlu0 %v534, 112
    %v538 = vpop.permute.xlu0 %537
    %v539 = vunpack.c.l.b16 %v371
    %v540 = vunpack.c.h.b16 %v371
    %v541 = vpack.c.b16 %v539, %v539
    %v542 = vpack.c.b16 %v540, %v540
    %543 = vrot.lane.b32.xlu0 %v541, 112
    %v544 = vpop.permute.xlu0 %543
    %545 = vrot.lane.b32.xlu0 %v542, 112
    %v546 = vpop.permute.xlu0 %545
    %547 = vrot.lane.b32.xlu0 %v533, 64
    %v548 = vpop.permute.xlu0 %547
    %v550 = vsel %vm232, %v516, 0
    %v553 = vsel %vm232, %v548, 0
    %555 = vmatprep.subr.bf16.mxu0 0
    %556 = vmatpush1.bf16.xpose.msra.mxu0 0
    %557 = vmatprep.subr.bf16.mxu0 0
    %558 = vmatpush1.bf16.xpose.msra.mxu0 0
    %559 = vmatprep.subr.bf16.mxu0 0
    %560 = vmatpush1.bf16.xpose.msra.mxu0 0
    %561 = vmatprep.subr.bf16.mxu0 0
    %562 = vmatpush1.bf16.xpose.msra.mxu0 0
    %563 = vmatprep.subr.bf16.mxu0 0
    %564 = vmatpush1.bf16.xpose.msra.mxu0 0
    %565 = vmatprep.subr.bf16.mxu0 0
    %566 = vmatpush1.bf16.xpose.msra.mxu0 0
    %567 = vmatprep.subr.bf16.mxu0 0
    %568 = vmatpush1.bf16.xpose.msra.mxu0 0
    %569 = vmatprep.subr.bf16.mxu0 0
    %570 = vmatpush1.bf16.xpose.msra.mxu0 %v553
    %571 = vmatprep.subr.bf16.mxu0 0
    %572 = vmatpush2.bf16.xpose.msra.mxu0 0
    %573 = vmatprep.subr.bf16.mxu0 0
    %574 = vmatpush2.bf16.xpose.msra.mxu0 0
    %575 = vmatprep.subr.bf16.mxu0 0
    %576 = vmatpush2.bf16.xpose.msra.mxu0 0
    %577 = vmatprep.subr.bf16.mxu0 0
    %578 = vmatpush2.bf16.xpose.msra.mxu0 0
    %579 = vmatprep.subr.bf16.mxu0 0
    %580 = vmatpush2.bf16.xpose.msra.mxu0 0
    %581 = vmatprep.subr.bf16.mxu0 0
    %582 = vmatpush2.bf16.xpose.msra.mxu0 0
    %583 = vmatprep.subr.bf16.mxu0 0
    %584 = vmatpush2.bf16.xpose.msra.mxu0 0
    %585 = vmatprep.subr.bf16.mxu0 0
    %586 = vmatpush2.bf16.xpose.msra.mxu0 0
    %587 = vmatprep.mubr.bf16.mxu0 0
    %588 = vmatmul.mubr.bf16.gmra.mxu0 %v550
    %v589 = vpop.f32.mrf.mxu0
    %v590 = vadd.f32 %v219, %v589
    %v591 = vpop.f32.mrf.mxu0
    %v592 = vpop.f32.mrf.mxu0
    %v593 = vpop.f32.mrf.mxu0
    %594 = vdwg.mxu0
    %v596 = vsel %vm232, %v519, 0
    %598 = vmatprep.subr.bf16.mxu0 0
    %599 = vmatpush1.bf16.xpose.msra.mxu0 0
    %600 = vmatprep.subr.bf16.mxu0 0
    %601 = vmatpush1.bf16.xpose.msra.mxu0 0
    %602 = vmatprep.subr.bf16.mxu0 0
    %603 = vmatpush1.bf16.xpose.msra.mxu0 0
    %604 = vmatprep.subr.bf16.mxu0 0
    %605 = vmatpush1.bf16.xpose.msra.mxu0 0
    %606 = vmatprep.subr.bf16.mxu0 0
    %607 = vmatpush1.bf16.xpose.msra.mxu0 0
    %608 = vmatprep.subr.bf16.mxu0 0
    %609 = vmatpush1.bf16.xpose.msra.mxu0 0
    %610 = vmatprep.subr.bf16.mxu0 0
    %611 = vmatpush1.bf16.xpose.msra.mxu0 0
    %612 = vmatprep.subr.bf16.mxu0 0
    %613 = vmatpush1.bf16.xpose.msra.mxu0 %v553
    %614 = vmatprep.subr.bf16.mxu0 0
    %615 = vmatpush2.bf16.xpose.msra.mxu0 0
    %616 = vmatprep.subr.bf16.mxu0 0
    %617 = vmatpush2.bf16.xpose.msra.mxu0 0
    %618 = vmatprep.subr.bf16.mxu0 0
    %619 = vmatpush2.bf16.xpose.msra.mxu0 0
    %620 = vmatprep.subr.bf16.mxu0 0
    %621 = vmatpush2.bf16.xpose.msra.mxu0 0
    %622 = vmatprep.subr.bf16.mxu0 0
    %623 = vmatpush2.bf16.xpose.msra.mxu0 0
    %624 = vmatprep.subr.bf16.mxu0 0
    %625 = vmatpush2.bf16.xpose.msra.mxu0 0
    %626 = vmatprep.subr.bf16.mxu0 0
    %627 = vmatpush2.bf16.xpose.msra.mxu0 0
    %628 = vmatprep.subr.bf16.mxu0 0
    %629 = vmatpush2.bf16.xpose.msra.mxu0 0
    %630 = vmatprep.mubr.bf16.mxu0 0
    %631 = vmatmul.mubr.bf16.gmra.mxu0 %v596
    %v632 = vpop.f32.mrf.mxu0
    %v633 = vadd.f32 %v219, %v632
    %v634 = vpop.f32.mrf.mxu0
    %v635 = vpop.f32.mrf.mxu0
    %v636 = vpop.f32.mrf.mxu0
    %637 = vdwg.mxu0
    %v638 = vunpack.c.l.b16 %v536
    %v639 = vpack.c.b16 %v638, %v638
    %640 = vrot.lane.b32.xlu0 %v639, 64
    %v641 = vpop.permute.xlu0 %640
    %v643 = vsel %vm232, %v523, 0
    %v646 = vsel %vm232, %v641, 0
    %648 = vmatprep.subr.bf16.mxu0 0
    %649 = vmatpush1.bf16.xpose.msra.mxu0 0
    %650 = vmatprep.subr.bf16.mxu0 0
    %651 = vmatpush1.bf16.xpose.msra.mxu0 0
    %652 = vmatprep.subr.bf16.mxu0 0
    %653 = vmatpush1.bf16.xpose.msra.mxu0 0
    %654 = vmatprep.subr.bf16.mxu0 0
    %655 = vmatpush1.bf16.xpose.msra.mxu0 0
    %656 = vmatprep.subr.bf16.mxu0 0
    %657 = vmatpush1.bf16.xpose.msra.mxu0 0
    %658 = vmatprep.subr.bf16.mxu0 0
    %659 = vmatpush1.bf16.xpose.msra.mxu0 0
    %660 = vmatprep.subr.bf16.mxu0 0
    %661 = vmatpush1.bf16.xpose.msra.mxu0 0
    %662 = vmatprep.subr.bf16.mxu0 0
    %663 = vmatpush1.bf16.xpose.msra.mxu0 %v646
    %664 = vmatprep.subr.bf16.mxu0 0
    %665 = vmatpush2.bf16.xpose.msra.mxu0 0
    %666 = vmatprep.subr.bf16.mxu0 0
    %667 = vmatpush2.bf16.xpose.msra.mxu0 0
    %668 = vmatprep.subr.bf16.mxu0 0
    %669 = vmatpush2.bf16.xpose.msra.mxu0 0
    %670 = vmatprep.subr.bf16.mxu0 0
    %671 = vmatpush2.bf16.xpose.msra.mxu0 0
    %672 = vmatprep.subr.bf16.mxu0 0
    %673 = vmatpush2.bf16.xpose.msra.mxu0 0
    %674 = vmatprep.subr.bf16.mxu0 0
    %675 = vmatpush2.bf16.xpose.msra.mxu0 0
    %676 = vmatprep.subr.bf16.mxu0 0
    %677 = vmatpush2.bf16.xpose.msra.mxu0 0
    %678 = vmatprep.subr.bf16.mxu0 0
    %679 = vmatpush2.bf16.xpose.msra.mxu0 0
    %680 = vmatprep.mubr.bf16.mxu0 0
    %681 = vmatmul.mubr.bf16.gmra.mxu0 %v643
    %v682 = vpop.f32.mrf.mxu0
    %v683 = vadd.f32 %v219, %v682
    %v684 = vpop.f32.mrf.mxu0
    %v685 = vpop.f32.mrf.mxu0
    %v686 = vpop.f32.mrf.mxu0
    %687 = vdwg.mxu0
    %v689 = vsel %vm232, %v527, 0
    %691 = vmatprep.subr.bf16.mxu0 0
    %692 = vmatpush1.bf16.xpose.msra.mxu0 0
    %693 = vmatprep.subr.bf16.mxu0 0
    %694 = vmatpush1.bf16.xpose.msra.mxu0 0
    %695 = vmatprep.subr.bf16.mxu0 0
    %696 = vmatpush1.bf16.xpose.msra.mxu0 0
    %697 = vmatprep.subr.bf16.mxu0 0
    %698 = vmatpush1.bf16.xpose.msra.mxu0 0
    %699 = vmatprep.subr.bf16.mxu0 0
    %700 = vmatpush1.bf16.xpose.msra.mxu0 0
    %701 = vmatprep.subr.bf16.mxu0 0
    %702 = vmatpush1.bf16.xpose.msra.mxu0 0
    %703 = vmatprep.subr.bf16.mxu0 0
    %704 = vmatpush1.bf16.xpose.msra.mxu0 0
    %705 = vmatprep.subr.bf16.mxu0 0
    %706 = vmatpush1.bf16.xpose.msra.mxu0 %v646
    %707 = vmatprep.subr.bf16.mxu0 0
    %708 = vmatpush2.bf16.xpose.msra.mxu0 0
    %709 = vmatprep.subr.bf16.mxu0 0
    %710 = vmatpush2.bf16.xpose.msra.mxu0 0
    %711 = vmatprep.subr.bf16.mxu0 0
    %712 = vmatpush2.bf16.xpose.msra.mxu0 0
    %713 = vmatprep.subr.bf16.mxu0 0
    %714 = vmatpush2.bf16.xpose.msra.mxu0 0
    %715 = vmatprep.subr.bf16.mxu0 0
    %716 = vmatpush2.bf16.xpose.msra.mxu0 0
    %717 = vmatprep.subr.bf16.mxu0 0
    %718 = vmatpush2.bf16.xpose.msra.mxu0 0
    %719 = vmatprep.subr.bf16.mxu0 0
    %720 = vmatpush2.bf16.xpose.msra.mxu0 0
    %721 = vmatprep.subr.bf16.mxu0 0
    %722 = vmatpush2.bf16.xpose.msra.mxu0 0
    %723 = vmatprep.mubr.bf16.mxu0 0
    %724 = vmatmul.mubr.bf16.gmra.mxu0 %v689
    %v725 = vpop.f32.mrf.mxu0
    %v726 = vadd.f32 %v219, %v725
    %v727 = vpop.f32.mrf.mxu0
    %v728 = vpop.f32.mrf.mxu0
    %v729 = vpop.f32.mrf.mxu0
    %730 = vdwg.mxu0
    %731 = vrot.lane.b32.xlu0 %v534, 64
    %v732 = vpop.permute.xlu0 %731
    %v734 = vsel %vm232, %v517, 0
    %v737 = vsel %vm232, %v732, 0
    %739 = vmatprep.subr.bf16.mxu0 0
    %740 = vmatpush1.bf16.xpose.msra.mxu0 0
    %741 = vmatprep.subr.bf16.mxu0 0
    %742 = vmatpush1.bf16.xpose.msra.mxu0 0
    %743 = vmatprep.subr.bf16.mxu0 0
    %744 = vmatpush1.bf16.xpose.msra.mxu0 0
    %745 = vmatprep.subr.bf16.mxu0 0
    %746 = vmatpush1.bf16.xpose.msra.mxu0 0
    %747 = vmatprep.subr.bf16.mxu0 0
    %748 = vmatpush1.bf16.xpose.msra.mxu0 0
    %749 = vmatprep.subr.bf16.mxu0 0
    %750 = vmatpush1.bf16.xpose.msra.mxu0 0
    %751 = vmatprep.subr.bf16.mxu0 0
    %752 = vmatpush1.bf16.xpose.msra.mxu0 0
    %753 = vmatprep.subr.bf16.mxu0 0
    %754 = vmatpush1.bf16.xpose.msra.mxu0 %v737
    %755 = vmatprep.subr.bf16.mxu0 0
    %756 = vmatpush2.bf16.xpose.msra.mxu0 0
    %757 = vmatprep.subr.bf16.mxu0 0
    %758 = vmatpush2.bf16.xpose.msra.mxu0 0
    %759 = vmatprep.subr.bf16.mxu0 0
    %760 = vmatpush2.bf16.xpose.msra.mxu0 0
    %761 = vmatprep.subr.bf16.mxu0 0
    %762 = vmatpush2.bf16.xpose.msra.mxu0 0
    %763 = vmatprep.subr.bf16.mxu0 0
    %764 = vmatpush2.bf16.xpose.msra.mxu0 0
    %765 = vmatprep.subr.bf16.mxu0 0
    %766 = vmatpush2.bf16.xpose.msra.mxu0 0
    %767 = vmatprep.subr.bf16.mxu0 0
    %768 = vmatpush2.bf16.xpose.msra.mxu0 0
    %769 = vmatprep.subr.bf16.mxu0 0
    %770 = vmatpush2.bf16.xpose.msra.mxu0 0
    %771 = vmatprep.mubr.bf16.mxu0 0
    %772 = vmatmul.mubr.bf16.gmra.mxu0 %v734
    %v773 = vpop.f32.mrf.mxu0
    %v774 = vadd.f32 %v220, %v773
    %v775 = vpop.f32.mrf.mxu0
    %v776 = vpop.f32.mrf.mxu0
    %v777 = vpop.f32.mrf.mxu0
    %778 = vdwg.mxu0
    %v780 = vsel %vm232, %v521, 0
    %782 = vmatprep.subr.bf16.mxu0 0
    %783 = vmatpush1.bf16.xpose.msra.mxu0 0
    %784 = vmatprep.subr.bf16.mxu0 0
    %785 = vmatpush1.bf16.xpose.msra.mxu0 0
    %786 = vmatprep.subr.bf16.mxu0 0
    %787 = vmatpush1.bf16.xpose.msra.mxu0 0
    %788 = vmatprep.subr.bf16.mxu0 0
    %789 = vmatpush1.bf16.xpose.msra.mxu0 0
    %790 = vmatprep.subr.bf16.mxu0 0
    %791 = vmatpush1.bf16.xpose.msra.mxu0 0
    %792 = vmatprep.subr.bf16.mxu0 0
    %793 = vmatpush1.bf16.xpose.msra.mxu0 0
    %794 = vmatprep.subr.bf16.mxu0 0
    %795 = vmatpush1.bf16.xpose.msra.mxu0 0
    %796 = vmatprep.subr.bf16.mxu0 0
    %797 = vmatpush1.bf16.xpose.msra.mxu0 %v737
    %798 = vmatprep.subr.bf16.mxu0 0
    %799 = vmatpush2.bf16.xpose.msra.mxu0 0
    %800 = vmatprep.subr.bf16.mxu0 0
    %801 = vmatpush2.bf16.xpose.msra.mxu0 0
    %802 = vmatprep.subr.bf16.mxu0 0
    %803 = vmatpush2.bf16.xpose.msra.mxu0 0
    %804 = vmatprep.subr.bf16.mxu0 0
    %805 = vmatpush2.bf16.xpose.msra.mxu0 0
    %806 = vmatprep.subr.bf16.mxu0 0
    %807 = vmatpush2.bf16.xpose.msra.mxu0 0
    %808 = vmatprep.subr.bf16.mxu0 0
    %809 = vmatpush2.bf16.xpose.msra.mxu0 0
    %810 = vmatprep.subr.bf16.mxu0 0
    %811 = vmatpush2.bf16.xpose.msra.mxu0 0
    %812 = vmatprep.subr.bf16.mxu0 0
    %813 = vmatpush2.bf16.xpose.msra.mxu0 0
    %814 = vmatprep.mubr.bf16.mxu0 0
    %815 = vmatmul.mubr.bf16.gmra.mxu0 %v780
    %v816 = vpop.f32.mrf.mxu0
    %v817 = vadd.f32 %v220, %v816
    %v818 = vpop.f32.mrf.mxu0
    %v819 = vpop.f32.mrf.mxu0
    %v820 = vpop.f32.mrf.mxu0
    %821 = vdwg.mxu0
    %v822 = vunpack.c.l.b16 %v538
    %v823 = vpack.c.b16 %v822, %v822
    %824 = vrot.lane.b32.xlu0 %v823, 64
    %v825 = vpop.permute.xlu0 %824
    %v827 = vsel %vm232, %v525, 0
    %v830 = vsel %vm232, %v825, 0
    %832 = vmatprep.subr.bf16.mxu0 0
    %833 = vmatpush1.bf16.xpose.msra.mxu0 0
    %834 = vmatprep.subr.bf16.mxu0 0
    %835 = vmatpush1.bf16.xpose.msra.mxu0 0
    %836 = vmatprep.subr.bf16.mxu0 0
    %837 = vmatpush1.bf16.xpose.msra.mxu0 0
    %838 = vmatprep.subr.bf16.mxu0 0
    %839 = vmatpush1.bf16.xpose.msra.mxu0 0
    %840 = vmatprep.subr.bf16.mxu0 0
    %841 = vmatpush1.bf16.xpose.msra.mxu0 0
    %842 = vmatprep.subr.bf16.mxu0 0
    %843 = vmatpush1.bf16.xpose.msra.mxu0 0
    %844 = vmatprep.subr.bf16.mxu0 0
    %845 = vmatpush1.bf16.xpose.msra.mxu0 0
    %846 = vmatprep.subr.bf16.mxu0 0
    %847 = vmatpush1.bf16.xpose.msra.mxu0 %v830
    %848 = vmatprep.subr.bf16.mxu0 0
    %849 = vmatpush2.bf16.xpose.msra.mxu0 0
    %850 = vmatprep.subr.bf16.mxu0 0
    %851 = vmatpush2.bf16.xpose.msra.mxu0 0
    %852 = vmatprep.subr.bf16.mxu0 0
    %853 = vmatpush2.bf16.xpose.msra.mxu0 0
    %854 = vmatprep.subr.bf16.mxu0 0
    %855 = vmatpush2.bf16.xpose.msra.mxu0 0
    %856 = vmatprep.subr.bf16.mxu0 0
    %857 = vmatpush2.bf16.xpose.msra.mxu0 0
    %858 = vmatprep.subr.bf16.mxu0 0
    %859 = vmatpush2.bf16.xpose.msra.mxu0 0
    %860 = vmatprep.subr.bf16.mxu0 0
    %861 = vmatpush2.bf16.xpose.msra.mxu0 0
    %862 = vmatprep.subr.bf16.mxu0 0
    %863 = vmatpush2.bf16.xpose.msra.mxu0 0
    %864 = vmatprep.mubr.bf16.mxu0 0
    %865 = vmatmul.mubr.bf16.gmra.mxu0 %v827
    %v866 = vpop.f32.mrf.mxu0
    %v867 = vadd.f32 %v220, %v866
    %v868 = vpop.f32.mrf.mxu0
    %v869 = vpop.f32.mrf.mxu0
    %v870 = vpop.f32.mrf.mxu0
    %871 = vdwg.mxu0
    %v873 = vsel %vm232, %v529, 0
    %875 = vmatprep.subr.bf16.mxu0 0
    %876 = vmatpush1.bf16.xpose.msra.mxu0 0
    %877 = vmatprep.subr.bf16.mxu0 0
    %878 = vmatpush1.bf16.xpose.msra.mxu0 0
    %879 = vmatprep.subr.bf16.mxu0 0
    %880 = vmatpush1.bf16.xpose.msra.mxu0 0
    %881 = vmatprep.subr.bf16.mxu0 0
    %882 = vmatpush1.bf16.xpose.msra.mxu0 0
    %883 = vmatprep.subr.bf16.mxu0 0
    %884 = vmatpush1.bf16.xpose.msra.mxu0 0
    %885 = vmatprep.subr.bf16.mxu0 0
    %886 = vmatpush1.bf16.xpose.msra.mxu0 0
    %887 = vmatprep.subr.bf16.mxu0 0
    %888 = vmatpush1.bf16.xpose.msra.mxu0 0
    %889 = vmatprep.subr.bf16.mxu0 0
    %890 = vmatpush1.bf16.xpose.msra.mxu0 %v830
    %891 = vmatprep.subr.bf16.mxu0 0
    %892 = vmatpush2.bf16.xpose.msra.mxu0 0
    %893 = vmatprep.subr.bf16.mxu0 0
    %894 = vmatpush2.bf16.xpose.msra.mxu0 0
    %895 = vmatprep.subr.bf16.mxu0 0
    %896 = vmatpush2.bf16.xpose.msra.mxu0 0
    %897 = vmatprep.subr.bf16.mxu0 0
    %898 = vmatpush2.bf16.xpose.msra.mxu0 0
    %899 = vmatprep.subr.bf16.mxu0 0
    %900 = vmatpush2.bf16.xpose.msra.mxu0 0
    %901 = vmatprep.subr.bf16.mxu0 0
    %902 = vmatpush2.bf16.xpose.msra.mxu0 0
    %903 = vmatprep.subr.bf16.mxu0 0
    %904 = vmatpush2.bf16.xpose.msra.mxu0 0
    %905 = vmatprep.subr.bf16.mxu0 0
    %906 = vmatpush2.bf16.xpose.msra.mxu0 0
    %907 = vmatprep.mubr.bf16.mxu0 0
    %908 = vmatmul.mubr.bf16.gmra.mxu0 %v873
    %v909 = vpop.f32.mrf.mxu0
    %v910 = vadd.f32 %v220, %v909
    %v911 = vpop.f32.mrf.mxu0
    %v912 = vpop.f32.mrf.mxu0
    %v913 = vpop.f32.mrf.mxu0
    %914 = vdwg.mxu0
    %vm915 = vcmask 64512
    %v916 = vsel %vm915, %v590, -inf
    %917 = vmax.xlane.f32.xlu0 %v916
    %v918 = vpop.xlane.xlu0 %917
    %v919 = vsel %vm915, %v633, -inf
    %920 = vmax.xlane.f32.xlu0 %v919
    %v921 = vpop.xlane.xlu0 %920
    %v922 = vsel %vm915, %v683, -inf
    %923 = vmax.xlane.f32.xlu0 %v922
    %v924 = vpop.xlane.xlu0 %923
    %v925 = vsel %vm915, %v726, -inf
    %926 = vmax.xlane.f32.xlu0 %v925
    %v927 = vpop.xlane.xlu0 %926
    %v928 = vsel %vm915, %v774, -inf
    %929 = vmax.xlane.f32.xlu0 %v928
    %v930 = vpop.xlane.xlu0 %929
    %v931 = vsel %vm915, %v817, -inf
    %932 = vmax.xlane.f32.xlu0 %v931
    %v933 = vpop.xlane.xlu0 %932
    %v934 = vsel %vm915, %v867, -inf
    %935 = vmax.xlane.f32.xlu0 %v934
    %v936 = vpop.xlane.xlu0 %935
    %v937 = vsel %vm915, %v910, -inf
    %938 = vmax.xlane.f32.xlu0 %v937
    %v939 = vpop.xlane.xlu0 %938
    %v940 = vsub.f32 %v590, %v918
    %v941 = vsub.f32 %v633, %v921
    %v942 = vsub.f32 %v683, %v924
    %v943 = vsub.f32 %v726, %v927
    %v944 = vsub.f32 %v774, %v930
    %v945 = vsub.f32 %v817, %v933
    %v946 = vsub.f32 %v867, %v936
    %v947 = vsub.f32 %v910, %v939
    %v948 = vmul.f32 %v940, 1.442695
    %v949 = vpow.pop %v948
    %v950 = vmul.f32 %v941, 1.442695
    %v951 = vpow.pop %v950
    %v952 = vmul.f32 %v942, 1.442695
    %v953 = vpow.pop %v952
    %v954 = vmul.f32 %v943, 1.442695
    %v955 = vpow.pop %v954
    %v956 = vmul.f32 %v944, 1.442695
    %v957 = vpow.pop %v956
    %v958 = vmul.f32 %v945, 1.442695
    %v959 = vpow.pop %v958
    %v960 = vmul.f32 %v946, 1.442695
    %v961 = vpow.pop %v960
    %v962 = vmul.f32 %v947, 1.442695
    %v963 = vpow.pop %v962
    %v964 = vsel %vm915, %v949, 0.0
    %965 = vadd.xlane.f32.xlu0 %v964
    %v966 = vpop.xlane.xlu0 %965
    %v967 = vsel %vm915, %v951, 0.0
    %968 = vadd.xlane.f32.xlu0 %v967
    %v969 = vpop.xlane.xlu0 %968
    %v970 = vsel %vm915, %v953, 0.0
    %971 = vadd.xlane.f32.xlu0 %v970
    %v972 = vpop.xlane.xlu0 %971
    %v973 = vsel %vm915, %v955, 0.0
    %974 = vadd.xlane.f32.xlu0 %v973
    %v975 = vpop.xlane.xlu0 %974
    %v976 = vsel %vm915, %v957, 0.0
    %977 = vadd.xlane.f32.xlu0 %v976
    %v978 = vpop.xlane.xlu0 %977
    %v979 = vsel %vm915, %v959, 0.0
    %980 = vadd.xlane.f32.xlu0 %v979
    %v981 = vpop.xlane.xlu0 %980
    %v982 = vsel %vm915, %v961, 0.0
    %983 = vadd.xlane.f32.xlu0 %v982
    %v984 = vpop.xlane.xlu0 %983
    %v985 = vsel %vm915, %v963, 0.0
    %986 = vadd.xlane.f32.xlu0 %v985
    %v987 = vpop.xlane.xlu0 %986
    %v988 = vrcp.pop %v966
    %v989 = vrcp.pop %v969
    %v990 = vrcp.pop %v972
    %v991 = vrcp.pop %v975
    %v992 = vrcp.pop %v978
    %v993 = vrcp.pop %v981
    %v994 = vrcp.pop %v984
    %v995 = vrcp.pop %v987
    %v996 = vmul.f32 %v949, %v988
    %v997 = vmul.f32 %v951, %v989
    %v998 = vmul.f32 %v953, %v990
    %v999 = vmul.f32 %v955, %v991
    %v1000 = vmul.f32 %v957, %v992
    %v1001 = vmul.f32 %v959, %v993
    %v1002 = vmul.f32 %v961, %v994
    %v1003 = vmul.f32 %v963, %v995
    %v1004 = vpack.c.bf16 %v996, %v996
    %v1005 = vpack.c.bf16 %v997, %v997
    %v1006 = vpack.c.bf16 %v998, %v998
    %v1007 = vpack.c.bf16 %v999, %v999
    %v1008 = vpack.c.bf16 %v1000, %v1000
    %v1009 = vpack.c.bf16 %v1001, %v1001
    %v1010 = vpack.c.bf16 %v1002, %v1002
    %v1011 = vpack.c.bf16 %v1003, %v1003
    %1012 = vrot.lane.b32.xlu0 %v541, 32
    %v1013 = vpop.permute.xlu0 %1012
    %v1015 = vsel %vm915, %v1004, 0
    %vm1017 = vcmask 1043456
    %v1019 = vsel %vm1017, %v1013, 0
    %1021 = vmatprep.subr.bf16.mxu0 0
    %1022 = vmatpush1.bf16.msra.mxu0 0
    %1023 = vmatprep.subr.bf16.mxu0 0
    %1024 = vmatpush1.bf16.msra.mxu0 0
    %1025 = vmatprep.subr.bf16.mxu0 0
    %1026 = vmatpush1.bf16.msra.mxu0 0
    %1027 = vmatprep.subr.bf16.mxu0 0
    %1028 = vmatpush1.bf16.msra.mxu0 0
    %1029 = vmatprep.subr.bf16.mxu0 0
    %1030 = vmatpush1.bf16.msra.mxu0 0
    %1031 = vmatprep.subr.bf16.mxu0 0
    %1032 = vmatpush1.bf16.msra.mxu0 0
    %1033 = vmatprep.subr.bf16.mxu0 0
    %1034 = vmatpush1.bf16.msra.mxu0 0
    %1035 = vmatprep.subr.bf16.mxu0 0
    %1036 = vmatpush1.bf16.msra.mxu0 %v1019
    %1037 = vmatprep.subr.bf16.mxu0 0
    %1038 = vmatpush2.bf16.msra.mxu0 0
    %1039 = vmatprep.subr.bf16.mxu0 0
    %1040 = vmatpush2.bf16.msra.mxu0 0
    %1041 = vmatprep.subr.bf16.mxu0 0
    %1042 = vmatpush2.bf16.msra.mxu0 0
    %1043 = vmatprep.subr.bf16.mxu0 0
    %1044 = vmatpush2.bf16.msra.mxu0 0
    %1045 = vmatprep.subr.bf16.mxu0 0
    %1046 = vmatpush2.bf16.msra.mxu0 0
    %1047 = vmatprep.subr.bf16.mxu0 0
    %1048 = vmatpush2.bf16.msra.mxu0 0
    %1049 = vmatprep.subr.bf16.mxu0 0
    %1050 = vmatpush2.bf16.msra.mxu0 0
    %1051 = vmatprep.subr.bf16.mxu0 0
    %1052 = vmatpush2.bf16.msra.mxu0 0
    %1053 = vmatprep.mubr.bf16.mxu0 0
    %1054 = vmatmul.mubr.bf16.gmra.mxu0 %v1015
    %v1055 = vpop.f32.mrf.mxu0
    %v1056 = vadd.f32 0.0, %v1055
    %v1057 = vpop.f32.mrf.mxu0
    %v1058 = vpop.f32.mrf.mxu0
    %v1059 = vpop.f32.mrf.mxu0
    %1060 = vdwg.mxu0
    %v1062 = vsel %vm915, %v1005, 0
    %1064 = vmatprep.subr.bf16.mxu0 0
    %1065 = vmatpush1.bf16.msra.mxu0 0
    %1066 = vmatprep.subr.bf16.mxu0 0
    %1067 = vmatpush1.bf16.msra.mxu0 0
    %1068 = vmatprep.subr.bf16.mxu0 0
    %1069 = vmatpush1.bf16.msra.mxu0 0
    %1070 = vmatprep.subr.bf16.mxu0 0
    %1071 = vmatpush1.bf16.msra.mxu0 0
    %1072 = vmatprep.subr.bf16.mxu0 0
    %1073 = vmatpush1.bf16.msra.mxu0 0
    %1074 = vmatprep.subr.bf16.mxu0 0
    %1075 = vmatpush1.bf16.msra.mxu0 0
    %1076 = vmatprep.subr.bf16.mxu0 0
    %1077 = vmatpush1.bf16.msra.mxu0 0
    %1078 = vmatprep.subr.bf16.mxu0 0
    %1079 = vmatpush1.bf16.msra.mxu0 %v1019
    %1080 = vmatprep.subr.bf16.mxu0 0
    %1081 = vmatpush2.bf16.msra.mxu0 0
    %1082 = vmatprep.subr.bf16.mxu0 0
    %1083 = vmatpush2.bf16.msra.mxu0 0
    %1084 = vmatprep.subr.bf16.mxu0 0
    %1085 = vmatpush2.bf16.msra.mxu0 0
    %1086 = vmatprep.subr.bf16.mxu0 0
    %1087 = vmatpush2.bf16.msra.mxu0 0
    %1088 = vmatprep.subr.bf16.mxu0 0
    %1089 = vmatpush2.bf16.msra.mxu0 0
    %1090 = vmatprep.subr.bf16.mxu0 0
    %1091 = vmatpush2.bf16.msra.mxu0 0
    %1092 = vmatprep.subr.bf16.mxu0 0
    %1093 = vmatpush2.bf16.msra.mxu0 0
    %1094 = vmatprep.subr.bf16.mxu0 0
    %1095 = vmatpush2.bf16.msra.mxu0 0
    %1096 = vmatprep.mubr.bf16.mxu0 0
    %1097 = vmatmul.mubr.bf16.gmra.mxu0 %v1062
    %v1098 = vpop.f32.mrf.mxu0
    %v1099 = vadd.f32 0.0, %v1098
    %v1100 = vpop.f32.mrf.mxu0
    %v1101 = vpop.f32.mrf.mxu0
    %v1102 = vpop.f32.mrf.mxu0
    %1103 = vdwg.mxu0
    %v1104 = vunpack.c.l.b16 %v544
    %v1105 = vpack.c.b16 %v1104, %v1104
    %1106 = vrot.lane.b32.xlu0 %v1105, 32
    %v1107 = vpop.permute.xlu0 %1106
    %v1109 = vsel %vm915, %v1006, 0
    %v1112 = vsel %vm1017, %v1107, 0
    %1114 = vmatprep.subr.bf16.mxu0 0
    %1115 = vmatpush1.bf16.msra.mxu0 0
    %1116 = vmatprep.subr.bf16.mxu0 0
    %1117 = vmatpush1.bf16.msra.mxu0 0
    %1118 = vmatprep.subr.bf16.mxu0 0
    %1119 = vmatpush1.bf16.msra.mxu0 0
    %1120 = vmatprep.subr.bf16.mxu0 0
    %1121 = vmatpush1.bf16.msra.mxu0 0
    %1122 = vmatprep.subr.bf16.mxu0 0
    %1123 = vmatpush1.bf16.msra.mxu0 0
    %1124 = vmatprep.subr.bf16.mxu0 0
    %1125 = vmatpush1.bf16.msra.mxu0 0
    %1126 = vmatprep.subr.bf16.mxu0 0
    %1127 = vmatpush1.bf16.msra.mxu0 0
    %1128 = vmatprep.subr.bf16.mxu0 0
    %1129 = vmatpush1.bf16.msra.mxu0 %v1112
    %1130 = vmatprep.subr.bf16.mxu0 0
    %1131 = vmatpush2.bf16.msra.mxu0 0
    %1132 = vmatprep.subr.bf16.mxu0 0
    %1133 = vmatpush2.bf16.msra.mxu0 0
    %1134 = vmatprep.subr.bf16.mxu0 0
    %1135 = vmatpush2.bf16.msra.mxu0 0
    %1136 = vmatprep.subr.bf16.mxu0 0
    %1137 = vmatpush2.bf16.msra.mxu0 0
    %1138 = vmatprep.subr.bf16.mxu0 0
    %1139 = vmatpush2.bf16.msra.mxu0 0
    %1140 = vmatprep.subr.bf16.mxu0 0
    %1141 = vmatpush2.bf16.msra.mxu0 0
    %1142 = vmatprep.subr.bf16.mxu0 0
    %1143 = vmatpush2.bf16.msra.mxu0 0
    %1144 = vmatprep.subr.bf16.mxu0 0
    %1145 = vmatpush2.bf16.msra.mxu0 0
    %1146 = vmatprep.mubr.bf16.mxu0 0
    %1147 = vmatmul.mubr.bf16.gmra.mxu0 %v1109
    %v1148 = vpop.f32.mrf.mxu0
    %v1149 = vadd.f32 0.0, %v1148
    %v1150 = vpop.f32.mrf.mxu0
    %v1151 = vpop.f32.mrf.mxu0
    %v1152 = vpop.f32.mrf.mxu0
    %1153 = vdwg.mxu0
    %v1155 = vsel %vm915, %v1007, 0
    %1157 = vmatprep.subr.bf16.mxu0 0
    %1158 = vmatpush1.bf16.msra.mxu0 0
    %1159 = vmatprep.subr.bf16.mxu0 0
    %1160 = vmatpush1.bf16.msra.mxu0 0
    %1161 = vmatprep.subr.bf16.mxu0 0
    %1162 = vmatpush1.bf16.msra.mxu0 0
    %1163 = vmatprep.subr.bf16.mxu0 0
    %1164 = vmatpush1.bf16.msra.mxu0 0
    %1165 = vmatprep.subr.bf16.mxu0 0
    %1166 = vmatpush1.bf16.msra.mxu0 0
    %1167 = vmatprep.subr.bf16.mxu0 0
    %1168 = vmatpush1.bf16.msra.mxu0 0
    %1169 = vmatprep.subr.bf16.mxu0 0
    %1170 = vmatpush1.bf16.msra.mxu0 0
    %1171 = vmatprep.subr.bf16.mxu0 0
    %1172 = vmatpush1.bf16.msra.mxu0 %v1112
    %1173 = vmatprep.subr.bf16.mxu0 0
    %1174 = vmatpush2.bf16.msra.mxu0 0
    %1175 = vmatprep.subr.bf16.mxu0 0
    %1176 = vmatpush2.bf16.msra.mxu0 0
    %1177 = vmatprep.subr.bf16.mxu0 0
    %1178 = vmatpush2.bf16.msra.mxu0 0
    %1179 = vmatprep.subr.bf16.mxu0 0
    %1180 = vmatpush2.bf16.msra.mxu0 0
    %1181 = vmatprep.subr.bf16.mxu0 0
    %1182 = vmatpush2.bf16.msra.mxu0 0
    %1183 = vmatprep.subr.bf16.mxu0 0
    %1184 = vmatpush2.bf16.msra.mxu0 0
    %1185 = vmatprep.subr.bf16.mxu0 0
    %1186 = vmatpush2.bf16.msra.mxu0 0
    %1187 = vmatprep.subr.bf16.mxu0 0
    %1188 = vmatpush2.bf16.msra.mxu0 0
    %1189 = vmatprep.mubr.bf16.mxu0 0
    %1190 = vmatmul.mubr.bf16.gmra.mxu0 %v1155
    %v1191 = vpop.f32.mrf.mxu0
    %v1192 = vadd.f32 0.0, %v1191
    %v1193 = vpop.f32.mrf.mxu0
    %v1194 = vpop.f32.mrf.mxu0
    %v1195 = vpop.f32.mrf.mxu0
    %1196 = vdwg.mxu0
    %1197 = vrot.lane.b32.xlu0 %v542, 32
    %v1198 = vpop.permute.xlu0 %1197
    %v1200 = vsel %vm915, %v1008, 0
    %v1203 = vsel %vm1017, %v1198, 0
    %1205 = vmatprep.subr.bf16.mxu0 0
    %1206 = vmatpush1.bf16.msra.mxu0 0
    %1207 = vmatprep.subr.bf16.mxu0 0
    %1208 = vmatpush1.bf16.msra.mxu0 0
    %1209 = vmatprep.subr.bf16.mxu0 0
    %1210 = vmatpush1.bf16.msra.mxu0 0
    %1211 = vmatprep.subr.bf16.mxu0 0
    %1212 = vmatpush1.bf16.msra.mxu0 0
    %1213 = vmatprep.subr.bf16.mxu0 0
    %1214 = vmatpush1.bf16.msra.mxu0 0
    %1215 = vmatprep.subr.bf16.mxu0 0
    %1216 = vmatpush1.bf16.msra.mxu0 0
    %1217 = vmatprep.subr.bf16.mxu0 0
    %1218 = vmatpush1.bf16.msra.mxu0 0
    %1219 = vmatprep.subr.bf16.mxu0 0
    %1220 = vmatpush1.bf16.msra.mxu0 %v1203
    %1221 = vmatprep.subr.bf16.mxu0 0
    %1222 = vmatpush2.bf16.msra.mxu0 0
    %1223 = vmatprep.subr.bf16.mxu0 0
    %1224 = vmatpush2.bf16.msra.mxu0 0
    %1225 = vmatprep.subr.bf16.mxu0 0
    %1226 = vmatpush2.bf16.msra.mxu0 0
    %1227 = vmatprep.subr.bf16.mxu0 0
    %1228 = vmatpush2.bf16.msra.mxu0 0
    %1229 = vmatprep.subr.bf16.mxu0 0
    %1230 = vmatpush2.bf16.msra.mxu0 0
    %1231 = vmatprep.subr.bf16.mxu0 0
    %1232 = vmatpush2.bf16.msra.mxu0 0
    %1233 = vmatprep.subr.bf16.mxu0 0
    %1234 = vmatpush2.bf16.msra.mxu0 0
    %1235 = vmatprep.subr.bf16.mxu0 0
    %1236 = vmatpush2.bf16.msra.mxu0 0
    %1237 = vmatprep.mubr.bf16.mxu0 0
    %1238 = vmatmul.mubr.bf16.gmra.mxu0 %v1200
    %v1239 = vpop.f32.mrf.mxu0
    %v1240 = vadd.f32 0.0, %v1239
    %v1241 = vpop.f32.mrf.mxu0
    %v1242 = vpop.f32.mrf.mxu0
    %v1243 = vpop.f32.mrf.mxu0
    %1244 = vdwg.mxu0
    %v1246 = vsel %vm915, %v1009, 0
    %1248 = vmatprep.subr.bf16.mxu0 0
    %1249 = vmatpush1.bf16.msra.mxu0 0
    %1250 = vmatprep.subr.bf16.mxu0 0
    %1251 = vmatpush1.bf16.msra.mxu0 0
    %1252 = vmatprep.subr.bf16.mxu0 0
    %1253 = vmatpush1.bf16.msra.mxu0 0
    %1254 = vmatprep.subr.bf16.mxu0 0
    %1255 = vmatpush1.bf16.msra.mxu0 0
    %1256 = vmatprep.subr.bf16.mxu0 0
    %1257 = vmatpush1.bf16.msra.mxu0 0
    %1258 = vmatprep.subr.bf16.mxu0 0
    %1259 = vmatpush1.bf16.msra.mxu0 0
    %1260 = vmatprep.subr.bf16.mxu0 0
    %1261 = vmatpush1.bf16.msra.mxu0 0
    %1262 = vmatprep.subr.bf16.mxu0 0
    %1263 = vmatpush1.bf16.msra.mxu0 %v1203
    %1264 = vmatprep.subr.bf16.mxu0 0
    %1265 = vmatpush2.bf16.msra.mxu0 0
    %1266 = vmatprep.subr.bf16.mxu0 0
    %1267 = vmatpush2.bf16.msra.mxu0 0
    %1268 = vmatprep.subr.bf16.mxu0 0
    %1269 = vmatpush2.bf16.msra.mxu0 0
    %1270 = vmatprep.subr.bf16.mxu0 0
    %1271 = vmatpush2.bf16.msra.mxu0 0
    %1272 = vmatprep.subr.bf16.mxu0 0
    %1273 = vmatpush2.bf16.msra.mxu0 0
    %1274 = vmatprep.subr.bf16.mxu0 0
    %1275 = vmatpush2.bf16.msra.mxu0 0
    %1276 = vmatprep.subr.bf16.mxu0 0
    %1277 = vmatpush2.bf16.msra.mxu0 0
    %1278 = vmatprep.subr.bf16.mxu0 0
    %1279 = vmatpush2.bf16.msra.mxu0 0
    %1280 = vmatprep.mubr.bf16.mxu0 0
    %1281 = vmatmul.mubr.bf16.gmra.mxu0 %v1246
    %v1282 = vpop.f32.mrf.mxu0
    %v1283 = vadd.f32 0.0, %v1282
    %v1284 = vpop.f32.mrf.mxu0
    %v1285 = vpop.f32.mrf.mxu0
    %v1286 = vpop.f32.mrf.mxu0
    %1287 = vdwg.mxu0
    %v1288 = vunpack.c.l.b16 %v546
    %v1289 = vpack.c.b16 %v1288, %v1288
    %1290 = vrot.lane.b32.xlu0 %v1289, 32
    %v1291 = vpop.permute.xlu0 %1290
    %v1293 = vsel %vm915, %v1010, 0
    %v1296 = vsel %vm1017, %v1291, 0
    %1298 = vmatprep.subr.bf16.mxu0 0
    %1299 = vmatpush1.bf16.msra.mxu0 0
    %1300 = vmatprep.subr.bf16.mxu0 0
    %1301 = vmatpush1.bf16.msra.mxu0 0
    %1302 = vmatprep.subr.bf16.mxu0 0
    %1303 = vmatpush1.bf16.msra.mxu0 0
    %1304 = vmatprep.subr.bf16.mxu0 0
    %1305 = vmatpush1.bf16.msra.mxu0 0
    %1306 = vmatprep.subr.bf16.mxu0 0
    %1307 = vmatpush1.bf16.msra.mxu0 0
    %1308 = vmatprep.subr.bf16.mxu0 0
    %1309 = vmatpush1.bf16.msra.mxu0 0
    %1310 = vmatprep.subr.bf16.mxu0 0
    %1311 = vmatpush1.bf16.msra.mxu0 0
    %1312 = vmatprep.subr.bf16.mxu0 0
    %1313 = vmatpush1.bf16.msra.mxu0 %v1296
    %1314 = vmatprep.subr.bf16.mxu0 0
    %1315 = vmatpush2.bf16.msra.mxu0 0
    %1316 = vmatprep.subr.bf16.mxu0 0
    %1317 = vmatpush2.bf16.msra.mxu0 0
    %1318 = vmatprep.subr.bf16.mxu0 0
    %1319 = vmatpush2.bf16.msra.mxu0 0
    %1320 = vmatprep.subr.bf16.mxu0 0
    %1321 = vmatpush2.bf16.msra.mxu0 0
    %1322 = vmatprep.subr.bf16.mxu0 0
    %1323 = vmatpush2.bf16.msra.mxu0 0
    %1324 = vmatprep.subr.bf16.mxu0 0
    %1325 = vmatpush2.bf16.msra.mxu0 0
    %1326 = vmatprep.subr.bf16.mxu0 0
    %1327 = vmatpush2.bf16.msra.mxu0 0
    %1328 = vmatprep.subr.bf16.mxu0 0
    %1329 = vmatpush2.bf16.msra.mxu0 0
    %1330 = vmatprep.mubr.bf16.mxu0 0
    %1331 = vmatmul.mubr.bf16.gmra.mxu0 %v1293
    %v1332 = vpop.f32.mrf.mxu0
    %v1333 = vadd.f32 0.0, %v1332
    %v1334 = vpop.f32.mrf.mxu0
    %v1335 = vpop.f32.mrf.mxu0
    %v1336 = vpop.f32.mrf.mxu0
    %1337 = vdwg.mxu0
    %v1339 = vsel %vm915, %v1011, 0
    %1341 = vmatprep.subr.bf16.mxu0 0
    %1342 = vmatpush1.bf16.msra.mxu0 0
    %1343 = vmatprep.subr.bf16.mxu0 0
    %1344 = vmatpush1.bf16.msra.mxu0 0
    %1345 = vmatprep.subr.bf16.mxu0 0
    %1346 = vmatpush1.bf16.msra.mxu0 0
    %1347 = vmatprep.subr.bf16.mxu0 0
    %1348 = vmatpush1.bf16.msra.mxu0 0
    %1349 = vmatprep.subr.bf16.mxu0 0
    %1350 = vmatpush1.bf16.msra.mxu0 0
    %1351 = vmatprep.subr.bf16.mxu0 0
    %1352 = vmatpush1.bf16.msra.mxu0 0
    %1353 = vmatprep.subr.bf16.mxu0 0
    %1354 = vmatpush1.bf16.msra.mxu0 0
    %1355 = vmatprep.subr.bf16.mxu0 0
    %1356 = vmatpush1.bf16.msra.mxu0 %v1296
    %1357 = vmatprep.subr.bf16.mxu0 0
    %1358 = vmatpush2.bf16.msra.mxu0 0
    %1359 = vmatprep.subr.bf16.mxu0 0
    %1360 = vmatpush2.bf16.msra.mxu0 0
    %1361 = vmatprep.subr.bf16.mxu0 0
    %1362 = vmatpush2.bf16.msra.mxu0 0
    %1363 = vmatprep.subr.bf16.mxu0 0
    %1364 = vmatpush2.bf16.msra.mxu0 0
    %1365 = vmatprep.subr.bf16.mxu0 0
    %1366 = vmatpush2.bf16.msra.mxu0 0
    %1367 = vmatprep.subr.bf16.mxu0 0
    %1368 = vmatpush2.bf16.msra.mxu0 0
    %1369 = vmatprep.subr.bf16.mxu0 0
    %1370 = vmatpush2.bf16.msra.mxu0 0
    %1371 = vmatprep.subr.bf16.mxu0 0
    %1372 = vmatpush2.bf16.msra.mxu0 0
    %1373 = vmatprep.mubr.bf16.mxu0 0
    %1374 = vmatmul.mubr.bf16.gmra.mxu0 %v1339
    %v1375 = vpop.f32.mrf.mxu0
    %v1376 = vadd.f32 0.0, %v1375
    %v1377 = vpop.f32.mrf.mxu0
    %v1378 = vpop.f32.mrf.mxu0
    %v1379 = vpop.f32.mrf.mxu0
    %1380 = vdwg.mxu0
    %1383 = vrot.lane.b32.xlu0 %v1099, 16
    %v1384 = vpop.permute.xlu0 %1383
    %1385 = vrot.lane.b32.xlu0 %v1283, 16
    %v1386 = vpop.permute.xlu0 %1385
    %1391 = vrot.lane.b32.xlu0 %v1149, 32
    %v1392 = vpop.permute.xlu0 %1391
    %1393 = vrot.lane.b32.xlu0 %v1333, 32
    %v1394 = vpop.permute.xlu0 %1393
    %1399 = vrot.lane.b32.xlu0 %v1192, 48
    %v1400 = vpop.permute.xlu0 %1399
    %1401 = vrot.lane.b32.xlu0 %v1376, 48
    %v1402 = vpop.permute.xlu0 %1401
    %v1405 = vsel %vm232, %v1056, %v1384
    %v1406 = vsel %vm232, %v1240, %v1386
    %v1407 = vsel %vm234, %v1405, %v1392
    %v1408 = vsel %vm234, %v1406, %v1394
    %v1409 = vsel %vm236, %v1407, %v1400
    %v1410 = vsel %vm236, %v1408, %v1402
    %v1411 = vpack.c.bf16 %v1410, %v1409
    %v1412 = vld [vmem:[%s10] sm:$0xf]
    %v1413 = vld [vmem:[%s10 + $0x4] sm:$0xf]
    %v1414 = vld [vmem:[%s10 + $0x8] sm:$0xf]
    %v1415 = vld [vmem:[%s10 + $0xc] sm:$0xf]
    %v1416 = vld [vmem:[%s10 + $0x10] sm:$0xf]
    %v1417 = vld [vmem:[%s10 + $0x14] sm:$0xf]
    %v1418 = vld [vmem:[%s10 + $0x18] sm:$0xf]
    %v1419 = vld [vmem:[%s10 + $0x1c] sm:$0xf]
    %v1428 = vunpack.c.l.b16 %v1412
    %v1429 = vunpack.c.l.b16 %v1413
    %v1430 = vunpack.c.l.b16 %v1414
    %v1431 = vunpack.c.l.b16 %v1415
    %v1432 = vunpack.c.l.b16 %v1416
    %v1433 = vunpack.c.l.b16 %v1417
    %v1434 = vunpack.c.l.b16 %v1418
    %v1435 = vunpack.c.l.b16 %v1419
    %v1436 = vpack.c.b16 %v1429, %v1428
    %v1437 = vpack.c.b16 %v1431, %v1430
    %v1438 = vpack.c.b16 %v1433, %v1432
    %v1439 = vpack.c.b16 %v1435, %v1434
    %v1445 = vsel %vm265, %v1411, 0
    %1447 = vmatprep.subr.bf16.mxu0 0
    %1448 = vmatpush1.bf16.msra.mxu0 0
    %1449 = vmatprep.subr.bf16.mxu0 0
    %1450 = vmatpush1.bf16.msra.mxu0 0
    %1451 = vmatprep.subr.bf16.mxu0 0
    %1452 = vmatpush1.bf16.msra.mxu0 0
    %1453 = vmatprep.subr.bf16.mxu0 0
    %1454 = vmatpush1.bf16.msra.mxu0 0
    %1455 = vmatprep.subr.bf16.mxu0 0
    %1456 = vmatpush1.bf16.msra.mxu0 %v1439
    %1457 = vmatprep.subr.bf16.mxu0 0
    %1458 = vmatpush1.bf16.msra.mxu0 %v1438
    %1459 = vmatprep.subr.bf16.mxu0 0
    %1460 = vmatpush1.bf16.msra.mxu0 %v1437
    %1461 = vmatprep.subr.bf16.mxu0 0
    %1462 = vmatpush1.bf16.msra.mxu0 %v1436
    %1463 = vmatprep.subr.bf16.mxu0 0
    %1464 = vmatpush2.bf16.msra.mxu0 0
    %1465 = vmatprep.subr.bf16.mxu0 0
    %1466 = vmatpush2.bf16.msra.mxu0 0
    %1467 = vmatprep.subr.bf16.mxu0 0
    %1468 = vmatpush2.bf16.msra.mxu0 0
    %1469 = vmatprep.subr.bf16.mxu0 0
    %1470 = vmatpush2.bf16.msra.mxu0 0
    %1471 = vmatprep.subr.bf16.mxu0 0
    %1472 = vmatpush2.bf16.msra.mxu0 0
    %1473 = vmatprep.subr.bf16.mxu0 0
    %1474 = vmatpush2.bf16.msra.mxu0 0
    %1475 = vmatprep.subr.bf16.mxu0 0
    %1476 = vmatpush2.bf16.msra.mxu0 0
    %1477 = vmatprep.subr.bf16.mxu0 0
    %1478 = vmatpush2.bf16.msra.mxu0 0
    %1479 = vmatprep.mubr.bf16.mxu0 0
    %1480 = vmatmul.mubr.bf16.gmra.mxu0 %v1445
    %v1481 = vpop.f32.mrf.mxu0
    %v1482 = vadd.f32 0.0, %v1481
    %v1483 = vpop.f32.mrf.mxu0
    %v1484 = vpop.f32.mrf.mxu0
    %v1485 = vadd.f32 0.0, %v1484
    %v1486 = vpop.f32.mrf.mxu0
    %1487 = vdwg.mxu0
    %v1488 = vadd.f32 %v261, %v1482
    %v1489 = vadd.f32 %v262, %v1485
    %v1490 = vpack.c.bf16 %v1489, %v1488
    %v1491 = vld [vmem:[%s11] sm:$0x1]
    %v1492 = vunpack.c.l.bf16 %v1490
    %v1493 = vunpack.c.h.bf16 %v1490
    %v1494 = vmul.f32 %v1492, %v1492
    %v1495 = vmul.f32 %v1493, %v1493
    %v1496 = vsel %vm265, %v1494, 0.0
    %1497 = vadd.xlane.f32.xlu0 %v1496
    %v1498 = vpop.xlane.xlu0 %1497
    %v1499 = vsel %vm265, %v1495, 0.0
    %1500 = vadd.xlane.f32.xlu0 %v1499
    %v1501 = vpop.xlane.xlu0 %1500
    %v1502 = vmul.f32 %v1498, %v272
    %v1503 = vmul.f32 %v1501, %v272
    %v1504 = vadd.f32 %v1502, 1e-06
    %v1505 = vadd.f32 %v1503, 1e-06
    %v1506 = vrsqrt.pop %v1504
    %v1507 = vrsqrt.pop %v1505
    %v1508 = vmul.f32 %v1492, %v1506
    %v1509 = vmul.f32 %v1493, %v1507
    %v1510 = vunpack.c.l.bf16 %v1491
    %v1511 = vlaneseq
    %v1512 = vshrl.u32 %v1511, 7
    %v1513 = vsub.s32 0, %v1512
    %v1514 = vrot.slane %v1510, %v1513
    %v1515 = vmul.f32 %v1508, %v1514
    %v1516 = vmul.f32 %v1509, %v1514
    %v1517 = vpack.c.bf16 %v1516, %v1515
    %v1518 = vld [vmem:[%s12] sm:$0xff]
    %v1519 = vld [vmem:[%s12 + $0x8] sm:$0xff]
    %v1520 = vld [vmem:[%s12 + $0x10] sm:$0xff]
    %v1521 = vld [vmem:[%s12 + $0x18] sm:$0xff]
    %v1522 = vld [vmem:[%s12 + $0x20] sm:$0xff]
    %v1523 = vld [vmem:[%s12 + $0x28] sm:$0xff]
    %v1524 = vld [vmem:[%s12 + $0x30] sm:$0xff]
    %v1525 = vld [vmem:[%s12 + $0x38] sm:$0xff]
    %v1534 = vunpack.c.l.b16 %v1518
    %v1535 = vunpack.c.h.b16 %v1518
    %v1536 = vunpack.c.l.b16 %v1519
    %v1537 = vunpack.c.h.b16 %v1519
    %v1538 = vunpack.c.l.b16 %v1520
    %v1539 = vunpack.c.h.b16 %v1520
    %v1540 = vunpack.c.l.b16 %v1521
    %v1541 = vunpack.c.h.b16 %v1521
    %v1542 = vunpack.c.l.b16 %v1522
    %v1543 = vunpack.c.h.b16 %v1522
    %v1544 = vunpack.c.l.b16 %v1523
    %v1545 = vunpack.c.h.b16 %v1523
    %v1546 = vunpack.c.l.b16 %v1524
    %v1547 = vunpack.c.h.b16 %v1524
    %v1548 = vunpack.c.l.b16 %v1525
    %v1549 = vunpack.c.h.b16 %v1525
    %v1550 = vpack.c.b16 %v1536, %v1534
    %v1551 = vpack.c.b16 %v1537, %v1535
    %v1552 = vpack.c.b16 %v1540, %v1538
    %v1553 = vpack.c.b16 %v1541, %v1539
    %v1554 = vpack.c.b16 %v1544, %v1542
    %v1555 = vpack.c.b16 %v1545, %v1543
    %v1556 = vpack.c.b16 %v1548, %v1546
    %v1557 = vpack.c.b16 %v1549, %v1547
    %v1567 = vsel %vm265, %v1517, 0
    %1569 = vmatprep.subr.bf16.mxu0 0
    %1570 = vmatpush1.bf16.msra.mxu0 0
    %1571 = vmatprep.subr.bf16.mxu0 0
    %1572 = vmatpush1.bf16.msra.mxu0 0
    %1573 = vmatprep.subr.bf16.mxu0 0
    %1574 = vmatpush1.bf16.msra.mxu0 0
    %1575 = vmatprep.subr.bf16.mxu0 0
    %1576 = vmatpush1.bf16.msra.mxu0 0
    %1577 = vmatprep.subr.bf16.mxu0 %v1557
    %1578 = vmatpush1.bf16.msra.mxu0 %v1556
    %1579 = vmatprep.subr.bf16.mxu0 %v1555
    %1580 = vmatpush1.bf16.msra.mxu0 %v1554
    %1581 = vmatprep.subr.bf16.mxu0 %v1553
    %1582 = vmatpush1.bf16.msra.mxu0 %v1552
    %1583 = vmatprep.subr.bf16.mxu0 %v1551
    %1584 = vmatpush1.bf16.msra.mxu0 %v1550
    %1585 = vmatprep.subr.bf16.mxu0 0
    %1586 = vmatpush2.bf16.msra.mxu0 0
    %1587 = vmatprep.subr.bf16.mxu0 0
    %1588 = vmatpush2.bf16.msra.mxu0 0
    %1589 = vmatprep.subr.bf16.mxu0 0
    %1590 = vmatpush2.bf16.msra.mxu0 0
    %1591 = vmatprep.subr.bf16.mxu0 0
    %1592 = vmatpush2.bf16.msra.mxu0 0
    %1593 = vmatprep.subr.bf16.mxu0 0
    %1594 = vmatpush2.bf16.msra.mxu0 0
    %1595 = vmatprep.subr.bf16.mxu0 0
    %1596 = vmatpush2.bf16.msra.mxu0 0
    %1597 = vmatprep.subr.bf16.mxu0 0
    %1598 = vmatpush2.bf16.msra.mxu0 0
    %1599 = vmatprep.subr.bf16.mxu0 0
    %1600 = vmatpush2.bf16.msra.mxu0 0
    %1601 = vmatprep.mubr.bf16.mxu0 0
    %1602 = vmatmul.mubr.bf16.gmra.mxu0 %v1567
    %v1603 = vpop.f32.mrf.mxu0
    %v1604 = vadd.f32 0.0, %v1603
    %v1605 = vpop.f32.mrf.mxu0
    %v1606 = vadd.f32 0.0, %v1605
    %v1607 = vpop.f32.mrf.mxu0
    %v1608 = vadd.f32 0.0, %v1607
    %v1609 = vpop.f32.mrf.mxu0
    %v1610 = vadd.f32 0.0, %v1609
    %1611 = vdwg.mxu0
    %v1612 = vxor.u32 %v1604, 2147483648
    %v1613 = vxor.u32 %v1608, 2147483648
    %v1614 = vmul.f32 %v1612, 1.442695
    %v1615 = vpow.pop %v1614
    %v1616 = vmul.f32 %v1613, 1.442695
    %v1617 = vpow.pop %v1616
    %v1618 = vadd.f32 %v1615, 1.0
    %v1619 = vadd.f32 %v1617, 1.0
    %v1620 = vrcp.pop %v1618
    %v1621 = vmul.f32 1.0, %v1620
    %v1622 = vrcp.pop %v1619
    %v1623 = vmul.f32 1.0, %v1622
    %v1624 = vmul.f32 %v1604, %v1621
    %v1625 = vmul.f32 %v1608, %v1623
    %v1626 = vmul.f32 %v1624, %v1606
    %v1627 = vmul.f32 %v1625, %v1610
    %v1628 = vpack.c.bf16 %v1627, %v1626
    %v1629 = vld [vmem:[%s13] sm:$0xf]
    %v1630 = vld [vmem:[%s13 + $0x4] sm:$0xf]
    %v1631 = vld [vmem:[%s13 + $0x8] sm:$0xf]
    %v1632 = vld [vmem:[%s13 + $0xc] sm:$0xf]
    %v1633 = vld [vmem:[%s13 + $0x10] sm:$0xf]
    %v1634 = vld [vmem:[%s13 + $0x14] sm:$0xf]
    %v1635 = vld [vmem:[%s13 + $0x18] sm:$0xf]
    %v1636 = vld [vmem:[%s13 + $0x1c] sm:$0xf]
    %v1637 = vld [vmem:[%s13 + $0x20] sm:$0xf]
    %v1638 = vld [vmem:[%s13 + $0x24] sm:$0xf]
    %v1639 = vld [vmem:[%s13 + $0x28] sm:$0xf]
    %v1640 = vld [vmem:[%s13 + $0x2c] sm:$0xf]
    %v1641 = vld [vmem:[%s13 + $0x30] sm:$0xf]
    %v1642 = vld [vmem:[%s13 + $0x34] sm:$0xf]
    %v1643 = vld [vmem:[%s13 + $0x38] sm:$0xf]
    %v1644 = vld [vmem:[%s13 + $0x3c] sm:$0xf]
    %v1661 = vunpack.c.l.b16 %v1629
    %v1662 = vunpack.c.l.b16 %v1630
    %v1663 = vunpack.c.l.b16 %v1631
    %v1664 = vunpack.c.l.b16 %v1632
    %v1665 = vunpack.c.l.b16 %v1633
    %v1666 = vunpack.c.l.b16 %v1634
    %v1667 = vunpack.c.l.b16 %v1635
    %v1668 = vunpack.c.l.b16 %v1636
    %v1669 = vunpack.c.l.b16 %v1637
    %v1670 = vunpack.c.l.b16 %v1638
    %v1671 = vunpack.c.l.b16 %v1639
    %v1672 = vunpack.c.l.b16 %v1640
    %v1673 = vunpack.c.l.b16 %v1641
    %v1674 = vunpack.c.l.b16 %v1642
    %v1675 = vunpack.c.l.b16 %v1643
    %v1676 = vunpack.c.l.b16 %v1644
    %v1677 = vpack.c.b16 %v1662, %v1661
    %v1678 = vpack.c.b16 %v1664, %v1663
    %v1679 = vpack.c.b16 %v1666, %v1665
    %v1680 = vpack.c.b16 %v1668, %v1667
    %v1681 = vpack.c.b16 %v1670, %v1669
    %v1682 = vpack.c.b16 %v1672, %v1671
    %v1683 = vpack.c.b16 %v1674, %v1673
    %v1684 = vpack.c.b16 %v1676, %v1675
    %1693 = vmatprep.subr.bf16.mxu0 0
    %1694 = vmatpush1.bf16.msra.mxu0 %v1684
    %1695 = vmatprep.subr.bf16.mxu0 0
    %1696 = vmatpush1.bf16.msra.mxu0 %v1683
    %1697 = vmatprep.subr.bf16.mxu0 0
    %1698 = vmatpush1.bf16.msra.mxu0 %v1682
    %1699 = vmatprep.subr.bf16.mxu0 0
    %1700 = vmatpush1.bf16.msra.mxu0 %v1681
    %1701 = vmatprep.subr.bf16.mxu0 0
    %1702 = vmatpush1.bf16.msra.mxu0 %v1680
    %1703 = vmatprep.subr.bf16.mxu0 0
    %1704 = vmatpush1.bf16.msra.mxu0 %v1679
    %1705 = vmatprep.subr.bf16.mxu0 0
    %1706 = vmatpush1.bf16.msra.mxu0 %v1678
    %1707 = vmatprep.subr.bf16.mxu0 0
    %1708 = vmatpush1.bf16.msra.mxu0 %v1677
    %1709 = vmatprep.subr.bf16.mxu0 0
    %1710 = vmatpush2.bf16.msra.mxu0 0
    %1711 = vmatprep.subr.bf16.mxu0 0
    %1712 = vmatpush2.bf16.msra.mxu0 0
    %1713 = vmatprep.subr.bf16.mxu0 0
    %1714 = vmatpush2.bf16.msra.mxu0 0
    %1715 = vmatprep.subr.bf16.mxu0 0
    %1716 = vmatpush2.bf16.msra.mxu0 0
    %1717 = vmatprep.subr.bf16.mxu0 0
    %1718 = vmatpush2.bf16.msra.mxu0 0
    %1719 = vmatprep.subr.bf16.mxu0 0
    %1720 = vmatpush2.bf16.msra.mxu0 0
    %1721 = vmatprep.subr.bf16.mxu0 0
    %1722 = vmatpush2.bf16.msra.mxu0 0
    %1723 = vmatprep.subr.bf16.mxu0 0
    %1724 = vmatpush2.bf16.msra.mxu0 0
    %1725 = vmatprep.mubr.bf16.mxu0 0
    %1726 = vmatmul.mubr.bf16.gmra.mxu0 %v1628
    %v1727 = vpop.f32.mrf.mxu0
    %v1728 = vadd.f32 0.0, %v1727
    %v1729 = vpop.f32.mrf.mxu0
    %v1730 = vpop.f32.mrf.mxu0
    %v1731 = vadd.f32 0.0, %v1730
    %v1732 = vpop.f32.mrf.mxu0
    %1733 = vdwg.mxu0
    %v1734 = vadd.f32 %v1492, %v1728
    %v1735 = vadd.f32 %v1493, %v1731
    %v1736 = vpack.c.bf16 %v1735, %v1734
    %s1737 = scalar_lea.vmem %s7, 1
    %v1738 = vld [vmem:[%s1737] sm:$0x1]
    %v1739 = vunpack.c.l.bf16 %v1736
    %v1740 = vunpack.c.h.bf16 %v1736
    %v1741 = vmul.f32 %v1739, %v1739
    %v1742 = vmul.f32 %v1740, %v1740
    %v1743 = vsel %vm265, %v1741, 0.0
    %1744 = vadd.xlane.f32.xlu0 %v1743
    %v1745 = vpop.xlane.xlu0 %1744
    %v1746 = vsel %vm265, %v1742, 0.0
    %1747 = vadd.xlane.f32.xlu0 %v1746
    %v1748 = vpop.xlane.xlu0 %1747
    %v1749 = vmul.f32 %v1745, %v272
    %v1750 = vmul.f32 %v1748, %v272
    %v1751 = vadd.f32 %v1749, 1e-06
    %v1752 = vadd.f32 %v1750, 1e-06
    %v1753 = vrsqrt.pop %v1751
    %v1754 = vrsqrt.pop %v1752
    %v1755 = vmul.f32 %v1739, %v1753
    %v1756 = vmul.f32 %v1740, %v1754
    %v1757 = vunpack.c.l.bf16 %v1738
    %v1758 = vlaneseq
    %v1759 = vshrl.u32 %v1758, 7
    %v1760 = vsub.s32 0, %v1759
    %v1761 = vrot.slane %v1757, %v1760
    %v1762 = vmul.f32 %v1755, %v1761
    %v1763 = vmul.f32 %v1756, %v1761
    %v1764 = vpack.c.bf16 %v1763, %v1762
    %s1765 = scalar_lea.vmem %s8, 32
    %v1766 = vld [vmem:[%s1765] sm:$0xf]
    %v1767 = vld [vmem:[%s1765 + $0x4] sm:$0xf]
    %v1768 = vld [vmem:[%s1765 + $0x8] sm:$0xf]
    %v1769 = vld [vmem:[%s1765 + $0xc] sm:$0xf]
    %v1770 = vld [vmem:[%s1765 + $0x10] sm:$0xf]
    %v1771 = vld [vmem:[%s1765 + $0x14] sm:$0xf]
    %v1772 = vld [vmem:[%s1765 + $0x18] sm:$0xf]
    %v1773 = vld [vmem:[%s1765 + $0x1c] sm:$0xf]
    %s1774 = scalar_lea.vmem %s9, 1
    %v1775 = vld [vmem:[%s1774] sm:$0x1]
    %v1776 = vunpack.c.l.bf16 %v1775
    %v1777 = vlaneseq
    %v1778 = vshrl.u32 %v1777, 7
    %v1779 = vsub.s32 0, %v1778
    %v1780 = vrot.slane %v1776, %v1779
    %v1789 = vunpack.c.l.b16 %v1766
    %v1790 = vunpack.c.l.b16 %v1767
    %v1791 = vunpack.c.l.b16 %v1768
    %v1792 = vunpack.c.l.b16 %v1769
    %v1793 = vunpack.c.l.b16 %v1770
    %v1794 = vunpack.c.l.b16 %v1771
    %v1795 = vunpack.c.l.b16 %v1772
    %v1796 = vunpack.c.l.b16 %v1773
    %v1797 = vpack.c.b16 %v1790, %v1789
    %v1798 = vpack.c.b16 %v1792, %v1791
    %v1799 = vpack.c.b16 %v1794, %v1793
    %v1800 = vpack.c.b16 %v1796, %v1795
    %v1806 = vsel %vm265, %v1764, 0
    %1808 = vmatprep.subr.bf16.mxu0 0
    %1809 = vmatpush1.bf16.msra.mxu0 0
    %1810 = vmatprep.subr.bf16.mxu0 0
    %1811 = vmatpush1.bf16.msra.mxu0 0
    %1812 = vmatprep.subr.bf16.mxu0 0
    %1813 = vmatpush1.bf16.msra.mxu0 0
    %1814 = vmatprep.subr.bf16.mxu0 0
    %1815 = vmatpush1.bf16.msra.mxu0 0
    %1816 = vmatprep.subr.bf16.mxu0 0
    %1817 = vmatpush1.bf16.msra.mxu0 %v1800
    %1818 = vmatprep.subr.bf16.mxu0 0
    %1819 = vmatpush1.bf16.msra.mxu0 %v1799
    %1820 = vmatprep.subr.bf16.mxu0 0
    %1821 = vmatpush1.bf16.msra.mxu0 %v1798
    %1822 = vmatprep.subr.bf16.mxu0 0
    %1823 = vmatpush1.bf16.msra.mxu0 %v1797
    %1824 = vmatprep.subr.bf16.mxu0 0
    %1825 = vmatpush2.bf16.msra.mxu0 0
    %1826 = vmatprep.subr.bf16.mxu0 0
    %1827 = vmatpush2.bf16.msra.mxu0 0
    %1828 = vmatprep.subr.bf16.mxu0 0
    %1829 = vmatpush2.bf16.msra.mxu0 0
    %1830 = vmatprep.subr.bf16.mxu0 0
    %1831 = vmatpush2.bf16.msra.mxu0 0
    %1832 = vmatprep.subr.bf16.mxu0 0
    %1833 = vmatpush2.bf16.msra.mxu0 0
    %1834 = vmatprep.subr.bf16.mxu0 0
    %1835 = vmatpush2.bf16.msra.mxu0 0
    %1836 = vmatprep.subr.bf16.mxu0 0
    %1837 = vmatpush2.bf16.msra.mxu0 0
    %1838 = vmatprep.subr.bf16.mxu0 0
    %1839 = vmatpush2.bf16.msra.mxu0 0
    %1840 = vmatprep.mubr.bf16.mxu0 0
    %1841 = vmatmul.mubr.bf16.gmra.mxu0 %v1806
    %v1842 = vpop.f32.mrf.mxu0
    %v1843 = vadd.f32 %v1780, %v1842
    %v1844 = vpop.f32.mrf.mxu0
    %v1845 = vpop.f32.mrf.mxu0
    %v1846 = vadd.f32 %v1780, %v1845
    %v1847 = vpop.f32.mrf.mxu0
    %1848 = vdwg.mxu0
    %v1849 = vpack.c.bf16 %v1846, %v1843
    %v1850 = vmul.f32 %v1843, %v237
    %v1851 = vmul.f32 %v1846, %v237
    %v1853 = vsel %vm265, %v1849, 0
    %1855 = vmatprep.subr.bf16.mxu0 0
    %1856 = vmatpush1.bf16.msra.mxu0 0
    %1857 = vmatprep.subr.bf16.mxu0 0
    %1858 = vmatpush1.bf16.msra.mxu0 0
    %1859 = vmatprep.subr.bf16.mxu0 0
    %1860 = vmatpush1.bf16.msra.mxu0 0
    %1861 = vmatprep.subr.bf16.mxu0 0
    %1862 = vmatpush1.bf16.msra.mxu0 0
    %1863 = vmatprep.subr.bf16.mxu0 0
    %1864 = vmatpush1.bf16.msra.mxu0 %v393
    %1865 = vmatprep.subr.bf16.mxu0 0
    %1866 = vmatpush1.bf16.msra.mxu0 %v392
    %1867 = vmatprep.subr.bf16.mxu0 0
    %1868 = vmatpush1.bf16.msra.mxu0 %v391
    %1869 = vmatprep.subr.bf16.mxu0 0
    %1870 = vmatpush1.bf16.msra.mxu0 %v390
    %1871 = vmatprep.subr.bf16.mxu0 0
    %1872 = vmatpush2.bf16.msra.mxu0 0
    %1873 = vmatprep.subr.bf16.mxu0 0
    %1874 = vmatpush2.bf16.msra.mxu0 0
    %1875 = vmatprep.subr.bf16.mxu0 0
    %1876 = vmatpush2.bf16.msra.mxu0 0
    %1877 = vmatprep.subr.bf16.mxu0 0
    %1878 = vmatpush2.bf16.msra.mxu0 0
    %1879 = vmatprep.subr.bf16.mxu0 0
    %1880 = vmatpush2.bf16.msra.mxu0 0
    %1881 = vmatprep.subr.bf16.mxu0 0
    %1882 = vmatpush2.bf16.msra.mxu0 0
    %1883 = vmatprep.subr.bf16.mxu0 0
    %1884 = vmatpush2.bf16.msra.mxu0 0
    %1885 = vmatprep.subr.bf16.mxu0 0
    %1886 = vmatpush2.bf16.msra.mxu0 0
    %1887 = vmatprep.mubr.bf16.mxu0 0
    %1888 = vmatmul.mubr.bf16.gmra.mxu0 %v1853
    %v1889 = vpop.f32.mrf.mxu0
    %v1890 = vadd.f32 0.0, %v1889
    %v1891 = vpop.f32.mrf.mxu0
    %v1892 = vpop.f32.mrf.mxu0
    %v1893 = vadd.f32 0.0, %v1892
    %v1894 = vpop.f32.mrf.mxu0
    %1895 = vdwg.mxu0
    %v1896 = vmul.f32 %v1890, %v251
    %v1897 = vmul.f32 %v1893, %v251
    %v1898 = vadd.f32 %v1850, %v1896
    %v1899 = vadd.f32 %v1851, %v1897
    %v1900 = vpack.c.bf16 %v1899, %v1898
    %v1901 = vmul.f32 %v1843, %v449
    %v1902 = vmul.f32 %v1846, %v449
    %1904 = vrot.lane.b32.xlu0 %v1849, 64
    %v1905 = vpop.permute.xlu0 %1904
    %v1907 = vsel %vm234, %v1905, 0
    %1909 = vmatprep.subr.bf16.mxu0 0
    %1910 = vmatpush1.bf16.msra.mxu0 0
    %1911 = vmatprep.subr.bf16.mxu0 0
    %1912 = vmatpush1.bf16.msra.mxu0 0
    %1913 = vmatprep.subr.bf16.mxu0 0
    %1914 = vmatpush1.bf16.msra.mxu0 0
    %1915 = vmatprep.subr.bf16.mxu0 0
    %1916 = vmatpush1.bf16.msra.mxu0 0
    %1917 = vmatprep.subr.bf16.mxu0 0
    %1918 = vmatpush1.bf16.msra.mxu0 0
    %1919 = vmatprep.subr.bf16.mxu0 0
    %1920 = vmatpush1.bf16.msra.mxu0 0
    %1921 = vmatprep.subr.bf16.mxu0 0
    %1922 = vmatpush1.bf16.msra.mxu0 %v391
    %1923 = vmatprep.subr.bf16.mxu0 0
    %1924 = vmatpush1.bf16.msra.mxu0 %v390
    %1925 = vmatprep.subr.bf16.mxu0 0
    %1926 = vmatpush2.bf16.msra.mxu0 0
    %1927 = vmatprep.subr.bf16.mxu0 0
    %1928 = vmatpush2.bf16.msra.mxu0 0
    %1929 = vmatprep.subr.bf16.mxu0 0
    %1930 = vmatpush2.bf16.msra.mxu0 0
    %1931 = vmatprep.subr.bf16.mxu0 0
    %1932 = vmatpush2.bf16.msra.mxu0 0
    %1933 = vmatprep.subr.bf16.mxu0 0
    %1934 = vmatpush2.bf16.msra.mxu0 0
    %1935 = vmatprep.subr.bf16.mxu0 0
    %1936 = vmatpush2.bf16.msra.mxu0 0
    %1937 = vmatprep.subr.bf16.mxu0 0
    %1938 = vmatpush2.bf16.msra.mxu0 0
    %1939 = vmatprep.subr.bf16.mxu0 0
    %1940 = vmatpush2.bf16.msra.mxu0 0
    %1941 = vmatprep.mubr.bf16.mxu0 0
    %1942 = vmatmul.mubr.bf16.gmra.mxu0 %v1907
    %v1943 = vpop.f32.mrf.mxu0
    %v1944 = vadd.f32 0.0, %v1943
    %v1945 = vpop.f32.mrf.mxu0
    %v1946 = vpop.f32.mrf.mxu0
    %v1947 = vadd.f32 0.0, %v1946
    %v1948 = vpop.f32.mrf.mxu0
    %1949 = vdwg.mxu0
    %v1950 = vmul.f32 %v1944, %v251
    %v1951 = vmul.f32 %v1947, %v251
    %1954 = vrot.lane.b32.xlu0 %v1950, 64
    %v1955 = vpop.permute.xlu0 %1954
    %1956 = vrot.lane.b32.xlu0 %v1951, 64
    %v1957 = vpop.permute.xlu0 %1956
    %v1960 = vadd.f32 %v1901, %v1955
    %v1961 = vadd.f32 %v1902, %v1957
    %v1962 = vpack.c.bf16 %v1961, %v1960
    %v1964 = vunpack.c.l.b16 %v1900
    %v1965 = vunpack.c.h.b16 %v1900
    %v1966 = vpack.c.b16 %v1964, %v1964
    %v1967 = vpack.c.b16 %v1965, %v1965
    %1968 = vrot.lane.b32.xlu0 %v1966, 112
    %v1969 = vpop.permute.xlu0 %1968
    %1970 = vrot.lane.b32.xlu0 %v1967, 112
    %v1971 = vpop.permute.xlu0 %1970
    %1972 = vrot.lane.b32.xlu0 %v1966, 96
    %v1973 = vpop.permute.xlu0 %1972
    %1974 = vrot.lane.b32.xlu0 %v1967, 96
    %v1975 = vpop.permute.xlu0 %1974
    %1976 = vrot.lane.b32.xlu0 %v1966, 80
    %v1977 = vpop.permute.xlu0 %1976
    %1978 = vrot.lane.b32.xlu0 %v1967, 80
    %v1979 = vpop.permute.xlu0 %1978
    %v1981 = vunpack.c.l.b16 %v1962
    %v1982 = vunpack.c.h.b16 %v1962
    %v1983 = vpack.c.b16 %v1981, %v1981
    %v1984 = vpack.c.b16 %v1982, %v1982
    %1985 = vrot.lane.b32.xlu0 %v1983, 112
    %v1986 = vpop.permute.xlu0 %1985
    %1987 = vrot.lane.b32.xlu0 %v1984, 112
    %v1988 = vpop.permute.xlu0 %1987
    %v1989 = vunpack.c.l.b16 %v1849
    %v1990 = vunpack.c.h.b16 %v1849
    %v1991 = vpack.c.b16 %v1989, %v1989
    %v1992 = vpack.c.b16 %v1990, %v1990
    %1993 = vrot.lane.b32.xlu0 %v1991, 112
    %v1994 = vpop.permute.xlu0 %1993
    %1995 = vrot.lane.b32.xlu0 %v1992, 112
    %v1996 = vpop.permute.xlu0 %1995
    %1997 = vrot.lane.b32.xlu0 %v1983, 64
    %v1998 = vpop.permute.xlu0 %1997
    %v2000 = vsel %vm232, %v1966, 0
    %v2003 = vsel %vm232, %v1998, 0
    %2005 = vmatprep.subr.bf16.mxu0 0
    %2006 = vmatpush1.bf16.xpose.msra.mxu0 0
    %2007 = vmatprep.subr.bf16.mxu0 0
    %2008 = vmatpush1.bf16.xpose.msra.mxu0 0
    %2009 = vmatprep.subr.bf16.mxu0 0
    %2010 = vmatpush1.bf16.xpose.msra.mxu0 0
    %2011 = vmatprep.subr.bf16.mxu0 0
    %2012 = vmatpush1.bf16.xpose.msra.mxu0 0
    %2013 = vmatprep.subr.bf16.mxu0 0
    %2014 = vmatpush1.bf16.xpose.msra.mxu0 0
    %2015 = vmatprep.subr.bf16.mxu0 0
    %2016 = vmatpush1.bf16.xpose.msra.mxu0 0
    %2017 = vmatprep.subr.bf16.mxu0 0
    %2018 = vmatpush1.bf16.xpose.msra.mxu0 0
    %2019 = vmatprep.subr.bf16.mxu0 0
    %2020 = vmatpush1.bf16.xpose.msra.mxu0 %v2003
    %2021 = vmatprep.subr.bf16.mxu0 0
    %2022 = vmatpush2.bf16.xpose.msra.mxu0 0
    %2023 = vmatprep.subr.bf16.mxu0 0
    %2024 = vmatpush2.bf16.xpose.msra.mxu0 0
    %2025 = vmatprep.subr.bf16.mxu0 0
    %2026 = vmatpush2.bf16.xpose.msra.mxu0 0
    %2027 = vmatprep.subr.bf16.mxu0 0
    %2028 = vmatpush2.bf16.xpose.msra.mxu0 0
    %2029 = vmatprep.subr.bf16.mxu0 0
    %2030 = vmatpush2.bf16.xpose.msra.mxu0 0
    %2031 = vmatprep.subr.bf16.mxu0 0
    %2032 = vmatpush2.bf16.xpose.msra.mxu0 0
    %2033 = vmatprep.subr.bf16.mxu0 0
    %2034 = vmatpush2.bf16.xpose.msra.mxu0 0
    %2035 = vmatprep.subr.bf16.mxu0 0
    %2036 = vmatpush2.bf16.xpose.msra.mxu0 0
    %2037 = vmatprep.mubr.bf16.mxu0 0
    %2038 = vmatmul.mubr.bf16.gmra.mxu0 %v2000
    %v2039 = vpop.f32.mrf.mxu0
    %v2040 = vadd.f32 %v219, %v2039
    %v2041 = vpop.f32.mrf.mxu0
    %v2042 = vpop.f32.mrf.mxu0
    %v2043 = vpop.f32.mrf.mxu0
    %2044 = vdwg.mxu0
    %v2046 = vsel %vm232, %v1969, 0
    %2048 = vmatprep.subr.bf16.mxu0 0
    %2049 = vmatpush1.bf16.xpose.msra.mxu0 0
    %2050 = vmatprep.subr.bf16.mxu0 0
    %2051 = vmatpush1.bf16.xpose.msra.mxu0 0
    %2052 = vmatprep.subr.bf16.mxu0 0
    %2053 = vmatpush1.bf16.xpose.msra.mxu0 0
    %2054 = vmatprep.subr.bf16.mxu0 0
    %2055 = vmatpush1.bf16.xpose.msra.mxu0 0
    %2056 = vmatprep.subr.bf16.mxu0 0
    %2057 = vmatpush1.bf16.xpose.msra.mxu0 0
    %2058 = vmatprep.subr.bf16.mxu0 0
    %2059 = vmatpush1.bf16.xpose.msra.mxu0 0
    %2060 = vmatprep.subr.bf16.mxu0 0
    %2061 = vmatpush1.bf16.xpose.msra.mxu0 0
    %2062 = vmatprep.subr.bf16.mxu0 0
    %2063 = vmatpush1.bf16.xpose.msra.mxu0 %v2003
    %2064 = vmatprep.subr.bf16.mxu0 0
    %2065 = vmatpush2.bf16.xpose.msra.mxu0 0
    %2066 = vmatprep.subr.bf16.mxu0 0
    %2067 = vmatpush2.bf16.xpose.msra.mxu0 0
    %2068 = vmatprep.subr.bf16.mxu0 0
    %2069 = vmatpush2.bf16.xpose.msra.mxu0 0
    %2070 = vmatprep.subr.bf16.mxu0 0
    %2071 = vmatpush2.bf16.xpose.msra.mxu0 0
    %2072 = vmatprep.subr.bf16.mxu0 0
    %2073 = vmatpush2.bf16.xpose.msra.mxu0 0
    %2074 = vmatprep.subr.bf16.mxu0 0
    %2075 = vmatpush2.bf16.xpose.msra.mxu0 0
    %2076 = vmatprep.subr.bf16.mxu0 0
    %2077 = vmatpush2.bf16.xpose.msra.mxu0 0
    %2078 = vmatprep.subr.bf16.mxu0 0
    %2079 = vmatpush2.bf16.xpose.msra.mxu0 0
    %2080 = vmatprep.mubr.bf16.mxu0 0
    %2081 = vmatmul.mubr.bf16.gmra.mxu0 %v2046
    %v2082 = vpop.f32.mrf.mxu0
    %v2083 = vadd.f32 %v219, %v2082
    %v2084 = vpop.f32.mrf.mxu0
    %v2085 = vpop.f32.mrf.mxu0
    %v2086 = vpop.f32.mrf.mxu0
    %2087 = vdwg.mxu0
    %v2088 = vunpack.c.l.b16 %v1986
    %v2089 = vpack.c.b16 %v2088, %v2088
    %2090 = vrot.lane.b32.xlu0 %v2089, 64
    %v2091 = vpop.permute.xlu0 %2090
    %v2093 = vsel %vm232, %v1973, 0
    %v2096 = vsel %vm232, %v2091, 0
    %2098 = vmatprep.subr.bf16.mxu0 0
    %2099 = vmatpush1.bf16.xpose.msra.mxu0 0
    %2100 = vmatprep.subr.bf16.mxu0 0
    %2101 = vmatpush1.bf16.xpose.msra.mxu0 0
    %2102 = vmatprep.subr.bf16.mxu0 0
    %2103 = vmatpush1.bf16.xpose.msra.mxu0 0
    %2104 = vmatprep.subr.bf16.mxu0 0
    %2105 = vmatpush1.bf16.xpose.msra.mxu0 0
    %2106 = vmatprep.subr.bf16.mxu0 0
    %2107 = vmatpush1.bf16.xpose.msra.mxu0 0
    %2108 = vmatprep.subr.bf16.mxu0 0
    %2109 = vmatpush1.bf16.xpose.msra.mxu0 0
    %2110 = vmatprep.subr.bf16.mxu0 0
    %2111 = vmatpush1.bf16.xpose.msra.mxu0 0
    %2112 = vmatprep.subr.bf16.mxu0 0
    %2113 = vmatpush1.bf16.xpose.msra.mxu0 %v2096
    %2114 = vmatprep.subr.bf16.mxu0 0
    %2115 = vmatpush2.bf16.xpose.msra.mxu0 0
    %2116 = vmatprep.subr.bf16.mxu0 0
    %2117 = vmatpush2.bf16.xpose.msra.mxu0 0
    %2118 = vmatprep.subr.bf16.mxu0 0
    %2119 = vmatpush2.bf16.xpose.msra.mxu0 0
    %2120 = vmatprep.subr.bf16.mxu0 0
    %2121 = vmatpush2.bf16.xpose.msra.mxu0 0
    %2122 = vmatprep.subr.bf16.mxu0 0
    %2123 = vmatpush2.bf16.xpose.msra.mxu0 0
    %2124 = vmatprep.subr.bf16.mxu0 0
    %2125 = vmatpush2.bf16.xpose.msra.mxu0 0
    %2126 = vmatprep.subr.bf16.mxu0 0
    %2127 = vmatpush2.bf16.xpose.msra.mxu0 0
    %2128 = vmatprep.subr.bf16.mxu0 0
    %2129 = vmatpush2.bf16.xpose.msra.mxu0 0
    %2130 = vmatprep.mubr.bf16.mxu0 0
    %2131 = vmatmul.mubr.bf16.gmra.mxu0 %v2093
    %v2132 = vpop.f32.mrf.mxu0
    %v2133 = vadd.f32 %v219, %v2132
    %v2134 = vpop.f32.mrf.mxu0
    %v2135 = vpop.f32.mrf.mxu0
    %v2136 = vpop.f32.mrf.mxu0
    %2137 = vdwg.mxu0
    %v2139 = vsel %vm232, %v1977, 0
    %2141 = vmatprep.subr.bf16.mxu0 0
    %2142 = vmatpush1.bf16.xpose.msra.mxu0 0
    %2143 = vmatprep.subr.bf16.mxu0 0
    %2144 = vmatpush1.bf16.xpose.msra.mxu0 0
    %2145 = vmatprep.subr.bf16.mxu0 0
    %2146 = vmatpush1.bf16.xpose.msra.mxu0 0
    %2147 = vmatprep.subr.bf16.mxu0 0
    %2148 = vmatpush1.bf16.xpose.msra.mxu0 0
    %2149 = vmatprep.subr.bf16.mxu0 0
    %2150 = vmatpush1.bf16.xpose.msra.mxu0 0
    %2151 = vmatprep.subr.bf16.mxu0 0
    %2152 = vmatpush1.bf16.xpose.msra.mxu0 0
    %2153 = vmatprep.subr.bf16.mxu0 0
    %2154 = vmatpush1.bf16.xpose.msra.mxu0 0
    %2155 = vmatprep.subr.bf16.mxu0 0
    %2156 = vmatpush1.bf16.xpose.msra.mxu0 %v2096
    %2157 = vmatprep.subr.bf16.mxu0 0
    %2158 = vmatpush2.bf16.xpose.msra.mxu0 0
    %2159 = vmatprep.subr.bf16.mxu0 0
    %2160 = vmatpush2.bf16.xpose.msra.mxu0 0
    %2161 = vmatprep.subr.bf16.mxu0 0
    %2162 = vmatpush2.bf16.xpose.msra.mxu0 0
    %2163 = vmatprep.subr.bf16.mxu0 0
    %2164 = vmatpush2.bf16.xpose.msra.mxu0 0
    %2165 = vmatprep.subr.bf16.mxu0 0
    %2166 = vmatpush2.bf16.xpose.msra.mxu0 0
    %2167 = vmatprep.subr.bf16.mxu0 0
    %2168 = vmatpush2.bf16.xpose.msra.mxu0 0
    %2169 = vmatprep.subr.bf16.mxu0 0
    %2170 = vmatpush2.bf16.xpose.msra.mxu0 0
    %2171 = vmatprep.subr.bf16.mxu0 0
    %2172 = vmatpush2.bf16.xpose.msra.mxu0 0
    %2173 = vmatprep.mubr.bf16.mxu0 0
    %2174 = vmatmul.mubr.bf16.gmra.mxu0 %v2139
    %v2175 = vpop.f32.mrf.mxu0
    %v2176 = vadd.f32 %v219, %v2175
    %v2177 = vpop.f32.mrf.mxu0
    %v2178 = vpop.f32.mrf.mxu0
    %v2179 = vpop.f32.mrf.mxu0
    %2180 = vdwg.mxu0
    %2181 = vrot.lane.b32.xlu0 %v1984, 64
    %v2182 = vpop.permute.xlu0 %2181
    %v2184 = vsel %vm232, %v1967, 0
    %v2187 = vsel %vm232, %v2182, 0
    %2189 = vmatprep.subr.bf16.mxu0 0
    %2190 = vmatpush1.bf16.xpose.msra.mxu0 0
    %2191 = vmatprep.subr.bf16.mxu0 0
    %2192 = vmatpush1.bf16.xpose.msra.mxu0 0
    %2193 = vmatprep.subr.bf16.mxu0 0
    %2194 = vmatpush1.bf16.xpose.msra.mxu0 0
    %2195 = vmatprep.subr.bf16.mxu0 0
    %2196 = vmatpush1.bf16.xpose.msra.mxu0 0
    %2197 = vmatprep.subr.bf16.mxu0 0
    %2198 = vmatpush1.bf16.xpose.msra.mxu0 0
    %2199 = vmatprep.subr.bf16.mxu0 0
    %2200 = vmatpush1.bf16.xpose.msra.mxu0 0
    %2201 = vmatprep.subr.bf16.mxu0 0
    %2202 = vmatpush1.bf16.xpose.msra.mxu0 0
    %2203 = vmatprep.subr.bf16.mxu0 0
    %2204 = vmatpush1.bf16.xpose.msra.mxu0 %v2187
    %2205 = vmatprep.subr.bf16.mxu0 0
    %2206 = vmatpush2.bf16.xpose.msra.mxu0 0
    %2207 = vmatprep.subr.bf16.mxu0 0
    %2208 = vmatpush2.bf16.xpose.msra.mxu0 0
    %2209 = vmatprep.subr.bf16.mxu0 0
    %2210 = vmatpush2.bf16.xpose.msra.mxu0 0
    %2211 = vmatprep.subr.bf16.mxu0 0
    %2212 = vmatpush2.bf16.xpose.msra.mxu0 0
    %2213 = vmatprep.subr.bf16.mxu0 0
    %2214 = vmatpush2.bf16.xpose.msra.mxu0 0
    %2215 = vmatprep.subr.bf16.mxu0 0
    %2216 = vmatpush2.bf16.xpose.msra.mxu0 0
    %2217 = vmatprep.subr.bf16.mxu0 0
    %2218 = vmatpush2.bf16.xpose.msra.mxu0 0
    %2219 = vmatprep.subr.bf16.mxu0 0
    %2220 = vmatpush2.bf16.xpose.msra.mxu0 0
    %2221 = vmatprep.mubr.bf16.mxu0 0
    %2222 = vmatmul.mubr.bf16.gmra.mxu0 %v2184
    %v2223 = vpop.f32.mrf.mxu0
    %v2224 = vadd.f32 %v220, %v2223
    %v2225 = vpop.f32.mrf.mxu0
    %v2226 = vpop.f32.mrf.mxu0
    %v2227 = vpop.f32.mrf.mxu0
    %2228 = vdwg.mxu0
    %v2230 = vsel %vm232, %v1971, 0
    %2232 = vmatprep.subr.bf16.mxu0 0
    %2233 = vmatpush1.bf16.xpose.msra.mxu0 0
    %2234 = vmatprep.subr.bf16.mxu0 0
    %2235 = vmatpush1.bf16.xpose.msra.mxu0 0
    %2236 = vmatprep.subr.bf16.mxu0 0
    %2237 = vmatpush1.bf16.xpose.msra.mxu0 0
    %2238 = vmatprep.subr.bf16.mxu0 0
    %2239 = vmatpush1.bf16.xpose.msra.mxu0 0
    %2240 = vmatprep.subr.bf16.mxu0 0
    %2241 = vmatpush1.bf16.xpose.msra.mxu0 0
    %2242 = vmatprep.subr.bf16.mxu0 0
    %2243 = vmatpush1.bf16.xpose.msra.mxu0 0
    %2244 = vmatprep.subr.bf16.mxu0 0
    %2245 = vmatpush1.bf16.xpose.msra.mxu0 0
    %2246 = vmatprep.subr.bf16.mxu0 0
    %2247 = vmatpush1.bf16.xpose.msra.mxu0 %v2187
    %2248 = vmatprep.subr.bf16.mxu0 0
    %2249 = vmatpush2.bf16.xpose.msra.mxu0 0
    %2250 = vmatprep.subr.bf16.mxu0 0
    %2251 = vmatpush2.bf16.xpose.msra.mxu0 0
    %2252 = vmatprep.subr.bf16.mxu0 0
    %2253 = vmatpush2.bf16.xpose.msra.mxu0 0
    %2254 = vmatprep.subr.bf16.mxu0 0
    %2255 = vmatpush2.bf16.xpose.msra.mxu0 0
    %2256 = vmatprep.subr.bf16.mxu0 0
    %2257 = vmatpush2.bf16.xpose.msra.mxu0 0
    %2258 = vmatprep.subr.bf16.mxu0 0
    %2259 = vmatpush2.bf16.xpose.msra.mxu0 0
    %2260 = vmatprep.subr.bf16.mxu0 0
    %2261 = vmatpush2.bf16.xpose.msra.mxu0 0
    %2262 = vmatprep.subr.bf16.mxu0 0
    %2263 = vmatpush2.bf16.xpose.msra.mxu0 0
    %2264 = vmatprep.mubr.bf16.mxu0 0
    %2265 = vmatmul.mubr.bf16.gmra.mxu0 %v2230
    %v2266 = vpop.f32.mrf.mxu0
    %v2267 = vadd.f32 %v220, %v2266
    %v2268 = vpop.f32.mrf.mxu0
    %v2269 = vpop.f32.mrf.mxu0
    %v2270 = vpop.f32.mrf.mxu0
    %2271 = vdwg.mxu0
    %v2272 = vunpack.c.l.b16 %v1988
    %v2273 = vpack.c.b16 %v2272, %v2272
    %2274 = vrot.lane.b32.xlu0 %v2273, 64
    %v2275 = vpop.permute.xlu0 %2274
    %v2277 = vsel %vm232, %v1975, 0
    %v2280 = vsel %vm232, %v2275, 0
    %2282 = vmatprep.subr.bf16.mxu0 0
    %2283 = vmatpush1.bf16.xpose.msra.mxu0 0
    %2284 = vmatprep.subr.bf16.mxu0 0
    %2285 = vmatpush1.bf16.xpose.msra.mxu0 0
    %2286 = vmatprep.subr.bf16.mxu0 0
    %2287 = vmatpush1.bf16.xpose.msra.mxu0 0
    %2288 = vmatprep.subr.bf16.mxu0 0
    %2289 = vmatpush1.bf16.xpose.msra.mxu0 0
    %2290 = vmatprep.subr.bf16.mxu0 0
    %2291 = vmatpush1.bf16.xpose.msra.mxu0 0
    %2292 = vmatprep.subr.bf16.mxu0 0
    %2293 = vmatpush1.bf16.xpose.msra.mxu0 0
    %2294 = vmatprep.subr.bf16.mxu0 0
    %2295 = vmatpush1.bf16.xpose.msra.mxu0 0
    %2296 = vmatprep.subr.bf16.mxu0 0
    %2297 = vmatpush1.bf16.xpose.msra.mxu0 %v2280
    %2298 = vmatprep.subr.bf16.mxu0 0
    %2299 = vmatpush2.bf16.xpose.msra.mxu0 0
    %2300 = vmatprep.subr.bf16.mxu0 0
    %2301 = vmatpush2.bf16.xpose.msra.mxu0 0
    %2302 = vmatprep.subr.bf16.mxu0 0
    %2303 = vmatpush2.bf16.xpose.msra.mxu0 0
    %2304 = vmatprep.subr.bf16.mxu0 0
    %2305 = vmatpush2.bf16.xpose.msra.mxu0 0
    %2306 = vmatprep.subr.bf16.mxu0 0
    %2307 = vmatpush2.bf16.xpose.msra.mxu0 0
    %2308 = vmatprep.subr.bf16.mxu0 0
    %2309 = vmatpush2.bf16.xpose.msra.mxu0 0
    %2310 = vmatprep.subr.bf16.mxu0 0
    %2311 = vmatpush2.bf16.xpose.msra.mxu0 0
    %2312 = vmatprep.subr.bf16.mxu0 0
    %2313 = vmatpush2.bf16.xpose.msra.mxu0 0
    %2314 = vmatprep.mubr.bf16.mxu0 0
    %2315 = vmatmul.mubr.bf16.gmra.mxu0 %v2277
    %v2316 = vpop.f32.mrf.mxu0
    %v2317 = vadd.f32 %v220, %v2316
    %v2318 = vpop.f32.mrf.mxu0
    %v2319 = vpop.f32.mrf.mxu0
    %v2320 = vpop.f32.mrf.mxu0
    %2321 = vdwg.mxu0
    %v2323 = vsel %vm232, %v1979, 0
    %2325 = vmatprep.subr.bf16.mxu0 0
    %2326 = vmatpush1.bf16.xpose.msra.mxu0 0
    %2327 = vmatprep.subr.bf16.mxu0 0
    %2328 = vmatpush1.bf16.xpose.msra.mxu0 0
    %2329 = vmatprep.subr.bf16.mxu0 0
    %2330 = vmatpush1.bf16.xpose.msra.mxu0 0
    %2331 = vmatprep.subr.bf16.mxu0 0
    %2332 = vmatpush1.bf16.xpose.msra.mxu0 0
    %2333 = vmatprep.subr.bf16.mxu0 0
    %2334 = vmatpush1.bf16.xpose.msra.mxu0 0
    %2335 = vmatprep.subr.bf16.mxu0 0
    %2336 = vmatpush1.bf16.xpose.msra.mxu0 0
    %2337 = vmatprep.subr.bf16.mxu0 0
    %2338 = vmatpush1.bf16.xpose.msra.mxu0 0
    %2339 = vmatprep.subr.bf16.mxu0 0
    %2340 = vmatpush1.bf16.xpose.msra.mxu0 %v2280
    %2341 = vmatprep.subr.bf16.mxu0 0
    %2342 = vmatpush2.bf16.xpose.msra.mxu0 0
    %2343 = vmatprep.subr.bf16.mxu0 0
    %2344 = vmatpush2.bf16.xpose.msra.mxu0 0
    %2345 = vmatprep.subr.bf16.mxu0 0
    %2346 = vmatpush2.bf16.xpose.msra.mxu0 0
    %2347 = vmatprep.subr.bf16.mxu0 0
    %2348 = vmatpush2.bf16.xpose.msra.mxu0 0
    %2349 = vmatprep.subr.bf16.mxu0 0
    %2350 = vmatpush2.bf16.xpose.msra.mxu0 0
    %2351 = vmatprep.subr.bf16.mxu0 0
    %2352 = vmatpush2.bf16.xpose.msra.mxu0 0
    %2353 = vmatprep.subr.bf16.mxu0 0
    %2354 = vmatpush2.bf16.xpose.msra.mxu0 0
    %2355 = vmatprep.subr.bf16.mxu0 0
    %2356 = vmatpush2.bf16.xpose.msra.mxu0 0
    %2357 = vmatprep.mubr.bf16.mxu0 0
    %2358 = vmatmul.mubr.bf16.gmra.mxu0 %v2323
    %v2359 = vpop.f32.mrf.mxu0
    %v2360 = vadd.f32 %v220, %v2359
    %v2361 = vpop.f32.mrf.mxu0
    %v2362 = vpop.f32.mrf.mxu0
    %v2363 = vpop.f32.mrf.mxu0
    %2364 = vdwg.mxu0
    %v2365 = vsel %vm915, %v2040, -inf
    %2366 = vmax.xlane.f32.xlu0 %v2365
    %v2367 = vpop.xlane.xlu0 %2366
    %v2368 = vsel %vm915, %v2083, -inf
    %2369 = vmax.xlane.f32.xlu0 %v2368
    %v2370 = vpop.xlane.xlu0 %2369
    %v2371 = vsel %vm915, %v2133, -inf
    %2372 = vmax.xlane.f32.xlu0 %v2371
    %v2373 = vpop.xlane.xlu0 %2372
    %v2374 = vsel %vm915, %v2176, -inf
    %2375 = vmax.xlane.f32.xlu0 %v2374
    %v2376 = vpop.xlane.xlu0 %2375
    %v2377 = vsel %vm915, %v2224, -inf
    %2378 = vmax.xlane.f32.xlu0 %v2377
    %v2379 = vpop.xlane.xlu0 %2378
    %v2380 = vsel %vm915, %v2267, -inf
    %2381 = vmax.xlane.f32.xlu0 %v2380
    %v2382 = vpop.xlane.xlu0 %2381
    %v2383 = vsel %vm915, %v2317, -inf
    %2384 = vmax.xlane.f32.xlu0 %v2383
    %v2385 = vpop.xlane.xlu0 %2384
    %v2386 = vsel %vm915, %v2360, -inf
    %2387 = vmax.xlane.f32.xlu0 %v2386
    %v2388 = vpop.xlane.xlu0 %2387
    %v2389 = vsub.f32 %v2040, %v2367
    %v2390 = vsub.f32 %v2083, %v2370
    %v2391 = vsub.f32 %v2133, %v2373
    %v2392 = vsub.f32 %v2176, %v2376
    %v2393 = vsub.f32 %v2224, %v2379
    %v2394 = vsub.f32 %v2267, %v2382
    %v2395 = vsub.f32 %v2317, %v2385
    %v2396 = vsub.f32 %v2360, %v2388
    %v2397 = vmul.f32 %v2389, 1.442695
    %v2398 = vpow.pop %v2397
    %v2399 = vmul.f32 %v2390, 1.442695
    %v2400 = vpow.pop %v2399
    %v2401 = vmul.f32 %v2391, 1.442695
    %v2402 = vpow.pop %v2401
    %v2403 = vmul.f32 %v2392, 1.442695
    %v2404 = vpow.pop %v2403
    %v2405 = vmul.f32 %v2393, 1.442695
    %v2406 = vpow.pop %v2405
    %v2407 = vmul.f32 %v2394, 1.442695
    %v2408 = vpow.pop %v2407
    %v2409 = vmul.f32 %v2395, 1.442695
    %v2410 = vpow.pop %v2409
    %v2411 = vmul.f32 %v2396, 1.442695
    %v2412 = vpow.pop %v2411
    %v2413 = vsel %vm915, %v2398, 0.0
    %2414 = vadd.xlane.f32.xlu0 %v2413
    %v2415 = vpop.xlane.xlu0 %2414
    %v2416 = vsel %vm915, %v2400, 0.0
    %2417 = vadd.xlane.f32.xlu0 %v2416
    %v2418 = vpop.xlane.xlu0 %2417
    %v2419 = vsel %vm915, %v2402, 0.0
    %2420 = vadd.xlane.f32.xlu0 %v2419
    %v2421 = vpop.xlane.xlu0 %2420
    %v2422 = vsel %vm915, %v2404, 0.0
    %2423 = vadd.xlane.f32.xlu0 %v2422
    %v2424 = vpop.xlane.xlu0 %2423
    %v2425 = vsel %vm915, %v2406, 0.0
    %2426 = vadd.xlane.f32.xlu0 %v2425
    %v2427 = vpop.xlane.xlu0 %2426
    %v2428 = vsel %vm915, %v2408, 0.0
    %2429 = vadd.xlane.f32.xlu0 %v2428
    %v2430 = vpop.xlane.xlu0 %2429
    %v2431 = vsel %vm915, %v2410, 0.0
    %2432 = vadd.xlane.f32.xlu0 %v2431
    %v2433 = vpop.xlane.xlu0 %2432
    %v2434 = vsel %vm915, %v2412, 0.0
    %2435 = vadd.xlane.f32.xlu0 %v2434
    %v2436 = vpop.xlane.xlu0 %2435
    %v2437 = vrcp.pop %v2415
    %v2438 = vrcp.pop %v2418
    %v2439 = vrcp.pop %v2421
    %v2440 = vrcp.pop %v2424
    %v2441 = vrcp.pop %v2427
    %v2442 = vrcp.pop %v2430
    %v2443 = vrcp.pop %v2433
    %v2444 = vrcp.pop %v2436
    %v2445 = vmul.f32 %v2398, %v2437
    %v2446 = vmul.f32 %v2400, %v2438
    %v2447 = vmul.f32 %v2402, %v2439
    %v2448 = vmul.f32 %v2404, %v2440
    %v2449 = vmul.f32 %v2406, %v2441
    %v2450 = vmul.f32 %v2408, %v2442
    %v2451 = vmul.f32 %v2410, %v2443
    %v2452 = vmul.f32 %v2412, %v2444
    %v2453 = vpack.c.bf16 %v2445, %v2445
    %v2454 = vpack.c.bf16 %v2446, %v2446
    %v2455 = vpack.c.bf16 %v2447, %v2447
    %v2456 = vpack.c.bf16 %v2448, %v2448
    %v2457 = vpack.c.bf16 %v2449, %v2449
    %v2458 = vpack.c.bf16 %v2450, %v2450
    %v2459 = vpack.c.bf16 %v2451, %v2451
    %v2460 = vpack.c.bf16 %v2452, %v2452
    %2461 = vrot.lane.b32.xlu0 %v1991, 32
    %v2462 = vpop.permute.xlu0 %2461
    %v2464 = vsel %vm915, %v2453, 0
    %v2467 = vsel %vm1017, %v2462, 0
    %2469 = vmatprep.subr.bf16.mxu0 0
    %2470 = vmatpush1.bf16.msra.mxu0 0
    %2471 = vmatprep.subr.bf16.mxu0 0
    %2472 = vmatpush1.bf16.msra.mxu0 0
    %2473 = vmatprep.subr.bf16.mxu0 0
    %2474 = vmatpush1.bf16.msra.mxu0 0
    %2475 = vmatprep.subr.bf16.mxu0 0
    %2476 = vmatpush1.bf16.msra.mxu0 0
    %2477 = vmatprep.subr.bf16.mxu0 0
    %2478 = vmatpush1.bf16.msra.mxu0 0
    %2479 = vmatprep.subr.bf16.mxu0 0
    %2480 = vmatpush1.bf16.msra.mxu0 0
    %2481 = vmatprep.subr.bf16.mxu0 0
    %2482 = vmatpush1.bf16.msra.mxu0 0
    %2483 = vmatprep.subr.bf16.mxu0 0
    %2484 = vmatpush1.bf16.msra.mxu0 %v2467
    %2485 = vmatprep.subr.bf16.mxu0 0
    %2486 = vmatpush2.bf16.msra.mxu0 0
    %2487 = vmatprep.subr.bf16.mxu0 0
    %2488 = vmatpush2.bf16.msra.mxu0 0
    %2489 = vmatprep.subr.bf16.mxu0 0
    %2490 = vmatpush2.bf16.msra.mxu0 0
    %2491 = vmatprep.subr.bf16.mxu0 0
    %2492 = vmatpush2.bf16.msra.mxu0 0
    %2493 = vmatprep.subr.bf16.mxu0 0
    %2494 = vmatpush2.bf16.msra.mxu0 0
    %2495 = vmatprep.subr.bf16.mxu0 0
    %2496 = vmatpush2.bf16.msra.mxu0 0
    %2497 = vmatprep.subr.bf16.mxu0 0
    %2498 = vmatpush2.bf16.msra.mxu0 0
    %2499 = vmatprep.subr.bf16.mxu0 0
    %2500 = vmatpush2.bf16.msra.mxu0 0
    %2501 = vmatprep.mubr.bf16.mxu0 0
    %2502 = vmatmul.mubr.bf16.gmra.mxu0 %v2464
    %v2503 = vpop.f32.mrf.mxu0
    %v2504 = vadd.f32 0.0, %v2503
    %v2505 = vpop.f32.mrf.mxu0
    %v2506 = vpop.f32.mrf.mxu0
    %v2507 = vpop.f32.mrf.mxu0
    %2508 = vdwg.mxu0
    %v2510 = vsel %vm915, %v2454, 0
    %2512 = vmatprep.subr.bf16.mxu0 0
    %2513 = vmatpush1.bf16.msra.mxu0 0
    %2514 = vmatprep.subr.bf16.mxu0 0
    %2515 = vmatpush1.bf16.msra.mxu0 0
    %2516 = vmatprep.subr.bf16.mxu0 0
    %2517 = vmatpush1.bf16.msra.mxu0 0
    %2518 = vmatprep.subr.bf16.mxu0 0
    %2519 = vmatpush1.bf16.msra.mxu0 0
    %2520 = vmatprep.subr.bf16.mxu0 0
    %2521 = vmatpush1.bf16.msra.mxu0 0
    %2522 = vmatprep.subr.bf16.mxu0 0
    %2523 = vmatpush1.bf16.msra.mxu0 0
    %2524 = vmatprep.subr.bf16.mxu0 0
    %2525 = vmatpush1.bf16.msra.mxu0 0
    %2526 = vmatprep.subr.bf16.mxu0 0
    %2527 = vmatpush1.bf16.msra.mxu0 %v2467
    %2528 = vmatprep.subr.bf16.mxu0 0
    %2529 = vmatpush2.bf16.msra.mxu0 0
    %2530 = vmatprep.subr.bf16.mxu0 0
    %2531 = vmatpush2.bf16.msra.mxu0 0
    %2532 = vmatprep.subr.bf16.mxu0 0
    %2533 = vmatpush2.bf16.msra.mxu0 0
    %2534 = vmatprep.subr.bf16.mxu0 0
    %2535 = vmatpush2.bf16.msra.mxu0 0
    %2536 = vmatprep.subr.bf16.mxu0 0
    %2537 = vmatpush2.bf16.msra.mxu0 0
    %2538 = vmatprep.subr.bf16.mxu0 0
    %2539 = vmatpush2.bf16.msra.mxu0 0
    %2540 = vmatprep.subr.bf16.mxu0 0
    %2541 = vmatpush2.bf16.msra.mxu0 0
    %2542 = vmatprep.subr.bf16.mxu0 0
    %2543 = vmatpush2.bf16.msra.mxu0 0
    %2544 = vmatprep.mubr.bf16.mxu0 0
    %2545 = vmatmul.mubr.bf16.gmra.mxu0 %v2510
    %v2546 = vpop.f32.mrf.mxu0
    %v2547 = vadd.f32 0.0, %v2546
    %v2548 = vpop.f32.mrf.mxu0
    %v2549 = vpop.f32.mrf.mxu0
    %v2550 = vpop.f32.mrf.mxu0
    %2551 = vdwg.mxu0
    %v2552 = vunpack.c.l.b16 %v1994
    %v2553 = vpack.c.b16 %v2552, %v2552
    %2554 = vrot.lane.b32.xlu0 %v2553, 32
    %v2555 = vpop.permute.xlu0 %2554
    %v2557 = vsel %vm915, %v2455, 0
    %v2560 = vsel %vm1017, %v2555, 0
    %2562 = vmatprep.subr.bf16.mxu0 0
    %2563 = vmatpush1.bf16.msra.mxu0 0
    %2564 = vmatprep.subr.bf16.mxu0 0
    %2565 = vmatpush1.bf16.msra.mxu0 0
    %2566 = vmatprep.subr.bf16.mxu0 0
    %2567 = vmatpush1.bf16.msra.mxu0 0
    %2568 = vmatprep.subr.bf16.mxu0 0
    %2569 = vmatpush1.bf16.msra.mxu0 0
    %2570 = vmatprep.subr.bf16.mxu0 0
    %2571 = vmatpush1.bf16.msra.mxu0 0
    %2572 = vmatprep.subr.bf16.mxu0 0
    %2573 = vmatpush1.bf16.msra.mxu0 0
    %2574 = vmatprep.subr.bf16.mxu0 0
    %2575 = vmatpush1.bf16.msra.mxu0 0
    %2576 = vmatprep.subr.bf16.mxu0 0
    %2577 = vmatpush1.bf16.msra.mxu0 %v2560
    %2578 = vmatprep.subr.bf16.mxu0 0
    %2579 = vmatpush2.bf16.msra.mxu0 0
    %2580 = vmatprep.subr.bf16.mxu0 0
    %2581 = vmatpush2.bf16.msra.mxu0 0
    %2582 = vmatprep.subr.bf16.mxu0 0
    %2583 = vmatpush2.bf16.msra.mxu0 0
    %2584 = vmatprep.subr.bf16.mxu0 0
    %2585 = vmatpush2.bf16.msra.mxu0 0
    %2586 = vmatprep.subr.bf16.mxu0 0
    %2587 = vmatpush2.bf16.msra.mxu0 0
    %2588 = vmatprep.subr.bf16.mxu0 0
    %2589 = vmatpush2.bf16.msra.mxu0 0
    %2590 = vmatprep.subr.bf16.mxu0 0
    %2591 = vmatpush2.bf16.msra.mxu0 0
    %2592 = vmatprep.subr.bf16.mxu0 0
    %2593 = vmatpush2.bf16.msra.mxu0 0
    %2594 = vmatprep.mubr.bf16.mxu0 0
    %2595 = vmatmul.mubr.bf16.gmra.mxu0 %v2557
    %v2596 = vpop.f32.mrf.mxu0
    %v2597 = vadd.f32 0.0, %v2596
    %v2598 = vpop.f32.mrf.mxu0
    %v2599 = vpop.f32.mrf.mxu0
    %v2600 = vpop.f32.mrf.mxu0
    %2601 = vdwg.mxu0
    %v2603 = vsel %vm915, %v2456, 0
    %2605 = vmatprep.subr.bf16.mxu0 0
    %2606 = vmatpush1.bf16.msra.mxu0 0
    %2607 = vmatprep.subr.bf16.mxu0 0
    %2608 = vmatpush1.bf16.msra.mxu0 0
    %2609 = vmatprep.subr.bf16.mxu0 0
    %2610 = vmatpush1.bf16.msra.mxu0 0
    %2611 = vmatprep.subr.bf16.mxu0 0
    %2612 = vmatpush1.bf16.msra.mxu0 0
    %2613 = vmatprep.subr.bf16.mxu0 0
    %2614 = vmatpush1.bf16.msra.mxu0 0
    %2615 = vmatprep.subr.bf16.mxu0 0
    %2616 = vmatpush1.bf16.msra.mxu0 0
    %2617 = vmatprep.subr.bf16.mxu0 0
    %2618 = vmatpush1.bf16.msra.mxu0 0
    %2619 = vmatprep.subr.bf16.mxu0 0
    %2620 = vmatpush1.bf16.msra.mxu0 %v2560
    %2621 = vmatprep.subr.bf16.mxu0 0
    %2622 = vmatpush2.bf16.msra.mxu0 0
    %2623 = vmatprep.subr.bf16.mxu0 0
    %2624 = vmatpush2.bf16.msra.mxu0 0
    %2625 = vmatprep.subr.bf16.mxu0 0
    %2626 = vmatpush2.bf16.msra.mxu0 0
    %2627 = vmatprep.subr.bf16.mxu0 0
    %2628 = vmatpush2.bf16.msra.mxu0 0
    %2629 = vmatprep.subr.bf16.mxu0 0
    %2630 = vmatpush2.bf16.msra.mxu0 0
    %2631 = vmatprep.subr.bf16.mxu0 0
    %2632 = vmatpush2.bf16.msra.mxu0 0
    %2633 = vmatprep.subr.bf16.mxu0 0
    %2634 = vmatpush2.bf16.msra.mxu0 0
    %2635 = vmatprep.subr.bf16.mxu0 0
    %2636 = vmatpush2.bf16.msra.mxu0 0
    %2637 = vmatprep.mubr.bf16.mxu0 0
    %2638 = vmatmul.mubr.bf16.gmra.mxu0 %v2603
    %v2639 = vpop.f32.mrf.mxu0
    %v2640 = vadd.f32 0.0, %v2639
    %v2641 = vpop.f32.mrf.mxu0
    %v2642 = vpop.f32.mrf.mxu0
    %v2643 = vpop.f32.mrf.mxu0
    %2644 = vdwg.mxu0
    %2645 = vrot.lane.b32.xlu0 %v1992, 32
    %v2646 = vpop.permute.xlu0 %2645
    %v2648 = vsel %vm915, %v2457, 0
    %v2651 = vsel %vm1017, %v2646, 0
    %2653 = vmatprep.subr.bf16.mxu0 0
    %2654 = vmatpush1.bf16.msra.mxu0 0
    %2655 = vmatprep.subr.bf16.mxu0 0
    %2656 = vmatpush1.bf16.msra.mxu0 0
    %2657 = vmatprep.subr.bf16.mxu0 0
    %2658 = vmatpush1.bf16.msra.mxu0 0
    %2659 = vmatprep.subr.bf16.mxu0 0
    %2660 = vmatpush1.bf16.msra.mxu0 0
    %2661 = vmatprep.subr.bf16.mxu0 0
    %2662 = vmatpush1.bf16.msra.mxu0 0
    %2663 = vmatprep.subr.bf16.mxu0 0
    %2664 = vmatpush1.bf16.msra.mxu0 0
    %2665 = vmatprep.subr.bf16.mxu0 0
    %2666 = vmatpush1.bf16.msra.mxu0 0
    %2667 = vmatprep.subr.bf16.mxu0 0
    %2668 = vmatpush1.bf16.msra.mxu0 %v2651
    %2669 = vmatprep.subr.bf16.mxu0 0
    %2670 = vmatpush2.bf16.msra.mxu0 0
    %2671 = vmatprep.subr.bf16.mxu0 0
    %2672 = vmatpush2.bf16.msra.mxu0 0
    %2673 = vmatprep.subr.bf16.mxu0 0
    %2674 = vmatpush2.bf16.msra.mxu0 0
    %2675 = vmatprep.subr.bf16.mxu0 0
    %2676 = vmatpush2.bf16.msra.mxu0 0
    %2677 = vmatprep.subr.bf16.mxu0 0
    %2678 = vmatpush2.bf16.msra.mxu0 0
    %2679 = vmatprep.subr.bf16.mxu0 0
    %2680 = vmatpush2.bf16.msra.mxu0 0
    %2681 = vmatprep.subr.bf16.mxu0 0
    %2682 = vmatpush2.bf16.msra.mxu0 0
    %2683 = vmatprep.subr.bf16.mxu0 0
    %2684 = vmatpush2.bf16.msra.mxu0 0
    %2685 = vmatprep.mubr.bf16.mxu0 0
    %2686 = vmatmul.mubr.bf16.gmra.mxu0 %v2648
    %v2687 = vpop.f32.mrf.mxu0
    %v2688 = vadd.f32 0.0, %v2687
    %v2689 = vpop.f32.mrf.mxu0
    %v2690 = vpop.f32.mrf.mxu0
    %v2691 = vpop.f32.mrf.mxu0
    %2692 = vdwg.mxu0
    %v2694 = vsel %vm915, %v2458, 0
    %2696 = vmatprep.subr.bf16.mxu0 0
    %2697 = vmatpush1.bf16.msra.mxu0 0
    %2698 = vmatprep.subr.bf16.mxu0 0
    %2699 = vmatpush1.bf16.msra.mxu0 0
    %2700 = vmatprep.subr.bf16.mxu0 0
    %2701 = vmatpush1.bf16.msra.mxu0 0
    %2702 = vmatprep.subr.bf16.mxu0 0
    %2703 = vmatpush1.bf16.msra.mxu0 0
    %2704 = vmatprep.subr.bf16.mxu0 0
    %2705 = vmatpush1.bf16.msra.mxu0 0
    %2706 = vmatprep.subr.bf16.mxu0 0
    %2707 = vmatpush1.bf16.msra.mxu0 0
    %2708 = vmatprep.subr.bf16.mxu0 0
    %2709 = vmatpush1.bf16.msra.mxu0 0
    %2710 = vmatprep.subr.bf16.mxu0 0
    %2711 = vmatpush1.bf16.msra.mxu0 %v2651
    %2712 = vmatprep.subr.bf16.mxu0 0
    %2713 = vmatpush2.bf16.msra.mxu0 0
    %2714 = vmatprep.subr.bf16.mxu0 0
    %2715 = vmatpush2.bf16.msra.mxu0 0
    %2716 = vmatprep.subr.bf16.mxu0 0
    %2717 = vmatpush2.bf16.msra.mxu0 0
    %2718 = vmatprep.subr.bf16.mxu0 0
    %2719 = vmatpush2.bf16.msra.mxu0 0
    %2720 = vmatprep.subr.bf16.mxu0 0
    %2721 = vmatpush2.bf16.msra.mxu0 0
    %2722 = vmatprep.subr.bf16.mxu0 0
    %2723 = vmatpush2.bf16.msra.mxu0 0
    %2724 = vmatprep.subr.bf16.mxu0 0
    %2725 = vmatpush2.bf16.msra.mxu0 0
    %2726 = vmatprep.subr.bf16.mxu0 0
    %2727 = vmatpush2.bf16.msra.mxu0 0
    %2728 = vmatprep.mubr.bf16.mxu0 0
    %2729 = vmatmul.mubr.bf16.gmra.mxu0 %v2694
    %v2730 = vpop.f32.mrf.mxu0
    %v2731 = vadd.f32 0.0, %v2730
    %v2732 = vpop.f32.mrf.mxu0
    %v2733 = vpop.f32.mrf.mxu0
    %v2734 = vpop.f32.mrf.mxu0
    %2735 = vdwg.mxu0
    %v2736 = vunpack.c.l.b16 %v1996
    %v2737 = vpack.c.b16 %v2736, %v2736
    %2738 = vrot.lane.b32.xlu0 %v2737, 32
    %v2739 = vpop.permute.xlu0 %2738
    %v2741 = vsel %vm915, %v2459, 0
    %v2744 = vsel %vm1017, %v2739, 0
    %2746 = vmatprep.subr.bf16.mxu0 0
    %2747 = vmatpush1.bf16.msra.mxu0 0
    %2748 = vmatprep.subr.bf16.mxu0 0
    %2749 = vmatpush1.bf16.msra.mxu0 0
    %2750 = vmatprep.subr.bf16.mxu0 0
    %2751 = vmatpush1.bf16.msra.mxu0 0
    %2752 = vmatprep.subr.bf16.mxu0 0
    %2753 = vmatpush1.bf16.msra.mxu0 0
    %2754 = vmatprep.subr.bf16.mxu0 0
    %2755 = vmatpush1.bf16.msra.mxu0 0
    %2756 = vmatprep.subr.bf16.mxu0 0
    %2757 = vmatpush1.bf16.msra.mxu0 0
    %2758 = vmatprep.subr.bf16.mxu0 0
    %2759 = vmatpush1.bf16.msra.mxu0 0
    %2760 = vmatprep.subr.bf16.mxu0 0
    %2761 = vmatpush1.bf16.msra.mxu0 %v2744
    %2762 = vmatprep.subr.bf16.mxu0 0
    %2763 = vmatpush2.bf16.msra.mxu0 0
    %2764 = vmatprep.subr.bf16.mxu0 0
    %2765 = vmatpush2.bf16.msra.mxu0 0
    %2766 = vmatprep.subr.bf16.mxu0 0
    %2767 = vmatpush2.bf16.msra.mxu0 0
    %2768 = vmatprep.subr.bf16.mxu0 0
    %2769 = vmatpush2.bf16.msra.mxu0 0
    %2770 = vmatprep.subr.bf16.mxu0 0
    %2771 = vmatpush2.bf16.msra.mxu0 0
    %2772 = vmatprep.subr.bf16.mxu0 0
    %2773 = vmatpush2.bf16.msra.mxu0 0
    %2774 = vmatprep.subr.bf16.mxu0 0
    %2775 = vmatpush2.bf16.msra.mxu0 0
    %2776 = vmatprep.subr.bf16.mxu0 0
    %2777 = vmatpush2.bf16.msra.mxu0 0
    %2778 = vmatprep.mubr.bf16.mxu0 0
    %2779 = vmatmul.mubr.bf16.gmra.mxu0 %v2741
    %v2780 = vpop.f32.mrf.mxu0
    %v2781 = vadd.f32 0.0, %v2780
    %v2782 = vpop.f32.mrf.mxu0
    %v2783 = vpop.f32.mrf.mxu0
    %v2784 = vpop.f32.mrf.mxu0
    %2785 = vdwg.mxu0
    %v2787 = vsel %vm915, %v2460, 0
    %2789 = vmatprep.subr.bf16.mxu0 0
    %2790 = vmatpush1.bf16.msra.mxu0 0
    %2791 = vmatprep.subr.bf16.mxu0 0
    %2792 = vmatpush1.bf16.msra.mxu0 0
    %2793 = vmatprep.subr.bf16.mxu0 0
    %2794 = vmatpush1.bf16.msra.mxu0 0
    %2795 = vmatprep.subr.bf16.mxu0 0
    %2796 = vmatpush1.bf16.msra.mxu0 0
    %2797 = vmatprep.subr.bf16.mxu0 0
    %2798 = vmatpush1.bf16.msra.mxu0 0
    %2799 = vmatprep.subr.bf16.mxu0 0
    %2800 = vmatpush1.bf16.msra.mxu0 0
    %2801 = vmatprep.subr.bf16.mxu0 0
    %2802 = vmatpush1.bf16.msra.mxu0 0
    %2803 = vmatprep.subr.bf16.mxu0 0
    %2804 = vmatpush1.bf16.msra.mxu0 %v2744
    %2805 = vmatprep.subr.bf16.mxu0 0
    %2806 = vmatpush2.bf16.msra.mxu0 0
    %2807 = vmatprep.subr.bf16.mxu0 0
    %2808 = vmatpush2.bf16.msra.mxu0 0
    %2809 = vmatprep.subr.bf16.mxu0 0
    %2810 = vmatpush2.bf16.msra.mxu0 0
    %2811 = vmatprep.subr.bf16.mxu0 0
    %2812 = vmatpush2.bf16.msra.mxu0 0
    %2813 = vmatprep.subr.bf16.mxu0 0
    %2814 = vmatpush2.bf16.msra.mxu0 0
    %2815 = vmatprep.subr.bf16.mxu0 0
    %2816 = vmatpush2.bf16.msra.mxu0 0
    %2817 = vmatprep.subr.bf16.mxu0 0
    %2818 = vmatpush2.bf16.msra.mxu0 0
    %2819 = vmatprep.subr.bf16.mxu0 0
    %2820 = vmatpush2.bf16.msra.mxu0 0
    %2821 = vmatprep.mubr.bf16.mxu0 0
    %2822 = vmatmul.mubr.bf16.gmra.mxu0 %v2787
    %v2823 = vpop.f32.mrf.mxu0
    %v2824 = vadd.f32 0.0, %v2823
    %v2825 = vpop.f32.mrf.mxu0
    %v2826 = vpop.f32.mrf.mxu0
    %v2827 = vpop.f32.mrf.mxu0
    %2828 = vdwg.mxu0
    %2831 = vrot.lane.b32.xlu0 %v2547, 16
    %v2832 = vpop.permute.xlu0 %2831
    %2833 = vrot.lane.b32.xlu0 %v2731, 16
    %v2834 = vpop.permute.xlu0 %2833
    %2839 = vrot.lane.b32.xlu0 %v2597, 32
    %v2840 = vpop.permute.xlu0 %2839
    %2841 = vrot.lane.b32.xlu0 %v2781, 32
    %v2842 = vpop.permute.xlu0 %2841
    %2847 = vrot.lane.b32.xlu0 %v2640, 48
    %v2848 = vpop.permute.xlu0 %2847
    %2849 = vrot.lane.b32.xlu0 %v2824, 48
    %v2850 = vpop.permute.xlu0 %2849
    %v2853 = vsel %vm232, %v2504, %v2832
    %v2854 = vsel %vm232, %v2688, %v2834
    %v2855 = vsel %vm234, %v2853, %v2840
    %v2856 = vsel %vm234, %v2854, %v2842
    %v2857 = vsel %vm236, %v2855, %v2848
    %v2858 = vsel %vm236, %v2856, %v2850
    %v2859 = vpack.c.bf16 %v2858, %v2857
    %s2860 = scalar_lea.vmem %s10, 32
    %v2861 = vld [vmem:[%s2860] sm:$0xf]
    %v2862 = vld [vmem:[%s2860 + $0x4] sm:$0xf]
    %v2863 = vld [vmem:[%s2860 + $0x8] sm:$0xf]
    %v2864 = vld [vmem:[%s2860 + $0xc] sm:$0xf]
    %v2865 = vld [vmem:[%s2860 + $0x10] sm:$0xf]
    %v2866 = vld [vmem:[%s2860 + $0x14] sm:$0xf]
    %v2867 = vld [vmem:[%s2860 + $0x18] sm:$0xf]
    %v2868 = vld [vmem:[%s2860 + $0x1c] sm:$0xf]
    %v2877 = vunpack.c.l.b16 %v2861
    %v2878 = vunpack.c.l.b16 %v2862
    %v2879 = vunpack.c.l.b16 %v2863
    %v2880 = vunpack.c.l.b16 %v2864
    %v2881 = vunpack.c.l.b16 %v2865
    %v2882 = vunpack.c.l.b16 %v2866
    %v2883 = vunpack.c.l.b16 %v2867
    %v2884 = vunpack.c.l.b16 %v2868
    %v2885 = vpack.c.b16 %v2878, %v2877
    %v2886 = vpack.c.b16 %v2880, %v2879
    %v2887 = vpack.c.b16 %v2882, %v2881
    %v2888 = vpack.c.b16 %v2884, %v2883
    %v2894 = vsel %vm265, %v2859, 0
    %2896 = vmatprep.subr.bf16.mxu0 0
    %2897 = vmatpush1.bf16.msra.mxu0 0
    %2898 = vmatprep.subr.bf16.mxu0 0
    %2899 = vmatpush1.bf16.msra.mxu0 0
    %2900 = vmatprep.subr.bf16.mxu0 0
    %2901 = vmatpush1.bf16.msra.mxu0 0
    %2902 = vmatprep.subr.bf16.mxu0 0
    %2903 = vmatpush1.bf16.msra.mxu0 0
    %2904 = vmatprep.subr.bf16.mxu0 0
    %2905 = vmatpush1.bf16.msra.mxu0 %v2888
    %2906 = vmatprep.subr.bf16.mxu0 0
    %2907 = vmatpush1.bf16.msra.mxu0 %v2887
    %2908 = vmatprep.subr.bf16.mxu0 0
    %2909 = vmatpush1.bf16.msra.mxu0 %v2886
    %2910 = vmatprep.subr.bf16.mxu0 0
    %2911 = vmatpush1.bf16.msra.mxu0 %v2885
    %2912 = vmatprep.subr.bf16.mxu0 0
    %2913 = vmatpush2.bf16.msra.mxu0 0
    %2914 = vmatprep.subr.bf16.mxu0 0
    %2915 = vmatpush2.bf16.msra.mxu0 0
    %2916 = vmatprep.subr.bf16.mxu0 0
    %2917 = vmatpush2.bf16.msra.mxu0 0
    %2918 = vmatprep.subr.bf16.mxu0 0
    %2919 = vmatpush2.bf16.msra.mxu0 0
    %2920 = vmatprep.subr.bf16.mxu0 0
    %2921 = vmatpush2.bf16.msra.mxu0 0
    %2922 = vmatprep.subr.bf16.mxu0 0
    %2923 = vmatpush2.bf16.msra.mxu0 0
    %2924 = vmatprep.subr.bf16.mxu0 0
    %2925 = vmatpush2.bf16.msra.mxu0 0
    %2926 = vmatprep.subr.bf16.mxu0 0
    %2927 = vmatpush2.bf16.msra.mxu0 0
    %2928 = vmatprep.mubr.bf16.mxu0 0
    %2929 = vmatmul.mubr.bf16.gmra.mxu0 %v2894
    %v2930 = vpop.f32.mrf.mxu0
    %v2931 = vadd.f32 0.0, %v2930
    %v2932 = vpop.f32.mrf.mxu0
    %v2933 = vpop.f32.mrf.mxu0
    %v2934 = vadd.f32 0.0, %v2933
    %v2935 = vpop.f32.mrf.mxu0
    %2936 = vdwg.mxu0
    %v2937 = vadd.f32 %v1739, %v2931
    %v2938 = vadd.f32 %v1740, %v2934
    %v2939 = vpack.c.bf16 %v2938, %v2937
    %s2940 = scalar_lea.vmem %s11, 1
    %v2941 = vld [vmem:[%s2940] sm:$0x1]
    %v2942 = vunpack.c.l.bf16 %v2939
    %v2943 = vunpack.c.h.bf16 %v2939
    %v2944 = vmul.f32 %v2942, %v2942
    %v2945 = vmul.f32 %v2943, %v2943
    %v2946 = vsel %vm265, %v2944, 0.0
    %2947 = vadd.xlane.f32.xlu0 %v2946
    %v2948 = vpop.xlane.xlu0 %2947
    %v2949 = vsel %vm265, %v2945, 0.0
    %2950 = vadd.xlane.f32.xlu0 %v2949
    %v2951 = vpop.xlane.xlu0 %2950
    %v2952 = vmul.f32 %v2948, %v272
    %v2953 = vmul.f32 %v2951, %v272
    %v2954 = vadd.f32 %v2952, 1e-06
    %v2955 = vadd.f32 %v2953, 1e-06
    %v2956 = vrsqrt.pop %v2954
    %v2957 = vrsqrt.pop %v2955
    %v2958 = vmul.f32 %v2942, %v2956
    %v2959 = vmul.f32 %v2943, %v2957
    %v2960 = vunpack.c.l.bf16 %v2941
    %v2961 = vlaneseq
    %v2962 = vshrl.u32 %v2961, 7
    %v2963 = vsub.s32 0, %v2962
    %v2964 = vrot.slane %v2960, %v2963
    %v2965 = vmul.f32 %v2958, %v2964
    %v2966 = vmul.f32 %v2959, %v2964
    %v2967 = vpack.c.bf16 %v2966, %v2965
    %s2968 = scalar_lea.vmem %s12, 64
    %v2969 = vld [vmem:[%s2968] sm:$0xff]
    %v2970 = vld [vmem:[%s2968 + $0x8] sm:$0xff]
    %v2971 = vld [vmem:[%s2968 + $0x10] sm:$0xff]
    %v2972 = vld [vmem:[%s2968 + $0x18] sm:$0xff]
    %v2973 = vld [vmem:[%s2968 + $0x20] sm:$0xff]
    %v2974 = vld [vmem:[%s2968 + $0x28] sm:$0xff]
    %v2975 = vld [vmem:[%s2968 + $0x30] sm:$0xff]
    %v2976 = vld [vmem:[%s2968 + $0x38] sm:$0xff]
    %v2985 = vunpack.c.l.b16 %v2969
    %v2986 = vunpack.c.h.b16 %v2969
    %v2987 = vunpack.c.l.b16 %v2970
    %v2988 = vunpack.c.h.b16 %v2970
    %v2989 = vunpack.c.l.b16 %v2971
    %v2990 = vunpack.c.h.b16 %v2971
    %v2991 = vunpack.c.l.b16 %v2972
    %v2992 = vunpack.c.h.b16 %v2972
    %v2993 = vunpack.c.l.b16 %v2973
    %v2994 = vunpack.c.h.b16 %v2973
    %v2995 = vunpack.c.l.b16 %v2974
    %v2996 = vunpack.c.h.b16 %v2974
    %v2997 = vunpack.c.l.b16 %v2975
    %v2998 = vunpack.c.h.b16 %v2975
    %v2999 = vunpack.c.l.b16 %v2976
    %v3000 = vunpack.c.h.b16 %v2976
    %v3001 = vpack.c.b16 %v2987, %v2985
    %v3002 = vpack.c.b16 %v2988, %v2986
    %v3003 = vpack.c.b16 %v2991, %v2989
    %v3004 = vpack.c.b16 %v2992, %v2990
    %v3005 = vpack.c.b16 %v2995, %v2993
    %v3006 = vpack.c.b16 %v2996, %v2994
    %v3007 = vpack.c.b16 %v2999, %v2997
    %v3008 = vpack.c.b16 %v3000, %v2998
    %v3018 = vsel %vm265, %v2967, 0
    %3020 = vmatprep.subr.bf16.mxu0 0
    %3021 = vmatpush1.bf16.msra.mxu0 0
    %3022 = vmatprep.subr.bf16.mxu0 0
    %3023 = vmatpush1.bf16.msra.mxu0 0
    %3024 = vmatprep.subr.bf16.mxu0 0
    %3025 = vmatpush1.bf16.msra.mxu0 0
    %3026 = vmatprep.subr.bf16.mxu0 0
    %3027 = vmatpush1.bf16.msra.mxu0 0
    %3028 = vmatprep.subr.bf16.mxu0 %v3008
    %3029 = vmatpush1.bf16.msra.mxu0 %v3007
    %3030 = vmatprep.subr.bf16.mxu0 %v3006
    %3031 = vmatpush1.bf16.msra.mxu0 %v3005
    %3032 = vmatprep.subr.bf16.mxu0 %v3004
    %3033 = vmatpush1.bf16.msra.mxu0 %v3003
    %3034 = vmatprep.subr.bf16.mxu0 %v3002
    %3035 = vmatpush1.bf16.msra.mxu0 %v3001
    %3036 = vmatprep.subr.bf16.mxu0 0
    %3037 = vmatpush2.bf16.msra.mxu0 0
    %3038 = vmatprep.subr.bf16.mxu0 0
    %3039 = vmatpush2.bf16.msra.mxu0 0
    %3040 = vmatprep.subr.bf16.mxu0 0
    %3041 = vmatpush2.bf16.msra.mxu0 0
    %3042 = vmatprep.subr.bf16.mxu0 0
    %3043 = vmatpush2.bf16.msra.mxu0 0
    %3044 = vmatprep.subr.bf16.mxu0 0
    %3045 = vmatpush2.bf16.msra.mxu0 0
    %3046 = vmatprep.subr.bf16.mxu0 0
    %3047 = vmatpush2.bf16.msra.mxu0 0
    %3048 = vmatprep.subr.bf16.mxu0 0
    %3049 = vmatpush2.bf16.msra.mxu0 0
    %3050 = vmatprep.subr.bf16.mxu0 0
    %3051 = vmatpush2.bf16.msra.mxu0 0
    %3052 = vmatprep.mubr.bf16.mxu0 0
    %3053 = vmatmul.mubr.bf16.gmra.mxu0 %v3018
    %v3054 = vpop.f32.mrf.mxu0
    %v3055 = vadd.f32 0.0, %v3054
    %v3056 = vpop.f32.mrf.mxu0
    %v3057 = vadd.f32 0.0, %v3056
    %v3058 = vpop.f32.mrf.mxu0
    %v3059 = vadd.f32 0.0, %v3058
    %v3060 = vpop.f32.mrf.mxu0
    %v3061 = vadd.f32 0.0, %v3060
    %3062 = vdwg.mxu0
    %v3063 = vxor.u32 %v3055, 2147483648
    %v3064 = vxor.u32 %v3059, 2147483648
    %v3065 = vmul.f32 %v3063, 1.442695
    %v3066 = vpow.pop %v3065
    %v3067 = vmul.f32 %v3064, 1.442695
    %v3068 = vpow.pop %v3067
    %v3069 = vadd.f32 %v3066, 1.0
    %v3070 = vadd.f32 %v3068, 1.0
    %v3071 = vrcp.pop %v3069
    %v3072 = vmul.f32 1.0, %v3071
    %v3073 = vrcp.pop %v3070
    %v3074 = vmul.f32 1.0, %v3073
    %v3075 = vmul.f32 %v3055, %v3072
    %v3076 = vmul.f32 %v3059, %v3074
    %v3077 = vmul.f32 %v3075, %v3057
    %v3078 = vmul.f32 %v3076, %v3061
    %v3079 = vpack.c.bf16 %v3078, %v3077
    %s3080 = scalar_lea.vmem %s13, 64
    %v3081 = vld [vmem:[%s3080] sm:$0xf]
    %v3082 = vld [vmem:[%s3080 + $0x4] sm:$0xf]
    %v3083 = vld [vmem:[%s3080 + $0x8] sm:$0xf]
    %v3084 = vld [vmem:[%s3080 + $0xc] sm:$0xf]
    %v3085 = vld [vmem:[%s3080 + $0x10] sm:$0xf]
    %v3086 = vld [vmem:[%s3080 + $0x14] sm:$0xf]
    %v3087 = vld [vmem:[%s3080 + $0x18] sm:$0xf]
    %v3088 = vld [vmem:[%s3080 + $0x1c] sm:$0xf]
    %v3089 = vld [vmem:[%s3080 + $0x20] sm:$0xf]
    %v3090 = vld [vmem:[%s3080 + $0x24] sm:$0xf]
    %v3091 = vld [vmem:[%s3080 + $0x28] sm:$0xf]
    %v3092 = vld [vmem:[%s3080 + $0x2c] sm:$0xf]
    %v3093 = vld [vmem:[%s3080 + $0x30] sm:$0xf]
    %v3094 = vld [vmem:[%s3080 + $0x34] sm:$0xf]
    %v3095 = vld [vmem:[%s3080 + $0x38] sm:$0xf]
    %v3096 = vld [vmem:[%s3080 + $0x3c] sm:$0xf]
    %v3113 = vunpack.c.l.b16 %v3081
    %v3114 = vunpack.c.l.b16 %v3082
    %v3115 = vunpack.c.l.b16 %v3083
    %v3116 = vunpack.c.l.b16 %v3084
    %v3117 = vunpack.c.l.b16 %v3085
    %v3118 = vunpack.c.l.b16 %v3086
    %v3119 = vunpack.c.l.b16 %v3087
    %v3120 = vunpack.c.l.b16 %v3088
    %v3121 = vunpack.c.l.b16 %v3089
    %v3122 = vunpack.c.l.b16 %v3090
    %v3123 = vunpack.c.l.b16 %v3091
    %v3124 = vunpack.c.l.b16 %v3092
    %v3125 = vunpack.c.l.b16 %v3093
    %v3126 = vunpack.c.l.b16 %v3094
    %v3127 = vunpack.c.l.b16 %v3095
    %v3128 = vunpack.c.l.b16 %v3096
    %v3129 = vpack.c.b16 %v3114, %v3113
    %v3130 = vpack.c.b16 %v3116, %v3115
    %v3131 = vpack.c.b16 %v3118, %v3117
    %v3132 = vpack.c.b16 %v3120, %v3119
    %v3133 = vpack.c.b16 %v3122, %v3121
    %v3134 = vpack.c.b16 %v3124, %v3123
    %v3135 = vpack.c.b16 %v3126, %v3125
    %v3136 = vpack.c.b16 %v3128, %v3127
    %3145 = vmatprep.subr.bf16.mxu0 0
    %3146 = vmatpush1.bf16.msra.mxu0 %v3136
    %3147 = vmatprep.subr.bf16.mxu0 0
    %3148 = vmatpush1.bf16.msra.mxu0 %v3135
    %3149 = vmatprep.subr.bf16.mxu0 0
    %3150 = vmatpush1.bf16.msra.mxu0 %v3134
    %3151 = vmatprep.subr.bf16.mxu0 0
    %3152 = vmatpush1.bf16.msra.mxu0 %v3133
    %3153 = vmatprep.subr.bf16.mxu0 0
    %3154 = vmatpush1.bf16.msra.mxu0 %v3132
    %3155 = vmatprep.subr.bf16.mxu0 0
    %3156 = vmatpush1.bf16.msra.mxu0 %v3131
    %3157 = vmatprep.subr.bf16.mxu0 0
    %3158 = vmatpush1.bf16.msra.mxu0 %v3130
    %3159 = vmatprep.subr.bf16.mxu0 0
    %3160 = vmatpush1.bf16.msra.mxu0 %v3129
    %3161 = vmatprep.subr.bf16.mxu0 0
    %3162 = vmatpush2.bf16.msra.mxu0 0
    %3163 = vmatprep.subr.bf16.mxu0 0
    %3164 = vmatpush2.bf16.msra.mxu0 0
    %3165 = vmatprep.subr.bf16.mxu0 0
    %3166 = vmatpush2.bf16.msra.mxu0 0
    %3167 = vmatprep.subr.bf16.mxu0 0
    %3168 = vmatpush2.bf16.msra.mxu0 0
    %3169 = vmatprep.subr.bf16.mxu0 0
    %3170 = vmatpush2.bf16.msra.mxu0 0
    %3171 = vmatprep.subr.bf16.mxu0 0
    %3172 = vmatpush2.bf16.msra.mxu0 0
    %3173 = vmatprep.subr.bf16.mxu0 0
    %3174 = vmatpush2.bf16.msra.mxu0 0
    %3175 = vmatprep.subr.bf16.mxu0 0
    %3176 = vmatpush2.bf16.msra.mxu0 0
    %3177 = vmatprep.mubr.bf16.mxu0 0
    %3178 = vmatmul.mubr.bf16.gmra.mxu0 %v3079
    %v3179 = vpop.f32.mrf.mxu0
    %v3180 = vadd.f32 0.0, %v3179
    %v3181 = vpop.f32.mrf.mxu0
    %v3182 = vpop.f32.mrf.mxu0
    %v3183 = vadd.f32 0.0, %v3182
    %v3184 = vpop.f32.mrf.mxu0
    %3185 = vdwg.mxu0
    %v3186 = vadd.f32 %v2942, %v3180
    %v3187 = vadd.f32 %v2943, %v3183
    %v3188 = vpack.c.bf16 %v3187, %v3186
    %v3189 = vld [vmem:[%s14] sm:$0x1]
    %v3190 = vunpack.c.l.bf16 %v3188
    %v3191 = vunpack.c.h.bf16 %v3188
    %v3192 = vmul.f32 %v3190, %v3190
    %v3193 = vmul.f32 %v3191, %v3191
    %v3194 = vsel %vm265, %v3192, 0.0
    %3195 = vadd.xlane.f32.xlu0 %v3194
    %v3196 = vpop.xlane.xlu0 %3195
    %v3197 = vsel %vm265, %v3193, 0.0
    %3198 = vadd.xlane.f32.xlu0 %v3197
    %v3199 = vpop.xlane.xlu0 %3198
    %v3200 = vmul.f32 %v3196, %v272
    %v3201 = vmul.f32 %v3199, %v272
    %v3202 = vadd.f32 %v3200, 1e-06
    %v3203 = vadd.f32 %v3201, 1e-06
    %v3204 = vrsqrt.pop %v3202
    %v3205 = vrsqrt.pop %v3203
    %v3206 = vmul.f32 %v3190, %v3204
    %v3207 = vmul.f32 %v3191, %v3205
    %v3208 = vunpack.c.l.bf16 %v3189
    %v3209 = vlaneseq
    %v3210 = vshrl.u32 %v3209, 7
    %v3211 = vsub.s32 0, %v3210
    %v3212 = vrot.slane %v3208, %v3211
    %v3213 = vmul.f32 %v3206, %v3212
    %v3214 = vmul.f32 %v3207, %v3212
    %v3215 = vld [vmem:[%s2] sm:$0x3]
    %3216 = vset.pattern.permute.xlu0 0
    %3217 = vperm.xlu0 %3216, %v3215
    %v3218 = vpop.permute.xlu0 %3217
    %vm3219 = vcmp.eq.s32.totalorder %v55, %v3218
    %v3220 = vsel %vm3219, 1, 0
    %v3221 = vcvt.s32.f32 %v3220
    %v3222 = vlaneseq
    %v3223 = vshrl.u32 %v3222, 7
    %v3224 = vsub.s32 0, %v3223
    %v3225 = vrot.slane %v3221, %v3224
    %3227 = vbcast.lane.b32.xlu0 %v3225, 256
    %v3228 = vpop.permute.xlu0 %3227
    %v3229 = vlaneseq
    %v3230 = vshrl.u32 %v3229, 7
    %v3231 = vsub.s32 1, %v3230
    %v3232 = vrot.slane %v3221, %v3231
    %3234 = vbcast.lane.b32.xlu0 %v3232, 256
    %v3235 = vpop.permute.xlu0 %3234
    %v3236 = vmul.f32 %v3228, %v3213
    %v3237 = vmul.f32 %v3235, %v3214
    %v3238 = vsel %vm265, %v3236, 0.0
    %v3239 = vrot.slane %v3238, 4
    %v3240 = vadd.f32 %v3238, %v3239
    %v3241 = vrot.slane %v3240, 2
    %v3242 = vadd.f32 %v3240, %v3241
    %v3243 = vrot.slane %v3242, 1
    %v3244 = vadd.f32 %v3242, %v3243
    %v3245 = vsel %vm265, %v3237, 0.0
    %v3246 = vrot.slane %v3245, 4
    %v3247 = vadd.f32 %v3245, %v3246
    %v3248 = vrot.slane %v3247, 2
    %v3249 = vadd.f32 %v3247, %v3248
    %v3250 = vrot.slane %v3249, 1
    %v3251 = vadd.f32 %v3249, %v3250
    %v3252 = vmul.f32 %v3244, %v3244
    %v3253 = vmul.f32 %v3251, %v3251
    %vm3256 = vcmask 1041409
    %v3257 = vsel %vm3256, %v3253, %v3252
    %vm3259 = vcmask 517120
    %v3260 = vsel %vm3259, %v3257, 0.0
    %3261 = vadd.xlane.f32.xlu0 %v3260
    %v3262 = vpop.xlane.xlu0 %3261
    %v3263 = vrsqrt.pop %v3262
    %v3264 = vmul.f32 %v3262, %v3263
    %vm3265 = vcmp.eq.f32.partialorder %v3262, inf
    %v3266 = vsel %vm3265, %v3262, %v3264
    %vm3267 = vcmp.eq.f32.partialorder %v3262, 0.0
    %v3268 = vand.u32 %v3262, 2147483648
    %v3269 = vsel %vm3267, %v3268, %v3266
    %v3270 = vmax.f32 %v3269, 1e-12
    %v3272 = vrot.slane %v3270, 1
    %v3275 = vrcp.pop %v3270
    %v3276 = vmul.f32 %v3244, %v3275
    %v3277 = vrcp.pop %v3272
    %v3278 = vmul.f32 %v3251, %v3277
    %v3279 = vpack.c.bf16 %v3276, %v3276
    %v3280 = vpack.c.bf16 %v3278, %v3278
    %v3284 = vunpack.c.l.s4 1966171168
    %v3285 = vunpack.c.0.s8 %v3284
    %v3286 = vlaneseq
    %v3287 = vshrl.u32 %v3286, 7
    %v3288 = vsub.s32 %v3285, %v3287
    %v3289 = vrot.slane %v3279, %v3288
    %v3291 = vunpack.c.l.s4 1966171168
    %v3292 = vunpack.c.0.s8 %v3291
    %v3293 = vlaneseq
    %v3294 = vshrl.u32 %v3293, 7
    %v3295 = vsub.s32 %v3292, %v3294
    %v3296 = vrot.slane %v3289, %v3295
    %v3298 = vunpack.c.l.s4 1966171168
    %v3299 = vunpack.c.0.s8 %v3298
    %v3300 = vlaneseq
    %v3301 = vshrl.u32 %v3300, 7
    %v3302 = vsub.s32 %v3299, %v3301
    %v3303 = vrot.slane %v3280, %v3302
    %v3305 = vunpack.c.l.s4 1966171168
    %v3306 = vunpack.c.0.s8 %v3305
    %v3307 = vlaneseq
    %v3308 = vshrl.u32 %v3307, 7
    %v3309 = vsub.s32 %v3306, %v3308
    %v3310 = vrot.slane %v3303, %v3309
    %v3312 = vunpack.c.l.s4 1935823168
    %v3313 = vunpack.c.0.s8 %v3312
    %v3314 = vlaneseq
    %v3315 = vshrl.u32 %v3314, 7
    %v3316 = vsub.s32 %v3313, %v3315
    %v3317 = vrot.slane %v3296, %v3316
    %v3319 = vunpack.c.l.s4 1935823168
    %v3320 = vunpack.c.0.s8 %v3319
    %v3321 = vlaneseq
    %v3322 = vshrl.u32 %v3321, 7
    %v3323 = vsub.s32 %v3320, %v3322
    %v3324 = vrot.slane %v3317, %v3323
    %v3326 = vunpack.c.l.s4 1935823168
    %v3327 = vunpack.c.0.s8 %v3326
    %v3328 = vlaneseq
    %v3329 = vshrl.u32 %v3328, 7
    %v3330 = vsub.s32 %v3327, %v3329
    %v3331 = vrot.slane %v3310, %v3330
    %v3333 = vunpack.c.l.s4 1935823168
    %v3334 = vunpack.c.0.s8 %v3333
    %v3335 = vlaneseq
    %v3336 = vshrl.u32 %v3335, 7
    %v3337 = vsub.s32 %v3334, %v3336
    %v3338 = vrot.slane %v3331, %v3337
    %v3339 = vunpack.c.l.b16 %v3324
    %v3340 = vunpack.c.l.b16 %v3338
    %v3341 = vrot.slane %v3340, 7
    %v3342 = vsel %vm3256, %v3341, %v3339
    %v3343 = vpack.c.b16 %v3342, %v3342
    %v3345 = vunpack.c.l.s4 1966171168
    %v3346 = vunpack.c.0.s8 %v3345
    %v3347 = vlaneseq
    %v3348 = vshrl.u32 %v3347, 7
    %v3349 = vsub.s32 %v3346, %v3348
    %v3350 = vrot.slane %v3343, %v3349
    %v3352 = vunpack.c.l.s4 1966171168
    %v3353 = vunpack.c.0.s8 %v3352
    %v3354 = vlaneseq
    %v3355 = vshrl.u32 %v3354, 7
    %v3356 = vsub.s32 %v3353, %v3355
    %v3357 = vrot.slane %v3350, %v3356
    %vm3359 = vcmask 516096
    %3360 = vst.msk [vmem:[#allocation2] sm:$0x1] %vm3359, %v3357
    // Predicated region
    $region62: #{qwen_embedding_forward.1} parent=1 // pred_check
      _
    $region63: #{qwen_embedding_forward.1} parent=1 // pred_check_branch
      %3362 = sbr.rel (0) target = $region65
    $region64: #{qwen_embedding_forward.1} parent=1 // pred_region
      %s3364 = ssub.s32 16, 16
      %3365 = vsyncadd [#allocation3], %s3364
      %s3367 = sshll.u32 [#allocation2], 4
      %s3368 = int_to_ptr.vmem [resolvable:$true] %s3367
      %3370 = dma.vmem_to_hbm [thread:$0]  %s3368, 16, %s15, [#allocation3]
    $region65: #{qwen_embedding_forward.1} parent=1 // pred_fallthru
      _
    // Predicated region
    $region66: #{qwen_embedding_forward.1} parent=1 // pred_check
      _
    $region67: #{qwen_embedding_forward.1} parent=1 // pred_check_branch
      %3372 = sbr.rel (0) target = $region69
    $region68: #{qwen_embedding_forward.1} parent=1 // pred_region
      %3373 = dma.done [#allocation3], 16
    $region69: #{qwen_embedding_forward.1} parent=1 // pred_fallthru
      _
    %3374 = vsyncpa [#allocation3], 1

</llo_original>
